<compile_context>
chip_gen: v5e
topology: v5e:2x2
jax: 0.10.0
libtpu: 0.0.40
codegen_flags: <defaults>
</compile_context>

<pallas_src>
import functools

import jax
import jax.numpy as jnp
from jax.experimental import pallas as pl
from jax.experimental.pallas import tpu as pltpu

_BN_EPS = 1e-5


def _conv_block_kernel(x_ref, d_ref, *rest, count):
    """Fused 5 x (Conv3x3 pad=1 -> BatchNorm2d(train) -> ELU).

    x_ref : (N*H, W*C0)          lane-packed input activation
    d_ref : (3, N*H, N*H)        per-dy row-shift matrices (block-diag over N)
    rest  : 5 x (wrow_ref, gamma_ref, beta_ref, rmat_ref), then o_ref
      wrow_ref : (3, W*Cin, W*Cout)  banded conv weights (dx taps folded in)
      gamma_ref: (1, W*Cout)         BN weight, tiled over w
      beta_ref : (1, W*Cout)         BN bias, tiled over w
      rmat_ref : (W*Cout, W*Cout)    0/1 "sum over w per channel" matrix
    o_ref : (N*H, W*Cout_last)
    """
    o_ref = rest[-1]
    prm = rest[:-1]
    n_layers = len(prm) // 4

    a = x_ref[...]
    for li in range(n_layers):
        wrow_ref, g_ref, be_ref, r_ref = prm[4 * li:4 * li + 4]

        # --- Conv2d(3x3, pad=1): 3 x (row-shift matmul, banded-weight matmul).
        acc = None
        for dy in range(3):
            s = jnp.dot(d_ref[dy], a, preferred_element_type=jnp.float32)
            t = jnp.dot(s, wrow_ref[dy], preferred_element_type=jnp.float32)
            acc = t if acc is None else acc + t
        # (conv bias omitted: exactly cancelled by BN mean-centering below)

        # --- BatchNorm2d, training-mode batch stats, folded to one FMA.
        rmat = r_ref[...]
        row_sum = jnp.dot(acc, rmat, preferred_element_type=jnp.float32)
        row_sq = jnp.dot(acc * acc, rmat, preferred_element_type=jnp.float32)
        mean = jnp.sum(row_sum, axis=0, keepdims=True) / count   # (1, W*Cout)
        ex2 = jnp.sum(row_sq, axis=0, keepdims=True) / count
        var = jnp.maximum(ex2 - mean * mean, 0.0)                # biased var
        inv_std = jax.lax.rsqrt(var + _BN_EPS)
        scale = g_ref[...] * inv_std
        shift = be_ref[...] - mean * scale
        y = acc * scale + shift

        # --- ELU (alpha = 1.0); exp(min(y,0)) keeps the EUP path and avoids
        # any overflow on the untaken branch.
        a = jnp.where(y > 0.0, y, jnp.exp(jnp.minimum(y, 0.0)) - 1.0)

    o_ref[...] = a


def _fold_layer_params(w, gamma, beta, W):
    """Fold one layer's conv weight + BN affine into the lane-packed form.

    w: (3, 3, Cin, Cout) (i.e. PyTorch weight[co,ci,ky,kx] transposed to
       (ky,kx,ci,co)); gamma/beta: (Cout,).
    """
    f32 = jnp.float32
    cin, cout = w.shape[2], w.shape[3]
    wrow = []
    for dy in range(3):
        m = jnp.zeros((W * cin, W * cout), f32)
        for dx in range(3):
            # band[w_in, w_out] = 1 iff w_in == w_out + dx - 1 (no wraparound
            # -> zero padding in w comes for free).
            band = jnp.eye(W, W, k=1 - dx, dtype=f32)
            blk = band[:, None, :, None] * w[dy, dx][None, :, None, :]
            m = m + blk.reshape(W * cin, W * cout)
        wrow.append(m)
    wrow = jnp.stack(wrow)                                  # (3, W*Cin, W*Cout)
    gamma_t = jnp.tile(gamma.astype(f32), W).reshape(1, W * cout)
    beta_t = jnp.tile(beta.astype(f32), W).reshape(1, W * cout)
    # rmat[w*Cout+c, w'*Cout+c'] = [c == c']  -> per-channel sum over w,
    # broadcast back across w, in one matmul.
    rmat = jnp.kron(jnp.ones((W, W), f32), jnp.eye(cout, dtype=f32))
    return wrow, gamma_t, beta_t, rmat


@jax.jit
def conv_block_forward(x_nchw, params):
    """ConvBlock forward.  x_nchw: (N, Cin, H, W) -> (N, Cout, H, W)."""
    N, C0, H, W = x_nchw.shape
    cout_last = params[-1][0].shape[3]
    f32 = jnp.float32

    # NCHW -> lane-packed (N*H, W*C).
    x2d = jnp.transpose(x_nchw, (0, 2, 3, 1)).astype(f32).reshape(N * H, W * C0)

    # Per-dy row-shift matrices; block-diagonal over images so the h-direction
    # zero padding and image boundaries are handled exactly.
    d_all = jnp.stack([
        jnp.kron(jnp.eye(N, dtype=f32), jnp.eye(H, H, k=dy - 1, dtype=f32))
        for dy in range(3)])                                 # (3, N*H, N*H)

    inputs = [x2d, d_all]
    for (w, b, gamma, beta) in params:
        del b  # exactly cancelled by training-mode BN mean-centering
        inputs.extend(_fold_layer_params(w, gamma, beta, W))

    def full_spec(shape):
        nd = len(shape)
        return pl.BlockSpec(shape, lambda i, nd=nd: (0,) * nd)

    out2d = pl.pallas_call(
        functools.partial(_conv_block_kernel, count=float(N * H * W)),
        out_shape=jax.ShapeDtypeStruct((N * H, W * cout_last), f32),
        # The whole problem (a few KiB of activations, ~1.5 MiB of folded
        # weights) fits one TensorCore invocation; a "parallel" row-tile grid
        # with two-pass BN partial stats only pays off at much larger N/H.
        grid=(1,),
        in_specs=[full_spec(a.shape) for a in inputs],
        out_specs=full_spec((N * H, W * cout_last)),
        compiler_params=pltpu.CompilerParams(
            dimension_semantics=("arbitrary",)),
    )(*inputs)

    return jnp.transpose(out2d.reshape(N, H, W, cout_last), (0, 3, 1, 2))


def init_conv_block_params(key, in_channels, out_channels):
    """Deterministic synthetic parameters for the 5 conv+BN layers."""
    chans = [
        (in_channels, in_channels),
        (in_channels, in_channels),
        (in_channels, out_channels),
        (out_channels, out_channels),
        (out_channels, out_channels),
    ]
    params = []
    for cin, cout in chans:
        key, kw, kb, kg, kbe = jax.random.split(key, 5)
        # PyTorch conv weight layout is (Cout, Cin, 3, 3); store as (3,3,Cin,Cout).
        w_oihw = 0.1 * jax.random.normal(kw, (cout, cin, 3, 3), jnp.float32)
        w = jnp.transpose(w_oihw, (2, 3, 1, 0))
        b = 0.1 * jax.random.normal(kb, (cout,), jnp.float32)
        gamma = 1.0 + 0.1 * jax.random.normal(kg, (cout,), jnp.float32)
        beta = 0.1 * jax.random.normal(kbe, (cout,), jnp.float32)
        params.append((w, b, gamma, beta))
    return params


def _reference_forward(x_nchw, params):
    """Pure-JAX reference with identical semantics (incl. the conv bias)."""
    x = jnp.transpose(x_nchw, (0, 2, 3, 1)).astype(jnp.float32)
    for (w, b, gamma, beta) in params:
        y = jax.lax.conv_general_dilated(
            x, w, window_strides=(1, 1), padding="SAME",
            dimension_numbers=("NHWC", "HWIO", "NHWC")) + b
        mean = jnp.mean(y, axis=(0, 1, 2))
        var = jnp.var(y, axis=(0, 1, 2))
        y = (y - mean) * jax.lax.rsqrt(var + _BN_EPS) * gamma + beta
        x = jnp.where(y > 0, y, jnp.expm1(y))
    return jnp.transpose(x, (0, 3, 1, 2))


if __name__ == "__main__":
    N, CIN, COUT, H, W = 2, 4, 8, 16, 16

    root = jax.random.PRNGKey(0)
    kx, kp = jax.random.split(root)
    x = jax.random.normal(kx, (N, CIN, H, W), jnp.float32)
    params = init_conv_block_params(kp, CIN, COUT)

    out = jax.block_until_ready(conv_block_forward(x, params))

    assert out.shape == (N, COUT, H, W), out.shape
    assert out.dtype == jnp.float32
    assert bool(jnp.all(jnp.isfinite(out)))

    ref = _reference_forward(x, params)
    max_err = float(jnp.max(jnp.abs(out - ref)))
    assert max_err < 1e-3, f"mismatch vs reference: max abs err = {max_err}"

    print("KERNEL_OK")
</pallas_src>

<mosaic_0001>
module attributes {stable_mosaic.version = 11 : i64} {
  func.func @_conv_block_kernel(%arg0: i32, %arg1: memref<32x64xf32, #tpu.memory_space<vmem>>, %arg2: memref<3x32x32xf32, #tpu.memory_space<vmem>>, %arg3: memref<3x64x64xf32, #tpu.memory_space<vmem>>, %arg4: memref<1x64xf32, #tpu.memory_space<vmem>>, %arg5: memref<1x64xf32, #tpu.memory_space<vmem>>, %arg6: memref<64x64xf32, #tpu.memory_space<vmem>>, %arg7: memref<3x64x64xf32, #tpu.memory_space<vmem>>, %arg8: memref<1x64xf32, #tpu.memory_space<vmem>>, %arg9: memref<1x64xf32, #tpu.memory_space<vmem>>, %arg10: memref<64x64xf32, #tpu.memory_space<vmem>>, %arg11: memref<3x64x128xf32, #tpu.memory_space<vmem>>, %arg12: memref<1x128xf32, #tpu.memory_space<vmem>>, %arg13: memref<1x128xf32, #tpu.memory_space<vmem>>, %arg14: memref<128x128xf32, #tpu.memory_space<vmem>>, %arg15: memref<3x128x128xf32, #tpu.memory_space<vmem>>, %arg16: memref<1x128xf32, #tpu.memory_space<vmem>>, %arg17: memref<1x128xf32, #tpu.memory_space<vmem>>, %arg18: memref<128x128xf32, #tpu.memory_space<vmem>>, %arg19: memref<3x128x128xf32, #tpu.memory_space<vmem>>, %arg20: memref<1x128xf32, #tpu.memory_space<vmem>>, %arg21: memref<1x128xf32, #tpu.memory_space<vmem>>, %arg22: memref<128x128xf32, #tpu.memory_space<vmem>>, %arg23: memref<32x128xf32, #tpu.memory_space<vmem>>) attributes {dimension_semantics = [#tpu.dimension_semantics<arbitrary>], iteration_bounds = array<i64: 1>, scalar_prefetch = 0 : i64, scratch_operands = 0 : i64, tpu.core_type = #tpu.core_type<tc>, window_params = [{pipeline_mode = #tpu.pipeline_mode<synchronous>, transform_indices = @transform_0, window_bounds = array<i64: 32, 64>}, {pipeline_mode = #tpu.pipeline_mode<synchronous>, transform_indices = @transform_1, window_bounds = array<i64: 3, 32, 32>}, {pipeline_mode = #tpu.pipeline_mode<synchronous>, transform_indices = @transform_2, window_bounds = array<i64: 3, 64, 64>}, {pipeline_mode = #tpu.pipeline_mode<synchronous>, transform_indices = @transform_3, window_bounds = array<i64: 1, 64>}, {pipeline_mode = #tpu.pipeline_mode<synchronous>, transform_indices = @transform_4, window_bounds = array<i64: 1, 64>}, {pipeline_mode = #tpu.pipeline_mode<synchronous>, transform_indices = @transform_5, window_bounds = array<i64: 64, 64>}, {pipeline_mode = #tpu.pipeline_mode<synchronous>, transform_indices = @transform_6, window_bounds = array<i64: 3, 64, 64>}, {pipeline_mode = #tpu.pipeline_mode<synchronous>, transform_indices = @transform_7, window_bounds = array<i64: 1, 64>}, {pipeline_mode = #tpu.pipeline_mode<synchronous>, transform_indices = @transform_8, window_bounds = array<i64: 1, 64>}, {pipeline_mode = #tpu.pipeline_mode<synchronous>, transform_indices = @transform_9, window_bounds = array<i64: 64, 64>}, {pipeline_mode = #tpu.pipeline_mode<synchronous>, transform_indices = @transform_10, window_bounds = array<i64: 3, 64, 128>}, {pipeline_mode = #tpu.pipeline_mode<synchronous>, transform_indices = @transform_11, window_bounds = array<i64: 1, 128>}, {pipeline_mode = #tpu.pipeline_mode<synchronous>, transform_indices = @transform_12, window_bounds = array<i64: 1, 128>}, {pipeline_mode = #tpu.pipeline_mode<synchronous>, transform_indices = @transform_13, window_bounds = array<i64: 128, 128>}, {pipeline_mode = #tpu.pipeline_mode<synchronous>, transform_indices = @transform_14, window_bounds = array<i64: 3, 128, 128>}, {pipeline_mode = #tpu.pipeline_mode<synchronous>, transform_indices = @transform_15, window_bounds = array<i64: 1, 128>}, {pipeline_mode = #tpu.pipeline_mode<synchronous>, transform_indices = @transform_16, window_bounds = array<i64: 1, 128>}, {pipeline_mode = #tpu.pipeline_mode<synchronous>, transform_indices = @transform_17, window_bounds = array<i64: 128, 128>}, {pipeline_mode = #tpu.pipeline_mode<synchronous>, transform_indices = @transform_18, window_bounds = array<i64: 3, 128, 128>}, {pipeline_mode = #tpu.pipeline_mode<synchronous>, transform_indices = @transform_19, window_bounds = array<i64: 1, 128>}, {pipeline_mode = #tpu.pipeline_mode<synchronous>, transform_indices = @transform_20, window_bounds = array<i64: 1, 128>}, {pipeline_mode = #tpu.pipeline_mode<synchronous>, transform_indices = @transform_21, window_bounds = array<i64: 128, 128>}, {pipeline_mode = #tpu.pipeline_mode<synchronous>, transform_indices = @transform_22, window_bounds = array<i64: 32, 128>}]} {
    %c0 = arith.constant 0 : index
    %c0_0 = arith.constant 0 : index
    %0 = vector.load %arg1[%c0, %c0_0] : memref<32x64xf32, #tpu.memory_space<vmem>>, vector<32x64xf32>
    %c0_1 = arith.constant 0 : index
    %c0_2 = arith.constant 0 : index
    %c0_3 = arith.constant 0 : index
    %1 = vector.load %arg2[%c0_1, %c0_2, %c0_3] : memref<3x32x32xf32, #tpu.memory_space<vmem>>, vector<1x32x32xf32>
    %2 = vector.shape_cast %1 : vector<1x32x32xf32> to vector<32x32xf32>
    %cst = arith.constant dense<0.000000e+00> : vector<32x64xf32>
    %3 = tpu.matmul %2, %0, %cst {dimension_numbers = #tpu.dot_dimension_numbers<[1], [0], [0], [1], [0, 0, 1, 1], [], []>} : vector<32x32xf32>, vector<32x64xf32>, vector<32x64xf32> -> vector<32x64xf32>
    %c0_4 = arith.constant 0 : index
    %c0_5 = arith.constant 0 : index
    %c0_6 = arith.constant 0 : index
    %4 = vector.load %arg3[%c0_4, %c0_5, %c0_6] : memref<3x64x64xf32, #tpu.memory_space<vmem>>, vector<1x64x64xf32>
    %5 = vector.shape_cast %4 : vector<1x64x64xf32> to vector<64x64xf32>
    %cst_7 = arith.constant dense<0.000000e+00> : vector<32x64xf32>
    %6 = tpu.matmul %3, %5, %cst_7 {dimension_numbers = #tpu.dot_dimension_numbers<[1], [0], [0], [1], [0, 0, 1, 1], [], []>} : vector<32x64xf32>, vector<64x64xf32>, vector<32x64xf32> -> vector<32x64xf32>
    %c1 = arith.constant 1 : index
    %c0_8 = arith.constant 0 : index
    %c0_9 = arith.constant 0 : index
    %7 = vector.load %arg2[%c1, %c0_8, %c0_9] : memref<3x32x32xf32, #tpu.memory_space<vmem>>, vector<1x32x32xf32>
    %8 = vector.shape_cast %7 : vector<1x32x32xf32> to vector<32x32xf32>
    %cst_10 = arith.constant dense<0.000000e+00> : vector<32x64xf32>
    %9 = tpu.matmul %8, %0, %cst_10 {dimension_numbers = #tpu.dot_dimension_numbers<[1], [0], [0], [1], [0, 0, 1, 1], [], []>} : vector<32x32xf32>, vector<32x64xf32>, vector<32x64xf32> -> vector<32x64xf32>
    %c1_11 = arith.constant 1 : index
    %c0_12 = arith.constant 0 : index
    %c0_13 = arith.constant 0 : index
    %10 = vector.load %arg3[%c1_11, %c0_12, %c0_13] : memref<3x64x64xf32, #tpu.memory_space<vmem>>, vector<1x64x64xf32>
    %11 = vector.shape_cast %10 : vector<1x64x64xf32> to vector<64x64xf32>
    %cst_14 = arith.constant dense<0.000000e+00> : vector<32x64xf32>
    %12 = tpu.matmul %9, %11, %cst_14 {dimension_numbers = #tpu.dot_dimension_numbers<[1], [0], [0], [1], [0, 0, 1, 1], [], []>} : vector<32x64xf32>, vector<64x64xf32>, vector<32x64xf32> -> vector<32x64xf32>
    %13 = arith.addf %6, %12 : vector<32x64xf32>
    %c2 = arith.constant 2 : index
    %c0_15 = arith.constant 0 : index
    %c0_16 = arith.constant 0 : index
    %14 = vector.load %arg2[%c2, %c0_15, %c0_16] : memref<3x32x32xf32, #tpu.memory_space<vmem>>, vector<1x32x32xf32>
    %15 = vector.shape_cast %14 : vector<1x32x32xf32> to vector<32x32xf32>
    %cst_17 = arith.constant dense<0.000000e+00> : vector<32x64xf32>
    %16 = tpu.matmul %15, %0, %cst_17 {dimension_numbers = #tpu.dot_dimension_numbers<[1], [0], [0], [1], [0, 0, 1, 1], [], []>} : vector<32x32xf32>, vector<32x64xf32>, vector<32x64xf32> -> vector<32x64xf32>
    %c2_18 = arith.constant 2 : index
    %c0_19 = arith.constant 0 : index
    %c0_20 = arith.constant 0 : index
    %17 = vector.load %arg3[%c2_18, %c0_19, %c0_20] : memref<3x64x64xf32, #tpu.memory_space<vmem>>, vector<1x64x64xf32>
    %18 = vector.shape_cast %17 : vector<1x64x64xf32> to vector<64x64xf32>
    %cst_21 = arith.constant dense<0.000000e+00> : vector<32x64xf32>
    %19 = tpu.matmul %16, %18, %cst_21 {dimension_numbers = #tpu.dot_dimension_numbers<[1], [0], [0], [1], [0, 0, 1, 1], [], []>} : vector<32x64xf32>, vector<64x64xf32>, vector<32x64xf32> -> vector<32x64xf32>
    %20 = arith.addf %13, %19 : vector<32x64xf32>
    %c0_22 = arith.constant 0 : index
    %c0_23 = arith.constant 0 : index
    %21 = vector.load %arg6[%c0_22, %c0_23] : memref<64x64xf32, #tpu.memory_space<vmem>>, vector<64x64xf32>
    %cst_24 = arith.constant dense<0.000000e+00> : vector<32x64xf32>
    %22 = tpu.matmul %20, %21, %cst_24 {dimension_numbers = #tpu.dot_dimension_numbers<[1], [0], [0], [1], [0, 0, 1, 1], [], []>} : vector<32x64xf32>, vector<64x64xf32>, vector<32x64xf32> -> vector<32x64xf32>
    %23 = arith.mulf %20, %20 : vector<32x64xf32>
    %cst_25 = arith.constant dense<0.000000e+00> : vector<32x64xf32>
    %24 = tpu.matmul %23, %21, %cst_25 {dimension_numbers = #tpu.dot_dimension_numbers<[1], [0], [0], [1], [0, 0, 1, 1], [], []>} : vector<32x64xf32>, vector<64x64xf32>, vector<32x64xf32> -> vector<32x64xf32>
    %cst_26 = arith.constant dense<0.000000e+00> : vector<64xf32>
    %25 = vector.multi_reduction <add>, %22, %cst_26 [0] : vector<32x64xf32> to vector<64xf32>
    %26 = vector.shape_cast %25 : vector<64xf32> to vector<1x64xf32>
    %cst_27 = arith.constant 5.120000e+02 : f32
    %27 = vector.broadcast %cst_27 : f32 to vector<1x64xf32>
    %28 = arith.divf %26, %27 : vector<1x64xf32>
    %cst_28 = arith.constant dense<0.000000e+00> : vector<64xf32>
    %29 = vector.multi_reduction <add>, %24, %cst_28 [0] : vector<32x64xf32> to vector<64xf32>
    %30 = vector.shape_cast %29 : vector<64xf32> to vector<1x64xf32>
    %cst_29 = arith.constant 5.120000e+02 : f32
    %31 = vector.broadcast %cst_29 : f32 to vector<1x64xf32>
    %32 = arith.divf %30, %31 : vector<1x64xf32>
    %33 = arith.mulf %28, %28 : vector<1x64xf32>
    %34 = arith.subf %32, %33 : vector<1x64xf32>
    %cst_30 = arith.constant 0.000000e+00 : f32
    %35 = vector.broadcast %cst_30 : f32 to vector<1x64xf32>
    %36 = arith.maximumf %34, %35 : vector<1x64xf32>
    %cst_31 = arith.constant 9.99999974E-6 : f32
    %37 = vector.broadcast %cst_31 : f32 to vector<1x64xf32>
    %38 = arith.addf %36, %37 : vector<1x64xf32>
    %39 = math.rsqrt %38 : vector<1x64xf32>
    %c0_32 = arith.constant 0 : index
    %c0_33 = arith.constant 0 : index
    %40 = vector.load %arg4[%c0_32, %c0_33] : memref<1x64xf32, #tpu.memory_space<vmem>>, vector<1x64xf32>
    %41 = arith.mulf %40, %39 : vector<1x64xf32>
    %c0_34 = arith.constant 0 : index
    %c0_35 = arith.constant 0 : index
    %42 = vector.load %arg5[%c0_34, %c0_35] : memref<1x64xf32, #tpu.memory_space<vmem>>, vector<1x64xf32>
    %43 = arith.mulf %28, %41 : vector<1x64xf32>
    %44 = arith.subf %42, %43 : vector<1x64xf32>
    %45 = vector.broadcast %41 : vector<1x64xf32> to vector<32x64xf32>
    %46 = arith.mulf %20, %45 : vector<32x64xf32>
    %47 = vector.broadcast %44 : vector<1x64xf32> to vector<32x64xf32>
    %48 = arith.addf %46, %47 : vector<32x64xf32>
    %cst_36 = arith.constant 0.000000e+00 : f32
    %49 = vector.broadcast %cst_36 : f32 to vector<32x64xf32>
    %50 = arith.cmpf ogt, %48, %49 : vector<32x64xf32>
    %cst_37 = arith.constant 0.000000e+00 : f32
    %51 = vector.broadcast %cst_37 : f32 to vector<32x64xf32>
    %52 = arith.minimumf %48, %51 : vector<32x64xf32>
    %53 = math.exp %52 : vector<32x64xf32>
    %cst_38 = arith.constant 1.000000e+00 : f32
    %54 = vector.broadcast %cst_38 : f32 to vector<32x64xf32>
    %55 = arith.subf %53, %54 : vector<32x64xf32>
    %56 = arith.select %50, %48, %55 : vector<32x64xi1>, vector<32x64xf32>
    %c0_39 = arith.constant 0 : index
    %c0_40 = arith.constant 0 : index
    %c0_41 = arith.constant 0 : index
    %57 = vector.load %arg2[%c0_39, %c0_40, %c0_41] : memref<3x32x32xf32, #tpu.memory_space<vmem>>, vector<1x32x32xf32>
    %58 = vector.shape_cast %57 : vector<1x32x32xf32> to vector<32x32xf32>
    %cst_42 = arith.constant dense<0.000000e+00> : vector<32x64xf32>
    %59 = tpu.matmul %58, %56, %cst_42 {dimension_numbers = #tpu.dot_dimension_numbers<[1], [0], [0], [1], [0, 0, 1, 1], [], []>} : vector<32x32xf32>, vector<32x64xf32>, vector<32x64xf32> -> vector<32x64xf32>
    %c0_43 = arith.constant 0 : index
    %c0_44 = arith.constant 0 : index
    %c0_45 = arith.constant 0 : index
    %60 = vector.load %arg7[%c0_43, %c0_44, %c0_45] : memref<3x64x64xf32, #tpu.memory_space<vmem>>, vector<1x64x64xf32>
    %61 = vector.shape_cast %60 : vector<1x64x64xf32> to vector<64x64xf32>
    %cst_46 = arith.constant dense<0.000000e+00> : vector<32x64xf32>
    %62 = tpu.matmul %59, %61, %cst_46 {dimension_numbers = #tpu.dot_dimension_numbers<[1], [0], [0], [1], [0, 0, 1, 1], [], []>} : vector<32x64xf32>, vector<64x64xf32>, vector<32x64xf32> -> vector<32x64xf32>
    %c1_47 = arith.constant 1 : index
    %c0_48 = arith.constant 0 : index
    %c0_49 = arith.constant 0 : index
    %63 = vector.load %arg2[%c1_47, %c0_48, %c0_49] : memref<3x32x32xf32, #tpu.memory_space<vmem>>, vector<1x32x32xf32>
    %64 = vector.shape_cast %63 : vector<1x32x32xf32> to vector<32x32xf32>
    %cst_50 = arith.constant dense<0.000000e+00> : vector<32x64xf32>
    %65 = tpu.matmul %64, %56, %cst_50 {dimension_numbers = #tpu.dot_dimension_numbers<[1], [0], [0], [1], [0, 0, 1, 1], [], []>} : vector<32x32xf32>, vector<32x64xf32>, vector<32x64xf32> -> vector<32x64xf32>
    %c1_51 = arith.constant 1 : index
    %c0_52 = arith.constant 0 : index
    %c0_53 = arith.constant 0 : index
    %66 = vector.load %arg7[%c1_51, %c0_52, %c0_53] : memref<3x64x64xf32, #tpu.memory_space<vmem>>, vector<1x64x64xf32>
    %67 = vector.shape_cast %66 : vector<1x64x64xf32> to vector<64x64xf32>
    %cst_54 = arith.constant dense<0.000000e+00> : vector<32x64xf32>
    %68 = tpu.matmul %65, %67, %cst_54 {dimension_numbers = #tpu.dot_dimension_numbers<[1], [0], [0], [1], [0, 0, 1, 1], [], []>} : vector<32x64xf32>, vector<64x64xf32>, vector<32x64xf32> -> vector<32x64xf32>
    %69 = arith.addf %62, %68 : vector<32x64xf32>
    %c2_55 = arith.constant 2 : index
    %c0_56 = arith.constant 0 : index
    %c0_57 = arith.constant 0 : index
    %70 = vector.load %arg2[%c2_55, %c0_56, %c0_57] : memref<3x32x32xf32, #tpu.memory_space<vmem>>, vector<1x32x32xf32>
    %71 = vector.shape_cast %70 : vector<1x32x32xf32> to vector<32x32xf32>
    %cst_58 = arith.constant dense<0.000000e+00> : vector<32x64xf32>
    %72 = tpu.matmul %71, %56, %cst_58 {dimension_numbers = #tpu.dot_dimension_numbers<[1], [0], [0], [1], [0, 0, 1, 1], [], []>} : vector<32x32xf32>, vector<32x64xf32>, vector<32x64xf32> -> vector<32x64xf32>
    %c2_59 = arith.constant 2 : index
    %c0_60 = arith.constant 0 : index
    %c0_61 = arith.constant 0 : index
    %73 = vector.load %arg7[%c2_59, %c0_60, %c0_61] : memref<3x64x64xf32, #tpu.memory_space<vmem>>, vector<1x64x64xf32>
    %74 = vector.shape_cast %73 : vector<1x64x64xf32> to vector<64x64xf32>
    %cst_62 = arith.constant dense<0.000000e+00> : vector<32x64xf32>
    %75 = tpu.matmul %72, %74, %cst_62 {dimension_numbers = #tpu.dot_dimension_numbers<[1], [0], [0], [1], [0, 0, 1, 1], [], []>} : vector<32x64xf32>, vector<64x64xf32>, vector<32x64xf32> -> vector<32x64xf32>
    %76 = arith.addf %69, %75 : vector<32x64xf32>
    %c0_63 = arith.constant 0 : index
    %c0_64 = arith.constant 0 : index
    %77 = vector.load %arg10[%c0_63, %c0_64] : memref<64x64xf32, #tpu.memory_space<vmem>>, vector<64x64xf32>
    %cst_65 = arith.constant dense<0.000000e+00> : vector<32x64xf32>
    %78 = tpu.matmul %76, %77, %cst_65 {dimension_numbers = #tpu.dot_dimension_numbers<[1], [0], [0], [1], [0, 0, 1, 1], [], []>} : vector<32x64xf32>, vector<64x64xf32>, vector<32x64xf32> -> vector<32x64xf32>
    %79 = arith.mulf %76, %76 : vector<32x64xf32>
    %cst_66 = arith.constant dense<0.000000e+00> : vector<32x64xf32>
    %80 = tpu.matmul %79, %77, %cst_66 {dimension_numbers = #tpu.dot_dimension_numbers<[1], [0], [0], [1], [0, 0, 1, 1], [], []>} : vector<32x64xf32>, vector<64x64xf32>, vector<32x64xf32> -> vector<32x64xf32>
    %cst_67 = arith.constant dense<0.000000e+00> : vector<64xf32>
    %81 = vector.multi_reduction <add>, %78, %cst_67 [0] : vector<32x64xf32> to vector<64xf32>
    %82 = vector.shape_cast %81 : vector<64xf32> to vector<1x64xf32>
    %cst_68 = arith.constant 5.120000e+02 : f32
    %83 = vector.broadcast %cst_68 : f32 to vector<1x64xf32>
    %84 = arith.divf %82, %83 : vector<1x64xf32>
    %cst_69 = arith.constant dense<0.000000e+00> : vector<64xf32>
    %85 = vector.multi_reduction <add>, %80, %cst_69 [0] : vector<32x64xf32> to vector<64xf32>
    %86 = vector.shape_cast %85 : vector<64xf32> to vector<1x64xf32>
    %cst_70 = arith.constant 5.120000e+02 : f32
    %87 = vector.broadcast %cst_70 : f32 to vector<1x64xf32>
    %88 = arith.divf %86, %87 : vector<1x64xf32>
    %89 = arith.mulf %84, %84 : vector<1x64xf32>
    %90 = arith.subf %88, %89 : vector<1x64xf32>
    %cst_71 = arith.constant 0.000000e+00 : f32
    %91 = vector.broadcast %cst_71 : f32 to vector<1x64xf32>
    %92 = arith.maximumf %90, %91 : vector<1x64xf32>
    %cst_72 = arith.constant 9.99999974E-6 : f32
    %93 = vector.broadcast %cst_72 : f32 to vector<1x64xf32>
    %94 = arith.addf %92, %93 : vector<1x64xf32>
    %95 = math.rsqrt %94 : vector<1x64xf32>
    %c0_73 = arith.constant 0 : index
    %c0_74 = arith.constant 0 : index
    %96 = vector.load %arg8[%c0_73, %c0_74] : memref<1x64xf32, #tpu.memory_space<vmem>>, vector<1x64xf32>
    %97 = arith.mulf %96, %95 : vector<1x64xf32>
    %c0_75 = arith.constant 0 : index
    %c0_76 = arith.constant 0 : index
    %98 = vector.load %arg9[%c0_75, %c0_76] : memref<1x64xf32, #tpu.memory_space<vmem>>, vector<1x64xf32>
    %99 = arith.mulf %84, %97 : vector<1x64xf32>
    %100 = arith.subf %98, %99 : vector<1x64xf32>
    %101 = vector.broadcast %97 : vector<1x64xf32> to vector<32x64xf32>
    %102 = arith.mulf %76, %101 : vector<32x64xf32>
    %103 = vector.broadcast %100 : vector<1x64xf32> to vector<32x64xf32>
    %104 = arith.addf %102, %103 : vector<32x64xf32>
    %cst_77 = arith.constant 0.000000e+00 : f32
    %105 = vector.broadcast %cst_77 : f32 to vector<32x64xf32>
    %106 = arith.cmpf ogt, %104, %105 : vector<32x64xf32>
    %cst_78 = arith.constant 0.000000e+00 : f32
    %107 = vector.broadcast %cst_78 : f32 to vector<32x64xf32>
    %108 = arith.minimumf %104, %107 : vector<32x64xf32>
    %109 = math.exp %108 : vector<32x64xf32>
    %cst_79 = arith.constant 1.000000e+00 : f32
    %110 = vector.broadcast %cst_79 : f32 to vector<32x64xf32>
    %111 = arith.subf %109, %110 : vector<32x64xf32>
    %112 = arith.select %106, %104, %111 : vector<32x64xi1>, vector<32x64xf32>
    %c0_80 = arith.constant 0 : index
    %c0_81 = arith.constant 0 : index
    %c0_82 = arith.constant 0 : index
    %113 = vector.load %arg2[%c0_80, %c0_81, %c0_82] : memref<3x32x32xf32, #tpu.memory_space<vmem>>, vector<1x32x32xf32>
    %114 = vector.shape_cast %113 : vector<1x32x32xf32> to vector<32x32xf32>
    %cst_83 = arith.constant dense<0.000000e+00> : vector<32x64xf32>
    %115 = tpu.matmul %114, %112, %cst_83 {dimension_numbers = #tpu.dot_dimension_numbers<[1], [0], [0], [1], [0, 0, 1, 1], [], []>} : vector<32x32xf32>, vector<32x64xf32>, vector<32x64xf32> -> vector<32x64xf32>
    %c0_84 = arith.constant 0 : index
    %c0_85 = arith.constant 0 : index
    %c0_86 = arith.constant 0 : index
    %116 = vector.load %arg11[%c0_84, %c0_85, %c0_86] : memref<3x64x128xf32, #tpu.memory_space<vmem>>, vector<1x64x128xf32>
    %117 = vector.shape_cast %116 : vector<1x64x128xf32> to vector<64x128xf32>
    %cst_87 = arith.constant dense<0.000000e+00> : vector<32x128xf32>
    %118 = tpu.matmul %115, %117, %cst_87 {dimension_numbers = #tpu.dot_dimension_numbers<[1], [0], [0], [1], [0, 0, 1, 1], [], []>} : vector<32x64xf32>, vector<64x128xf32>, vector<32x128xf32> -> vector<32x128xf32>
    %c1_88 = arith.constant 1 : index
    %c0_89 = arith.constant 0 : index
    %c0_90 = arith.constant 0 : index
    %119 = vector.load %arg2[%c1_88, %c0_89, %c0_90] : memref<3x32x32xf32, #tpu.memory_space<vmem>>, vector<1x32x32xf32>
    %120 = vector.shape_cast %119 : vector<1x32x32xf32> to vector<32x32xf32>
    %cst_91 = arith.constant dense<0.000000e+00> : vector<32x64xf32>
    %121 = tpu.matmul %120, %112, %cst_91 {dimension_numbers = #tpu.dot_dimension_numbers<[1], [0], [0], [1], [0, 0, 1, 1], [], []>} : vector<32x32xf32>, vector<32x64xf32>, vector<32x64xf32> -> vector<32x64xf32>
    %c1_92 = arith.constant 1 : index
    %c0_93 = arith.constant 0 : index
    %c0_94 = arith.constant 0 : index
    %122 = vector.load %arg11[%c1_92, %c0_93, %c0_94] : memref<3x64x128xf32, #tpu.memory_space<vmem>>, vector<1x64x128xf32>
    %123 = vector.shape_cast %122 : vector<1x64x128xf32> to vector<64x128xf32>
    %cst_95 = arith.constant dense<0.000000e+00> : vector<32x128xf32>
    %124 = tpu.matmul %121, %123, %cst_95 {dimension_numbers = #tpu.dot_dimension_numbers<[1], [0], [0], [1], [0, 0, 1, 1], [], []>} : vector<32x64xf32>, vector<64x128xf32>, vector<32x128xf32> -> vector<32x128xf32>
    %125 = arith.addf %118, %124 : vector<32x128xf32>
    %c2_96 = arith.constant 2 : index
    %c0_97 = arith.constant 0 : index
    %c0_98 = arith.constant 0 : index
    %126 = vector.load %arg2[%c2_96, %c0_97, %c0_98] : memref<3x32x32xf32, #tpu.memory_space<vmem>>, vector<1x32x32xf32>
    %127 = vector.shape_cast %126 : vector<1x32x32xf32> to vector<32x32xf32>
    %cst_99 = arith.constant dense<0.000000e+00> : vector<32x64xf32>
    %128 = tpu.matmul %127, %112, %cst_99 {dimension_numbers = #tpu.dot_dimension_numbers<[1], [0], [0], [1], [0, 0, 1, 1], [], []>} : vector<32x32xf32>, vector<32x64xf32>, vector<32x64xf32> -> vector<32x64xf32>
    %c2_100 = arith.constant 2 : index
    %c0_101 = arith.constant 0 : index
    %c0_102 = arith.constant 0 : index
    %129 = vector.load %arg11[%c2_100, %c0_101, %c0_102] : memref<3x64x128xf32, #tpu.memory_space<vmem>>, vector<1x64x128xf32>
    %130 = vector.shape_cast %129 : vector<1x64x128xf32> to vector<64x128xf32>
    %cst_103 = arith.constant dense<0.000000e+00> : vector<32x128xf32>
    %131 = tpu.matmul %128, %130, %cst_103 {dimension_numbers = #tpu.dot_dimension_numbers<[1], [0], [0], [1], [0, 0, 1, 1], [], []>} : vector<32x64xf32>, vector<64x128xf32>, vector<32x128xf32> -> vector<32x128xf32>
    %132 = arith.addf %125, %131 : vector<32x128xf32>
    %c0_104 = arith.constant 0 : index
    %c0_105 = arith.constant 0 : index
    %133 = vector.load %arg14[%c0_104, %c0_105] : memref<128x128xf32, #tpu.memory_space<vmem>>, vector<128x128xf32>
    %cst_106 = arith.constant dense<0.000000e+00> : vector<32x128xf32>
    %134 = tpu.matmul %132, %133, %cst_106 {dimension_numbers = #tpu.dot_dimension_numbers<[1], [0], [0], [1], [0, 0, 1, 1], [], []>} : vector<32x128xf32>, vector<128x128xf32>, vector<32x128xf32> -> vector<32x128xf32>
    %135 = arith.mulf %132, %132 : vector<32x128xf32>
    %cst_107 = arith.constant dense<0.000000e+00> : vector<32x128xf32>
    %136 = tpu.matmul %135, %133, %cst_107 {dimension_numbers = #tpu.dot_dimension_numbers<[1], [0], [0], [1], [0, 0, 1, 1], [], []>} : vector<32x128xf32>, vector<128x128xf32>, vector<32x128xf32> -> vector<32x128xf32>
    %cst_108 = arith.constant dense<0.000000e+00> : vector<128xf32>
    %137 = vector.multi_reduction <add>, %134, %cst_108 [0] : vector<32x128xf32> to vector<128xf32>
    %138 = vector.shape_cast %137 : vector<128xf32> to vector<1x128xf32>
    %cst_109 = arith.constant 5.120000e+02 : f32
    %139 = vector.broadcast %cst_109 : f32 to vector<1x128xf32>
    %140 = arith.divf %138, %139 : vector<1x128xf32>
    %cst_110 = arith.constant dense<0.000000e+00> : vector<128xf32>
    %141 = vector.multi_reduction <add>, %136, %cst_110 [0] : vector<32x128xf32> to vector<128xf32>
    %142 = vector.shape_cast %141 : vector<128xf32> to vector<1x128xf32>
    %cst_111 = arith.constant 5.120000e+02 : f32
    %143 = vector.broadcast %cst_111 : f32 to vector<1x128xf32>
    %144 = arith.divf %142, %143 : vector<1x128xf32>
    %145 = arith.mulf %140, %140 : vector<1x128xf32>
    %146 = arith.subf %144, %145 : vector<1x128xf32>
    %cst_112 = arith.constant 0.000000e+00 : f32
    %147 = vector.broadcast %cst_112 : f32 to vector<1x128xf32>
    %148 = arith.maximumf %146, %147 : vector<1x128xf32>
    %cst_113 = arith.constant 9.99999974E-6 : f32
    %149 = vector.broadcast %cst_113 : f32 to vector<1x128xf32>
    %150 = arith.addf %148, %149 : vector<1x128xf32>
    %151 = math.rsqrt %150 : vector<1x128xf32>
    %c0_114 = arith.constant 0 : index
    %c0_115 = arith.constant 0 : index
    %152 = vector.load %arg12[%c0_114, %c0_115] : memref<1x128xf32, #tpu.memory_space<vmem>>, vector<1x128xf32>
    %153 = arith.mulf %152, %151 : vector<1x128xf32>
    %c0_116 = arith.constant 0 : index
    %c0_117 = arith.constant 0 : index
    %154 = vector.load %arg13[%c0_116, %c0_117] : memref<1x128xf32, #tpu.memory_space<vmem>>, vector<1x128xf32>
    %155 = arith.mulf %140, %153 : vector<1x128xf32>
    %156 = arith.subf %154, %155 : vector<1x128xf32>
    %157 = vector.broadcast %153 : vector<1x128xf32> to vector<32x128xf32>
    %158 = arith.mulf %132, %157 : vector<32x128xf32>
    %159 = vector.broadcast %156 : vector<1x128xf32> to vector<32x128xf32>
    %160 = arith.addf %158, %159 : vector<32x128xf32>
    %cst_118 = arith.constant 0.000000e+00 : f32
    %161 = vector.broadcast %cst_118 : f32 to vector<32x128xf32>
    %162 = arith.cmpf ogt, %160, %161 : vector<32x128xf32>
    %cst_119 = arith.constant 0.000000e+00 : f32
    %163 = vector.broadcast %cst_119 : f32 to vector<32x128xf32>
    %164 = arith.minimumf %160, %163 : vector<32x128xf32>
    %165 = math.exp %164 : vector<32x128xf32>
    %cst_120 = arith.constant 1.000000e+00 : f32
    %166 = vector.broadcast %cst_120 : f32 to vector<32x128xf32>
    %167 = arith.subf %165, %166 : vector<32x128xf32>
    %168 = arith.select %162, %160, %167 : vector<32x128xi1>, vector<32x128xf32>
    %c0_121 = arith.constant 0 : index
    %c0_122 = arith.constant 0 : index
    %c0_123 = arith.constant 0 : index
    %169 = vector.load %arg2[%c0_121, %c0_122, %c0_123] : memref<3x32x32xf32, #tpu.memory_space<vmem>>, vector<1x32x32xf32>
    %170 = vector.shape_cast %169 : vector<1x32x32xf32> to vector<32x32xf32>
    %cst_124 = arith.constant dense<0.000000e+00> : vector<32x128xf32>
    %171 = tpu.matmul %170, %168, %cst_124 {dimension_numbers = #tpu.dot_dimension_numbers<[1], [0], [0], [1], [0, 0, 1, 1], [], []>} : vector<32x32xf32>, vector<32x128xf32>, vector<32x128xf32> -> vector<32x128xf32>
    %c0_125 = arith.constant 0 : index
    %c0_126 = arith.constant 0 : index
    %c0_127 = arith.constant 0 : index
    %172 = vector.load %arg15[%c0_125, %c0_126, %c0_127] : memref<3x128x128xf32, #tpu.memory_space<vmem>>, vector<1x128x128xf32>
    %173 = vector.shape_cast %172 : vector<1x128x128xf32> to vector<128x128xf32>
    %cst_128 = arith.constant dense<0.000000e+00> : vector<32x128xf32>
    %174 = tpu.matmul %171, %173, %cst_128 {dimension_numbers = #tpu.dot_dimension_numbers<[1], [0], [0], [1], [0, 0, 1, 1], [], []>} : vector<32x128xf32>, vector<128x128xf32>, vector<32x128xf32> -> vector<32x128xf32>
    %c1_129 = arith.constant 1 : index
    %c0_130 = arith.constant 0 : index
    %c0_131 = arith.constant 0 : index
    %175 = vector.load %arg2[%c1_129, %c0_130, %c0_131] : memref<3x32x32xf32, #tpu.memory_space<vmem>>, vector<1x32x32xf32>
    %176 = vector.shape_cast %175 : vector<1x32x32xf32> to vector<32x32xf32>
    %cst_132 = arith.constant dense<0.000000e+00> : vector<32x128xf32>
    %177 = tpu.matmul %176, %168, %cst_132 {dimension_numbers = #tpu.dot_dimension_numbers<[1], [0], [0], [1], [0, 0, 1, 1], [], []>} : vector<32x32xf32>, vector<32x128xf32>, vector<32x128xf32> -> vector<32x128xf32>
    %c1_133 = arith.constant 1 : index
    %c0_134 = arith.constant 0 : index
    %c0_135 = arith.constant 0 : index
    %178 = vector.load %arg15[%c1_133, %c0_134, %c0_135] : memref<3x128x128xf32, #tpu.memory_space<vmem>>, vector<1x128x128xf32>
    %179 = vector.shape_cast %178 : vector<1x128x128xf32> to vector<128x128xf32>
    %cst_136 = arith.constant dense<0.000000e+00> : vector<32x128xf32>
    %180 = tpu.matmul %177, %179, %cst_136 {dimension_numbers = #tpu.dot_dimension_numbers<[1], [0], [0], [1], [0, 0, 1, 1], [], []>} : vector<32x128xf32>, vector<128x128xf32>, vector<32x128xf32> -> vector<32x128xf32>
    %181 = arith.addf %174, %180 : vector<32x128xf32>
    %c2_137 = arith.constant 2 : index
    %c0_138 = arith.constant 0 : index
    %c0_139 = arith.constant 0 : index
    %182 = vector.load %arg2[%c2_137, %c0_138, %c0_139] : memref<3x32x32xf32, #tpu.memory_space<vmem>>, vector<1x32x32xf32>
    %183 = vector.shape_cast %182 : vector<1x32x32xf32> to vector<32x32xf32>
    %cst_140 = arith.constant dense<0.000000e+00> : vector<32x128xf32>
    %184 = tpu.matmul %183, %168, %cst_140 {dimension_numbers = #tpu.dot_dimension_numbers<[1], [0], [0], [1], [0, 0, 1, 1], [], []>} : vector<32x32xf32>, vector<32x128xf32>, vector<32x128xf32> -> vector<32x128xf32>
    %c2_141 = arith.constant 2 : index
    %c0_142 = arith.constant 0 : index
    %c0_143 = arith.constant 0 : index
    %185 = vector.load %arg15[%c2_141, %c0_142, %c0_143] : memref<3x128x128xf32, #tpu.memory_space<vmem>>, vector<1x128x128xf32>
    %186 = vector.shape_cast %185 : vector<1x128x128xf32> to vector<128x128xf32>
    %cst_144 = arith.constant dense<0.000000e+00> : vector<32x128xf32>
    %187 = tpu.matmul %184, %186, %cst_144 {dimension_numbers = #tpu.dot_dimension_numbers<[1], [0], [0], [1], [0, 0, 1, 1], [], []>} : vector<32x128xf32>, vector<128x128xf32>, vector<32x128xf32> -> vector<32x128xf32>
    %188 = arith.addf %181, %187 : vector<32x128xf32>
    %c0_145 = arith.constant 0 : index
    %c0_146 = arith.constant 0 : index
    %189 = vector.load %arg18[%c0_145, %c0_146] : memref<128x128xf32, #tpu.memory_space<vmem>>, vector<128x128xf32>
    %cst_147 = arith.constant dense<0.000000e+00> : vector<32x128xf32>
    %190 = tpu.matmul %188, %189, %cst_147 {dimension_numbers = #tpu.dot_dimension_numbers<[1], [0], [0], [1], [0, 0, 1, 1], [], []>} : vector<32x128xf32>, vector<128x128xf32>, vector<32x128xf32> -> vector<32x128xf32>
    %191 = arith.mulf %188, %188 : vector<32x128xf32>
    %cst_148 = arith.constant dense<0.000000e+00> : vector<32x128xf32>
    %192 = tpu.matmul %191, %189, %cst_148 {dimension_numbers = #tpu.dot_dimension_numbers<[1], [0], [0], [1], [0, 0, 1, 1], [], []>} : vector<32x128xf32>, vector<128x128xf32>, vector<32x128xf32> -> vector<32x128xf32>
    %cst_149 = arith.constant dense<0.000000e+00> : vector<128xf32>
    %193 = vector.multi_reduction <add>, %190, %cst_149 [0] : vector<32x128xf32> to vector<128xf32>
    %194 = vector.shape_cast %193 : vector<128xf32> to vector<1x128xf32>
    %cst_150 = arith.constant 5.120000e+02 : f32
    %195 = vector.broadcast %cst_150 : f32 to vector<1x128xf32>
    %196 = arith.divf %194, %195 : vector<1x128xf32>
    %cst_151 = arith.constant dense<0.000000e+00> : vector<128xf32>
    %197 = vector.multi_reduction <add>, %192, %cst_151 [0] : vector<32x128xf32> to vector<128xf32>
    %198 = vector.shape_cast %197 : vector<128xf32> to vector<1x128xf32>
    %cst_152 = arith.constant 5.120000e+02 : f32
    %199 = vector.broadcast %cst_152 : f32 to vector<1x128xf32>
    %200 = arith.divf %198, %199 : vector<1x128xf32>
    %201 = arith.mulf %196, %196 : vector<1x128xf32>
    %202 = arith.subf %200, %201 : vector<1x128xf32>
    %cst_153 = arith.constant 0.000000e+00 : f32
    %203 = vector.broadcast %cst_153 : f32 to vector<1x128xf32>
    %204 = arith.maximumf %202, %203 : vector<1x128xf32>
    %cst_154 = arith.constant 9.99999974E-6 : f32
    %205 = vector.broadcast %cst_154 : f32 to vector<1x128xf32>
    %206 = arith.addf %204, %205 : vector<1x128xf32>
    %207 = math.rsqrt %206 : vector<1x128xf32>
    %c0_155 = arith.constant 0 : index
    %c0_156 = arith.constant 0 : index
    %208 = vector.load %arg16[%c0_155, %c0_156] : memref<1x128xf32, #tpu.memory_space<vmem>>, vector<1x128xf32>
    %209 = arith.mulf %208, %207 : vector<1x128xf32>
    %c0_157 = arith.constant 0 : index
    %c0_158 = arith.constant 0 : index
    %210 = vector.load %arg17[%c0_157, %c0_158] : memref<1x128xf32, #tpu.memory_space<vmem>>, vector<1x128xf32>
    %211 = arith.mulf %196, %209 : vector<1x128xf32>
    %212 = arith.subf %210, %211 : vector<1x128xf32>
    %213 = vector.broadcast %209 : vector<1x128xf32> to vector<32x128xf32>
    %214 = arith.mulf %188, %213 : vector<32x128xf32>
    %215 = vector.broadcast %212 : vector<1x128xf32> to vector<32x128xf32>
    %216 = arith.addf %214, %215 : vector<32x128xf32>
    %cst_159 = arith.constant 0.000000e+00 : f32
    %217 = vector.broadcast %cst_159 : f32 to vector<32x128xf32>
    %218 = arith.cmpf ogt, %216, %217 : vector<32x128xf32>
    %cst_160 = arith.constant 0.000000e+00 : f32
    %219 = vector.broadcast %cst_160 : f32 to vector<32x128xf32>
    %220 = arith.minimumf %216, %219 : vector<32x128xf32>
    %221 = math.exp %220 : vector<32x128xf32>
    %cst_161 = arith.constant 1.000000e+00 : f32
    %222 = vector.broadcast %cst_161 : f32 to vector<32x128xf32>
    %223 = arith.subf %221, %222 : vector<32x128xf32>
    %224 = arith.select %218, %216, %223 : vector<32x128xi1>, vector<32x128xf32>
    %c0_162 = arith.constant 0 : index
    %c0_163 = arith.constant 0 : index
    %c0_164 = arith.constant 0 : index
    %225 = vector.load %arg2[%c0_162, %c0_163, %c0_164] : memref<3x32x32xf32, #tpu.memory_space<vmem>>, vector<1x32x32xf32>
    %226 = vector.shape_cast %225 : vector<1x32x32xf32> to vector<32x32xf32>
    %cst_165 = arith.constant dense<0.000000e+00> : vector<32x128xf32>
    %227 = tpu.matmul %226, %224, %cst_165 {dimension_numbers = #tpu.dot_dimension_numbers<[1], [0], [0], [1], [0, 0, 1, 1], [], []>} : vector<32x32xf32>, vector<32x128xf32>, vector<32x128xf32> -> vector<32x128xf32>
    %c0_166 = arith.constant 0 : index
    %c0_167 = arith.constant 0 : index
    %c0_168 = arith.constant 0 : index
    %228 = vector.load %arg19[%c0_166, %c0_167, %c0_168] : memref<3x128x128xf32, #tpu.memory_space<vmem>>, vector<1x128x128xf32>
    %229 = vector.shape_cast %228 : vector<1x128x128xf32> to vector<128x128xf32>
    %cst_169 = arith.constant dense<0.000000e+00> : vector<32x128xf32>
    %230 = tpu.matmul %227, %229, %cst_169 {dimension_numbers = #tpu.dot_dimension_numbers<[1], [0], [0], [1], [0, 0, 1, 1], [], []>} : vector<32x128xf32>, vector<128x128xf32>, vector<32x128xf32> -> vector<32x128xf32>
    %c1_170 = arith.constant 1 : index
    %c0_171 = arith.constant 0 : index
    %c0_172 = arith.constant 0 : index
    %231 = vector.load %arg2[%c1_170, %c0_171, %c0_172] : memref<3x32x32xf32, #tpu.memory_space<vmem>>, vector<1x32x32xf32>
    %232 = vector.shape_cast %231 : vector<1x32x32xf32> to vector<32x32xf32>
    %cst_173 = arith.constant dense<0.000000e+00> : vector<32x128xf32>
    %233 = tpu.matmul %232, %224, %cst_173 {dimension_numbers = #tpu.dot_dimension_numbers<[1], [0], [0], [1], [0, 0, 1, 1], [], []>} : vector<32x32xf32>, vector<32x128xf32>, vector<32x128xf32> -> vector<32x128xf32>
    %c1_174 = arith.constant 1 : index
    %c0_175 = arith.constant 0 : index
    %c0_176 = arith.constant 0 : index
    %234 = vector.load %arg19[%c1_174, %c0_175, %c0_176] : memref<3x128x128xf32, #tpu.memory_space<vmem>>, vector<1x128x128xf32>
    %235 = vector.shape_cast %234 : vector<1x128x128xf32> to vector<128x128xf32>
    %cst_177 = arith.constant dense<0.000000e+00> : vector<32x128xf32>
    %236 = tpu.matmul %233, %235, %cst_177 {dimension_numbers = #tpu.dot_dimension_numbers<[1], [0], [0], [1], [0, 0, 1, 1], [], []>} : vector<32x128xf32>, vector<128x128xf32>, vector<32x128xf32> -> vector<32x128xf32>
    %237 = arith.addf %230, %236 : vector<32x128xf32>
    %c2_178 = arith.constant 2 : index
    %c0_179 = arith.constant 0 : index
    %c0_180 = arith.constant 0 : index
    %238 = vector.load %arg2[%c2_178, %c0_179, %c0_180] : memref<3x32x32xf32, #tpu.memory_space<vmem>>, vector<1x32x32xf32>
    %239 = vector.shape_cast %238 : vector<1x32x32xf32> to vector<32x32xf32>
    %cst_181 = arith.constant dense<0.000000e+00> : vector<32x128xf32>
    %240 = tpu.matmul %239, %224, %cst_181 {dimension_numbers = #tpu.dot_dimension_numbers<[1], [0], [0], [1], [0, 0, 1, 1], [], []>} : vector<32x32xf32>, vector<32x128xf32>, vector<32x128xf32> -> vector<32x128xf32>
    %c2_182 = arith.constant 2 : index
    %c0_183 = arith.constant 0 : index
    %c0_184 = arith.constant 0 : index
    %241 = vector.load %arg19[%c2_182, %c0_183, %c0_184] : memref<3x128x128xf32, #tpu.memory_space<vmem>>, vector<1x128x128xf32>
    %242 = vector.shape_cast %241 : vector<1x128x128xf32> to vector<128x128xf32>
    %cst_185 = arith.constant dense<0.000000e+00> : vector<32x128xf32>
    %243 = tpu.matmul %240, %242, %cst_185 {dimension_numbers = #tpu.dot_dimension_numbers<[1], [0], [0], [1], [0, 0, 1, 1], [], []>} : vector<32x128xf32>, vector<128x128xf32>, vector<32x128xf32> -> vector<32x128xf32>
    %244 = arith.addf %237, %243 : vector<32x128xf32>
    %c0_186 = arith.constant 0 : index
    %c0_187 = arith.constant 0 : index
    %245 = vector.load %arg22[%c0_186, %c0_187] : memref<128x128xf32, #tpu.memory_space<vmem>>, vector<128x128xf32>
    %cst_188 = arith.constant dense<0.000000e+00> : vector<32x128xf32>
    %246 = tpu.matmul %244, %245, %cst_188 {dimension_numbers = #tpu.dot_dimension_numbers<[1], [0], [0], [1], [0, 0, 1, 1], [], []>} : vector<32x128xf32>, vector<128x128xf32>, vector<32x128xf32> -> vector<32x128xf32>
    %247 = arith.mulf %244, %244 : vector<32x128xf32>
    %cst_189 = arith.constant dense<0.000000e+00> : vector<32x128xf32>
    %248 = tpu.matmul %247, %245, %cst_189 {dimension_numbers = #tpu.dot_dimension_numbers<[1], [0], [0], [1], [0, 0, 1, 1], [], []>} : vector<32x128xf32>, vector<128x128xf32>, vector<32x128xf32> -> vector<32x128xf32>
    %cst_190 = arith.constant dense<0.000000e+00> : vector<128xf32>
    %249 = vector.multi_reduction <add>, %246, %cst_190 [0] : vector<32x128xf32> to vector<128xf32>
    %250 = vector.shape_cast %249 : vector<128xf32> to vector<1x128xf32>
    %cst_191 = arith.constant 5.120000e+02 : f32
    %251 = vector.broadcast %cst_191 : f32 to vector<1x128xf32>
    %252 = arith.divf %250, %251 : vector<1x128xf32>
    %cst_192 = arith.constant dense<0.000000e+00> : vector<128xf32>
    %253 = vector.multi_reduction <add>, %248, %cst_192 [0] : vector<32x128xf32> to vector<128xf32>
    %254 = vector.shape_cast %253 : vector<128xf32> to vector<1x128xf32>
    %cst_193 = arith.constant 5.120000e+02 : f32
    %255 = vector.broadcast %cst_193 : f32 to vector<1x128xf32>
    %256 = arith.divf %254, %255 : vector<1x128xf32>
    %257 = arith.mulf %252, %252 : vector<1x128xf32>
    %258 = arith.subf %256, %257 : vector<1x128xf32>
    %cst_194 = arith.constant 0.000000e+00 : f32
    %259 = vector.broadcast %cst_194 : f32 to vector<1x128xf32>
    %260 = arith.maximumf %258, %259 : vector<1x128xf32>
    %cst_195 = arith.constant 9.99999974E-6 : f32
    %261 = vector.broadcast %cst_195 : f32 to vector<1x128xf32>
    %262 = arith.addf %260, %261 : vector<1x128xf32>
    %263 = math.rsqrt %262 : vector<1x128xf32>
    %c0_196 = arith.constant 0 : index
    %c0_197 = arith.constant 0 : index
    %264 = vector.load %arg20[%c0_196, %c0_197] : memref<1x128xf32, #tpu.memory_space<vmem>>, vector<1x128xf32>
    %265 = arith.mulf %264, %263 : vector<1x128xf32>
    %c0_198 = arith.constant 0 : index
    %c0_199 = arith.constant 0 : index
    %266 = vector.load %arg21[%c0_198, %c0_199] : memref<1x128xf32, #tpu.memory_space<vmem>>, vector<1x128xf32>
    %267 = arith.mulf %252, %265 : vector<1x128xf32>
    %268 = arith.subf %266, %267 : vector<1x128xf32>
    %269 = vector.broadcast %265 : vector<1x128xf32> to vector<32x128xf32>
    %270 = arith.mulf %244, %269 : vector<32x128xf32>
    %271 = vector.broadcast %268 : vector<1x128xf32> to vector<32x128xf32>
    %272 = arith.addf %270, %271 : vector<32x128xf32>
    %cst_200 = arith.constant 0.000000e+00 : f32
    %273 = vector.broadcast %cst_200 : f32 to vector<32x128xf32>
    %274 = arith.cmpf ogt, %272, %273 : vector<32x128xf32>
    %cst_201 = arith.constant 0.000000e+00 : f32
    %275 = vector.broadcast %cst_201 : f32 to vector<32x128xf32>
    %276 = arith.minimumf %272, %275 : vector<32x128xf32>
    %277 = math.exp %276 : vector<32x128xf32>
    %cst_202 = arith.constant 1.000000e+00 : f32
    %278 = vector.broadcast %cst_202 : f32 to vector<32x128xf32>
    %279 = arith.subf %277, %278 : vector<32x128xf32>
    %280 = arith.select %274, %272, %279 : vector<32x128xi1>, vector<32x128xf32>
    %c0_203 = arith.constant 0 : index
    %c0_204 = arith.constant 0 : index
    %281 = vector.load %arg23[%c0_203, %c0_204] : memref<32x128xf32, #tpu.memory_space<vmem>>, vector<32x128xf32>
    tpu.vector_store %arg23[%c0_203, %c0_204], %280 {strides = array<i32>} : memref<32x128xf32, #tpu.memory_space<vmem>>, vector<32x128xf32>,
    return
  }
  func.func @transform_0(%arg0: i32) -> (i32, i32) {
    %c0_i32 = arith.constant 0 : i32
    %c0_i32_0 = arith.constant 0 : i32
    %c0_i32_1 = arith.constant 0 : i32
    return %c0_i32, %c0_i32_0 : i32, i32
  }
  func.func @transform_1(%arg0: i32) -> (i32, i32, i32) {
    %c0_i32 = arith.constant 0 : i32
    %c0_i32_0 = arith.constant 0 : i32
    %c0_i32_1 = arith.constant 0 : i32
    %c0_i32_2 = arith.constant 0 : i32
    return %c0_i32, %c0_i32_0, %c0_i32_1 : i32, i32, i32
  }
  func.func @transform_2(%arg0: i32) -> (i32, i32, i32) {
    %c0_i32 = arith.constant 0 : i32
    %c0_i32_0 = arith.constant 0 : i32
    %c0_i32_1 = arith.constant 0 : i32
    %c0_i32_2 = arith.constant 0 : i32
    return %c0_i32, %c0_i32_0, %c0_i32_1 : i32, i32, i32
  }
  func.func @transform_3(%arg0: i32) -> (i32, i32) {
    %c0_i32 = arith.constant 0 : i32
    %c0_i32_0 = arith.constant 0 : i32
    %c0_i32_1 = arith.constant 0 : i32
    return %c0_i32, %c0_i32_0 : i32, i32
  }
  func.func @transform_4(%arg0: i32) -> (i32, i32) {
    %c0_i32 = arith.constant 0 : i32
    %c0_i32_0 = arith.constant 0 : i32
    %c0_i32_1 = arith.constant 0 : i32
    return %c0_i32, %c0_i32_0 : i32, i32
  }
  func.func @transform_5(%arg0: i32) -> (i32, i32) {
    %c0_i32 = arith.constant 0 : i32
    %c0_i32_0 = arith.constant 0 : i32
    %c0_i32_1 = arith.constant 0 : i32
    return %c0_i32, %c0_i32_0 : i32, i32
  }
  func.func @transform_6(%arg0: i32) -> (i32, i32, i32) {
    %c0_i32 = arith.constant 0 : i32
    %c0_i32_0 = arith.constant 0 : i32
    %c0_i32_1 = arith.constant 0 : i32
    %c0_i32_2 = arith.constant 0 : i32
    return %c0_i32, %c0_i32_0, %c0_i32_1 : i32, i32, i32
  }
  func.func @transform_7(%arg0: i32) -> (i32, i32) {
    %c0_i32 = arith.constant 0 : i32
    %c0_i32_0 = arith.constant 0 : i32
    %c0_i32_1 = arith.constant 0 : i32
    return %c0_i32, %c0_i32_0 : i32, i32
  }
  func.func @transform_8(%arg0: i32) -> (i32, i32) {
    %c0_i32 = arith.constant 0 : i32
    %c0_i32_0 = arith.constant 0 : i32
    %c0_i32_1 = arith.constant 0 : i32
    return %c0_i32, %c0_i32_0 : i32, i32
  }
  func.func @transform_9(%arg0: i32) -> (i32, i32) {
    %c0_i32 = arith.constant 0 : i32
    %c0_i32_0 = arith.constant 0 : i32
    %c0_i32_1 = arith.constant 0 : i32
    return %c0_i32, %c0_i32_0 : i32, i32
  }
  func.func @transform_10(%arg0: i32) -> (i32, i32, i32) {
    %c0_i32 = arith.constant 0 : i32
    %c0_i32_0 = arith.constant 0 : i32
    %c0_i32_1 = arith.constant 0 : i32
    %c0_i32_2 = arith.constant 0 : i32
    return %c0_i32, %c0_i32_0, %c0_i32_1 : i32, i32, i32
  }
  func.func @transform_11(%arg0: i32) -> (i32, i32) {
    %c0_i32 = arith.constant 0 : i32
    %c0_i32_0 = arith.constant 0 : i32
    %c0_i32_1 = arith.constant 0 : i32
    return %c0_i32, %c0_i32_0 : i32, i32
  }
  func.func @transform_12(%arg0: i32) -> (i32, i32) {
    %c0_i32 = arith.constant 0 : i32
    %c0_i32_0 = arith.constant 0 : i32
    %c0_i32_1 = arith.constant 0 : i32
    return %c0_i32, %c0_i32_0 : i32, i32
  }
  func.func @transform_13(%arg0: i32) -> (i32, i32) {
    %c0_i32 = arith.constant 0 : i32
    %c0_i32_0 = arith.constant 0 : i32
    %c0_i32_1 = arith.constant 0 : i32
    return %c0_i32, %c0_i32_0 : i32, i32
  }
  func.func @transform_14(%arg0: i32) -> (i32, i32, i32) {
    %c0_i32 = arith.constant 0 : i32
    %c0_i32_0 = arith.constant 0 : i32
    %c0_i32_1 = arith.constant 0 : i32
    %c0_i32_2 = arith.constant 0 : i32
    return %c0_i32, %c0_i32_0, %c0_i32_1 : i32, i32, i32
  }
  func.func @transform_15(%arg0: i32) -> (i32, i32) {
    %c0_i32 = arith.constant 0 : i32
    %c0_i32_0 = arith.constant 0 : i32
    %c0_i32_1 = arith.constant 0 : i32
    return %c0_i32, %c0_i32_0 : i32, i32
  }
  func.func @transform_16(%arg0: i32) -> (i32, i32) {
    %c0_i32 = arith.constant 0 : i32
    %c0_i32_0 = arith.constant 0 : i32
    %c0_i32_1 = arith.constant 0 : i32
    return %c0_i32, %c0_i32_0 : i32, i32
  }
  func.func @transform_17(%arg0: i32) -> (i32, i32) {
    %c0_i32 = arith.constant 0 : i32
    %c0_i32_0 = arith.constant 0 : i32
    %c0_i32_1 = arith.constant 0 : i32
    return %c0_i32, %c0_i32_0 : i32, i32
  }
  func.func @transform_18(%arg0: i32) -> (i32, i32, i32) {
    %c0_i32 = arith.constant 0 : i32
    %c0_i32_0 = arith.constant 0 : i32
    %c0_i32_1 = arith.constant 0 : i32
    %c0_i32_2 = arith.constant 0 : i32
    return %c0_i32, %c0_i32_0, %c0_i32_1 : i32, i32, i32
  }
  func.func @transform_19(%arg0: i32) -> (i32, i32) {
    %c0_i32 = arith.constant 0 : i32
    %c0_i32_0 = arith.constant 0 : i32
    %c0_i32_1 = arith.constant 0 : i32
    return %c0_i32, %c0_i32_0 : i32, i32
  }
  func.func @transform_20(%arg0: i32) -> (i32, i32) {
    %c0_i32 = arith.constant 0 : i32
    %c0_i32_0 = arith.constant 0 : i32
    %c0_i32_1 = arith.constant 0 : i32
    return %c0_i32, %c0_i32_0 : i32, i32
  }
  func.func @transform_21(%arg0: i32) -> (i32, i32) {
    %c0_i32 = arith.constant 0 : i32
    %c0_i32_0 = arith.constant 0 : i32
    %c0_i32_1 = arith.constant 0 : i32
    return %c0_i32, %c0_i32_0 : i32, i32
  }
  func.func @transform_22(%arg0: i32) -> (i32, i32) {
    %c0_i32 = arith.constant 0 : i32
    %c0_i32_0 = arith.constant 0 : i32
    %c0_i32_1 = arith.constant 0 : i32
    return %c0_i32, %c0_i32_0 : i32, i32
  }
}

</mosaic_0001>

<llo_original>
// kernel: tile.53
$region0: #{tile.53}
  #allocation0 [shape = 's32[1]{0}', space=sflag, size = 0x4, scoped, tag = 'scoped memory for tile.53']
  %s0 = inlined_call_operand.vmem [shape: f32[4], index: 0, kind: input, shape index: {}]
  %s1 = inlined_call_operand.vmem [shape: f32[16,4], index: 1, kind: output, shape index: {}]
  // Predicated region
  $region2: #{tile.53} parent=0 // pred_check
    _
  $region3: #{tile.53} parent=0 // pred_check_branch
    %3 = sbr.rel (0) target = $region5
  $region4: #{tile.53} parent=0 // pred_region
    _
  $region5: #{tile.53} parent=0 // pred_fallthru
    _
  %v4 = vld [vmem:[%s0] ss:$0 sm:$0xff]
  %5 = vst [vmem:[%s1] sm:$0xff] %v4
  %s6 = scalar_lea.vmem %s1, 8
  %7 = vst [vmem:[%s6] sm:$0xff] %v4

// kernel: tile.54
$region0: #{tile.54}
  %s0 = inlined_call_operand.vmem [shape: f32[16,4], index: 0, kind: input, shape index: {}]
  %s1 = inlined_call_operand.vmem [shape: f32[1,64], index: 1, kind: output, shape index: {}]
  $region1: #{tile.54} parent=0
    #allocation0 [shape = 'u8[4096]{0}', space=vmem, size = 0x1000, scoped, tag = 'scoped mem for output reshape']
    %v2 = vld [vmem:[%s0] sm:$0x1]
    %vm3 = vcmask 31744
    %4 = vst.msk [vmem:[#allocation0] sm:$0x1] %vm3, %v2
    %s5 = scalar_lea.vmem %s0, 15
    %v6 = vld [vmem:[%s5] sm:$0x1]
    %7 = vrot.lane.b32.xlu0 %v6, 60
    %v8 = vpop.permute.xlu0 %7
    %vm9 = vcmask 523744
    %10 = vst.msk [vmem:[#allocation0] sm:$0x1] %vm9, %v8
    %s11 = scalar_lea.vmem %s0, 14
    %v12 = vld [vmem:[%s11] sm:$0x1]
    %13 = vrot.lane.b32.xlu0 %v12, 56
    %v14 = vpop.permute.xlu0 %13
    %vm15 = vcmask 490944
    %16 = vst.msk [vmem:[#allocation0] sm:$0x1] %vm15, %v14
    %s17 = scalar_lea.vmem %s0, 13
    %v18 = vld [vmem:[%s17] sm:$0x1]
    %19 = vrot.lane.b32.xlu0 %v18, 52
    %v20 = vpop.permute.xlu0 %19
    %vm21 = vcmask 458144
    %22 = vst.msk [vmem:[#allocation0] sm:$0x1] %vm21, %v20
    %s23 = scalar_lea.vmem %s0, 12
    %v24 = vld [vmem:[%s23] sm:$0x1]
    %25 = vrot.lane.b32.xlu0 %v24, 48
    %v26 = vpop.permute.xlu0 %25
    %vm27 = vcmask 425344
    %28 = vst.msk [vmem:[#allocation0] sm:$0x1] %vm27, %v26
    %s29 = scalar_lea.vmem %s0, 11
    %v30 = vld [vmem:[%s29] sm:$0x1]
    %31 = vrot.lane.b32.xlu0 %v30, 44
    %v32 = vpop.permute.xlu0 %31
    %vm33 = vcmask 392544
    %34 = vst.msk [vmem:[#allocation0] sm:$0x1] %vm33, %v32
    %s35 = scalar_lea.vmem %s0, 10
    %v36 = vld [vmem:[%s35] sm:$0x1]
    %37 = vrot.lane.b32.xlu0 %v36, 40
    %v38 = vpop.permute.xlu0 %37
    %vm39 = vcmask 359744
    %40 = vst.msk [vmem:[#allocation0] sm:$0x1] %vm39, %v38
    %s41 = scalar_lea.vmem %s0, 9
    %v42 = vld [vmem:[%s41] sm:$0x1]
    %43 = vrot.lane.b32.xlu0 %v42, 36
    %v44 = vpop.permute.xlu0 %43
    %vm45 = vcmask 326944
    %46 = vst.msk [vmem:[#allocation0] sm:$0x1] %vm45, %v44
    %s47 = scalar_lea.vmem %s0, 8
    %v48 = vld [vmem:[%s47] sm:$0x1]
    %49 = vrot.lane.b32.xlu0 %v48, 32
    %v50 = vpop.permute.xlu0 %49
    %vm51 = vcmask 294144
    %52 = vst.msk [vmem:[#allocation0] sm:$0x1] %vm51, %v50
    %s53 = scalar_lea.vmem %s0, 7
    %v54 = vld [vmem:[%s53] sm:$0x1]
    %55 = vrot.lane.b32.xlu0 %v54, 28
    %v56 = vpop.permute.xlu0 %55
    %vm57 = vcmask 261344
    %58 = vst.msk [vmem:[#allocation0] sm:$0x1] %vm57, %v56
    %s59 = scalar_lea.vmem %s0, 6
    %v60 = vld [vmem:[%s59] sm:$0x1]
    %61 = vrot.lane.b32.xlu0 %v60, 24
    %v62 = vpop.permute.xlu0 %61
    %vm63 = vcmask 228544
    %64 = vst.msk [vmem:[#allocation0] sm:$0x1] %vm63, %v62
    %s65 = scalar_lea.vmem %s0, 5
    %v66 = vld [vmem:[%s65] sm:$0x1]
    %67 = vrot.lane.b32.xlu0 %v66, 20
    %v68 = vpop.permute.xlu0 %67
    %vm69 = vcmask 195744
    %70 = vst.msk [vmem:[#allocation0] sm:$0x1] %vm69, %v68
    %s71 = scalar_lea.vmem %s0, 4
    %v72 = vld [vmem:[%s71] sm:$0x1]
    %73 = vrot.lane.b32.xlu0 %v72, 16
    %v74 = vpop.permute.xlu0 %73
    %vm75 = vcmask 162944
    %76 = vst.msk [vmem:[#allocation0] sm:$0x1] %vm75, %v74
    %s77 = scalar_lea.vmem %s0, 3
    %v78 = vld [vmem:[%s77] sm:$0x1]
    %79 = vrot.lane.b32.xlu0 %v78, 12
    %v80 = vpop.permute.xlu0 %79
    %vm81 = vcmask 130144
    %82 = vst.msk [vmem:[#allocation0] sm:$0x1] %vm81, %v80
    %s83 = scalar_lea.vmem %s0, 2
    %v84 = vld [vmem:[%s83] sm:$0x1]
    %85 = vrot.lane.b32.xlu0 %v84, 8
    %v86 = vpop.permute.xlu0 %85
    %vm87 = vcmask 97344
    %88 = vst.msk [vmem:[#allocation0] sm:$0x1] %vm87, %v86
    %s89 = scalar_lea.vmem %s0, 1
    %v90 = vld [vmem:[%s89] sm:$0x1]
    %91 = vrot.lane.b32.xlu0 %v90, 4
    %v92 = vpop.permute.xlu0 %91
    %vm93 = vcmask 64544
    %94 = vst.msk [vmem:[#allocation0] sm:$0x1] %vm93, %v92
    %s96 = ssub.s32 2, 1
    %v97 = vld [vmem:[#allocation0] sm:%s96]
    %s99 = ssub.s32 2, 1
    %100 = vst [vmem:[%s1] sm:%s99] %v97

// kernel: tile.73
$region0: #{tile.73}
  #allocation0 [shape = 's32[1]{0}', space=sflag, size = 0x4, scoped, tag = 'scoped memory for tile.73']
  %s0 = inlined_call_operand.vmem [shape: f32[8], index: 0, kind: input, shape index: {}]
  %s1 = inlined_call_operand.vmem [shape: f32[16,8], index: 1, kind: output, shape index: {}]
  // Predicated region
  $region2: #{tile.73} parent=0 // pred_check
    _
  $region3: #{tile.73} parent=0 // pred_check_branch
    %3 = sbr.rel (0) target = $region5
  $region4: #{tile.73} parent=0 // pred_region
    _
  $region5: #{tile.73} parent=0 // pred_fallthru
    _
  %v4 = vld [vmem:[%s0] ss:$0 sm:$0xff]
  %5 = vst [vmem:[%s1] sm:$0xff] %v4
  %s6 = scalar_lea.vmem %s1, 8
  %7 = vst [vmem:[%s6] sm:$0xff] %v4

// kernel: tile.74
$region0: #{tile.74}
  %s0 = inlined_call_operand.vmem [shape: f32[16,8], index: 0, kind: input, shape index: {}]
  %s1 = inlined_call_operand.vmem [shape: f32[1,128], index: 1, kind: output, shape index: {}]
  $region1: #{tile.74} parent=0
    #allocation0 [shape = 'u8[4096]{0}', space=vmem, size = 0x1000, scoped, tag = 'scoped mem for output reshape']
    %v2 = vld [vmem:[%s0] sm:$0x1]
    %vm3 = vcmask 64512
    %4 = vst.msk [vmem:[#allocation0] sm:$0x1] %vm3, %v2
    %s5 = scalar_lea.vmem %s0, 15
    %v6 = vld [vmem:[%s5] sm:$0x1]
    %7 = vrot.lane.b32.xlu0 %v6, 120
    %v8 = vpop.permute.xlu0 %7
    %vm9 = vcmask 1048512
    %10 = vst.msk [vmem:[#allocation0] sm:$0x1] %vm9, %v8
    %s11 = scalar_lea.vmem %s0, 14
    %v12 = vld [vmem:[%s11] sm:$0x1]
    %13 = vrot.lane.b32.xlu0 %v12, 112
    %v14 = vpop.permute.xlu0 %13
    %vm15 = vcmask 982912
    %16 = vst.msk [vmem:[#allocation0] sm:$0x1] %vm15, %v14
    %s17 = scalar_lea.vmem %s0, 13
    %v18 = vld [vmem:[%s17] sm:$0x1]
    %19 = vrot.lane.b32.xlu0 %v18, 104
    %v20 = vpop.permute.xlu0 %19
    %vm21 = vcmask 917312
    %22 = vst.msk [vmem:[#allocation0] sm:$0x1] %vm21, %v20
    %s23 = scalar_lea.vmem %s0, 12
    %v24 = vld [vmem:[%s23] sm:$0x1]
    %25 = vrot.lane.b32.xlu0 %v24, 96
    %v26 = vpop.permute.xlu0 %25
    %vm27 = vcmask 851712
    %28 = vst.msk [vmem:[#allocation0] sm:$0x1] %vm27, %v26
    %s29 = scalar_lea.vmem %s0, 11
    %v30 = vld [vmem:[%s29] sm:$0x1]
    %31 = vrot.lane.b32.xlu0 %v30, 88
    %v32 = vpop.permute.xlu0 %31
    %vm33 = vcmask 786112
    %34 = vst.msk [vmem:[#allocation0] sm:$0x1] %vm33, %v32
    %s35 = scalar_lea.vmem %s0, 10
    %v36 = vld [vmem:[%s35] sm:$0x1]
    %37 = vrot.lane.b32.xlu0 %v36, 80
    %v38 = vpop.permute.xlu0 %37
    %vm39 = vcmask 720512
    %40 = vst.msk [vmem:[#allocation0] sm:$0x1] %vm39, %v38
    %s41 = scalar_lea.vmem %s0, 9
    %v42 = vld [vmem:[%s41] sm:$0x1]
    %43 = vrot.lane.b32.xlu0 %v42, 72
    %v44 = vpop.permute.xlu0 %43
    %vm45 = vcmask 654912
    %46 = vst.msk [vmem:[#allocation0] sm:$0x1] %vm45, %v44
    %s47 = scalar_lea.vmem %s0, 8
    %v48 = vld [vmem:[%s47] sm:$0x1]
    %49 = vrot.lane.b32.xlu0 %v48, 64
    %v50 = vpop.permute.xlu0 %49
    %vm51 = vcmask 589312
    %52 = vst.msk [vmem:[#allocation0] sm:$0x1] %vm51, %v50
    %s53 = scalar_lea.vmem %s0, 7
    %v54 = vld [vmem:[%s53] sm:$0x1]
    %55 = vrot.lane.b32.xlu0 %v54, 56
    %v56 = vpop.permute.xlu0 %55
    %vm57 = vcmask 523712
    %58 = vst.msk [vmem:[#allocation0] sm:$0x1] %vm57, %v56
    %s59 = scalar_lea.vmem %s0, 6
    %v60 = vld [vmem:[%s59] sm:$0x1]
    %61 = vrot.lane.b32.xlu0 %v60, 48
    %v62 = vpop.permute.xlu0 %61
    %vm63 = vcmask 458112
    %64 = vst.msk [vmem:[#allocation0] sm:$0x1] %vm63, %v62
    %s65 = scalar_lea.vmem %s0, 5
    %v66 = vld [vmem:[%s65] sm:$0x1]
    %67 = vrot.lane.b32.xlu0 %v66, 40
    %v68 = vpop.permute.xlu0 %67
    %vm69 = vcmask 392512
    %70 = vst.msk [vmem:[#allocation0] sm:$0x1] %vm69, %v68
    %s71 = scalar_lea.vmem %s0, 4
    %v72 = vld [vmem:[%s71] sm:$0x1]
    %73 = vrot.lane.b32.xlu0 %v72, 32
    %v74 = vpop.permute.xlu0 %73
    %vm75 = vcmask 326912
    %76 = vst.msk [vmem:[#allocation0] sm:$0x1] %vm75, %v74
    %s77 = scalar_lea.vmem %s0, 3
    %v78 = vld [vmem:[%s77] sm:$0x1]
    %79 = vrot.lane.b32.xlu0 %v78, 24
    %v80 = vpop.permute.xlu0 %79
    %vm81 = vcmask 261312
    %82 = vst.msk [vmem:[#allocation0] sm:$0x1] %vm81, %v80
    %s83 = scalar_lea.vmem %s0, 2
    %v84 = vld [vmem:[%s83] sm:$0x1]
    %85 = vrot.lane.b32.xlu0 %v84, 16
    %v86 = vpop.permute.xlu0 %85
    %vm87 = vcmask 195712
    %88 = vst.msk [vmem:[#allocation0] sm:$0x1] %vm87, %v86
    %s89 = scalar_lea.vmem %s0, 1
    %v90 = vld [vmem:[%s89] sm:$0x1]
    %91 = vrot.lane.b32.xlu0 %v90, 8
    %v92 = vpop.permute.xlu0 %91
    %vm93 = vcmask 130112
    %94 = vst.msk [vmem:[#allocation0] sm:$0x1] %vm93, %v92
    %s96 = ssub.s32 2, 1
    %v97 = vld [vmem:[#allocation0] sm:%s96]
    %s99 = ssub.s32 2, 1
    %100 = vst [vmem:[%s1] sm:%s99] %v97

// kernel: conv_block_forward.1
$region0: #{conv_block_forward.1}
  #allocation0 [shape = 'u32[]', space=smem, size = 0x4, offset = 0x4, fixed_abs, tag = 'smem constant byte address 0x4 - core index']
  #allocation1 [shape = 'u32[72,128]{1,0:T(1,128)}', space=vmem, size = 0x9000, scoped, tag = 'internal scratch']
  %s0 = inlined_call_operand.vmem [shape: f32[32,64], index: 0, kind: input, shape index: {}]
  %s1 = inlined_call_operand.vmem [shape: f32[3,32,32], index: 1, kind: input, shape index: {}]
  %s2 = inlined_call_operand.vmem [shape: f32[3,64,64], index: 2, kind: input, shape index: {}]
  %s3 = inlined_call_operand.vmem [shape: f32[1,64], index: 3, kind: input, shape index: {}]
  %s4 = inlined_call_operand.vmem [shape: f32[1,64], index: 4, kind: input, shape index: {}]
  %s5 = inlined_call_operand.vmem [shape: f32[64,64], index: 5, kind: input, shape index: {}, may-alias: {5,9}]
  %s6 = inlined_call_operand.vmem [shape: f32[3,64,64], index: 6, kind: input, shape index: {}]
  %s7 = inlined_call_operand.vmem [shape: f32[1,64], index: 7, kind: input, shape index: {}]
  %s8 = inlined_call_operand.vmem [shape: f32[1,64], index: 8, kind: input, shape index: {}]
  %s9 = inlined_call_operand.vmem [shape: f32[64,64], index: 9, kind: input, shape index: {}, may-alias: {5,9}]
  %s10 = inlined_call_operand.vmem [shape: f32[3,64,128], index: 10, kind: input, shape index: {}]
  %s11 = inlined_call_operand.vmem [shape: f32[1,128], index: 11, kind: input, shape index: {}]
  %s12 = inlined_call_operand.vmem [shape: f32[1,128], index: 12, kind: input, shape index: {}]
  %s13 = inlined_call_operand.vmem [shape: f32[128,128], index: 13, kind: input, shape index: {}, may-alias: {13,17,21}]
  %s14 = inlined_call_operand.vmem [shape: f32[3,128,128], index: 14, kind: input, shape index: {}]
  %s15 = inlined_call_operand.vmem [shape: f32[1,128], index: 15, kind: input, shape index: {}]
  %s16 = inlined_call_operand.vmem [shape: f32[1,128], index: 16, kind: input, shape index: {}]
  %s17 = inlined_call_operand.vmem [shape: f32[128,128], index: 17, kind: input, shape index: {}, may-alias: {13,17,21}]
  %s18 = inlined_call_operand.vmem [shape: f32[3,128,128], index: 18, kind: input, shape index: {}]
  %s19 = inlined_call_operand.vmem [shape: f32[1,128], index: 19, kind: input, shape index: {}]
  %s20 = inlined_call_operand.vmem [shape: f32[1,128], index: 20, kind: input, shape index: {}]
  %s21 = inlined_call_operand.vmem [shape: f32[128,128], index: 21, kind: input, shape index: {}, may-alias: {13,17,21}]
  %s22 = inlined_call_operand.vmem [shape: f32[32,128], index: 22, kind: output, shape index: {}]
  %s23 = sld [smem:[#allocation0]]
  $region98: #{conv_block_forward.1} parent=0
    _
  %s25 = ssub.s32 1, %s23
  %s26 = scalar_select 0, %s25, %s23
  // Predicated region
  $region2: #{conv_block_forward.1} parent=0 // pred_check
    _
  $region3: #{conv_block_forward.1} parent=0 // pred_check_branch
    %28 = sbr.rel (0) target = $region5
  $region4: #{conv_block_forward.1} parent=0 // pred_region
    _
  $region5: #{conv_block_forward.1} parent=0 // pred_fallthru
    _
  // Predicated region
  $region6: #{conv_block_forward.1} parent=0 // pred_check
    _
  $region7: #{conv_block_forward.1} parent=0 // pred_check_branch
    %30 = sbr.rel (0) target = $region9
  $region8: #{conv_block_forward.1} parent=0 // pred_region
    _
  $region9: #{conv_block_forward.1} parent=0 // pred_fallthru
    _
  // Predicated region
  $region10: #{conv_block_forward.1} parent=0 // pred_check
    _
  $region11: #{conv_block_forward.1} parent=0 // pred_check_branch
    %32 = sbr.rel (0) target = $region13
  $region12: #{conv_block_forward.1} parent=0 // pred_region
    _
  $region13: #{conv_block_forward.1} parent=0 // pred_fallthru
    _
  // Predicated region
  $region14: #{conv_block_forward.1} parent=0 // pred_check
    _
  $region15: #{conv_block_forward.1} parent=0 // pred_check_branch
    %34 = sbr.rel (0) target = $region17
  $region16: #{conv_block_forward.1} parent=0 // pred_region
    _
  $region17: #{conv_block_forward.1} parent=0 // pred_fallthru
    _
  // Predicated region
  $region18: #{conv_block_forward.1} parent=0 // pred_check
    _
  $region19: #{conv_block_forward.1} parent=0 // pred_check_branch
    %36 = sbr.rel (0) target = $region21
  $region20: #{conv_block_forward.1} parent=0 // pred_region
    _
  $region21: #{conv_block_forward.1} parent=0 // pred_fallthru
    _
  // Predicated region
  $region22: #{conv_block_forward.1} parent=0 // pred_check
    _
  $region23: #{conv_block_forward.1} parent=0 // pred_check_branch
    %38 = sbr.rel (0) target = $region25
  $region24: #{conv_block_forward.1} parent=0 // pred_region
    _
  $region25: #{conv_block_forward.1} parent=0 // pred_fallthru
    _
  // Predicated region
  $region26: #{conv_block_forward.1} parent=0 // pred_check
    _
  $region27: #{conv_block_forward.1} parent=0 // pred_check_branch
    %40 = sbr.rel (0) target = $region29
  $region28: #{conv_block_forward.1} parent=0 // pred_region
    _
  $region29: #{conv_block_forward.1} parent=0 // pred_fallthru
    _
  // Predicated region
  $region30: #{conv_block_forward.1} parent=0 // pred_check
    _
  $region31: #{conv_block_forward.1} parent=0 // pred_check_branch
    %42 = sbr.rel (0) target = $region33
  $region32: #{conv_block_forward.1} parent=0 // pred_region
    _
  $region33: #{conv_block_forward.1} parent=0 // pred_fallthru
    _
  // Predicated region
  $region34: #{conv_block_forward.1} parent=0 // pred_check
    _
  $region35: #{conv_block_forward.1} parent=0 // pred_check_branch
    %44 = sbr.rel (0) target = $region37
  $region36: #{conv_block_forward.1} parent=0 // pred_region
    _
  $region37: #{conv_block_forward.1} parent=0 // pred_fallthru
    _
  // Predicated region
  $region38: #{conv_block_forward.1} parent=0 // pred_check
    _
  $region39: #{conv_block_forward.1} parent=0 // pred_check_branch
    %46 = sbr.rel (0) target = $region41
  $region40: #{conv_block_forward.1} parent=0 // pred_region
    _
  $region41: #{conv_block_forward.1} parent=0 // pred_fallthru
    _
  // Predicated region
  $region42: #{conv_block_forward.1} parent=0 // pred_check
    _
  $region43: #{conv_block_forward.1} parent=0 // pred_check_branch
    %48 = sbr.rel (0) target = $region45
  $region44: #{conv_block_forward.1} parent=0 // pred_region
    _
  $region45: #{conv_block_forward.1} parent=0 // pred_fallthru
    _
  // Predicated region
  $region46: #{conv_block_forward.1} parent=0 // pred_check
    _
  $region47: #{conv_block_forward.1} parent=0 // pred_check_branch
    %50 = sbr.rel (0) target = $region49
  $region48: #{conv_block_forward.1} parent=0 // pred_region
    _
  $region49: #{conv_block_forward.1} parent=0 // pred_fallthru
    _
  // Predicated region
  $region50: #{conv_block_forward.1} parent=0 // pred_check
    _
  $region51: #{conv_block_forward.1} parent=0 // pred_check_branch
    %52 = sbr.rel (0) target = $region53
  $region52: #{conv_block_forward.1} parent=0 // pred_region
    _
  $region53: #{conv_block_forward.1} parent=0 // pred_fallthru
    _
  // Predicated region
  $region54: #{conv_block_forward.1} parent=0 // pred_check
    _
  $region55: #{conv_block_forward.1} parent=0 // pred_check_branch
    %54 = sbr.rel (0) target = $region57
  $region56: #{conv_block_forward.1} parent=0 // pred_region
    _
  $region57: #{conv_block_forward.1} parent=0 // pred_fallthru
    _
  // Predicated region
  $region58: #{conv_block_forward.1} parent=0 // pred_check
    _
  $region59: #{conv_block_forward.1} parent=0 // pred_check_branch
    %56 = sbr.rel (0) target = $region61
  $region60: #{conv_block_forward.1} parent=0 // pred_region
    _
  $region61: #{conv_block_forward.1} parent=0 // pred_fallthru
    _
  // Predicated region
  $region62: #{conv_block_forward.1} parent=0 // pred_check
    _
  $region63: #{conv_block_forward.1} parent=0 // pred_check_branch
    %58 = sbr.rel (0) target = $region65
  $region64: #{conv_block_forward.1} parent=0 // pred_region
    _
  $region65: #{conv_block_forward.1} parent=0 // pred_fallthru
    _
  // Predicated region
  $region66: #{conv_block_forward.1} parent=0 // pred_check
    _
  $region67: #{conv_block_forward.1} parent=0 // pred_check_branch
    %60 = sbr.rel (0) target = $region69
  $region68: #{conv_block_forward.1} parent=0 // pred_region
    _
  $region69: #{conv_block_forward.1} parent=0 // pred_fallthru
    _
  // Predicated region
  $region70: #{conv_block_forward.1} parent=0 // pred_check
    _
  $region71: #{conv_block_forward.1} parent=0 // pred_check_branch
    %62 = sbr.rel (0) target = $region73
  $region72: #{conv_block_forward.1} parent=0 // pred_region
    _
  $region73: #{conv_block_forward.1} parent=0 // pred_fallthru
    _
  // Predicated region
  $region74: #{conv_block_forward.1} parent=0 // pred_check
    _
  $region75: #{conv_block_forward.1} parent=0 // pred_check_branch
    %64 = sbr.rel (0) target = $region77
  $region76: #{conv_block_forward.1} parent=0 // pred_region
    _
  $region77: #{conv_block_forward.1} parent=0 // pred_fallthru
    _
  // Predicated region
  $region78: #{conv_block_forward.1} parent=0 // pred_check
    _
  $region79: #{conv_block_forward.1} parent=0 // pred_check_branch
    %66 = sbr.rel (0) target = $region81
  $region80: #{conv_block_forward.1} parent=0 // pred_region
    _
  $region81: #{conv_block_forward.1} parent=0 // pred_fallthru
    _
  // Predicated region
  $region82: #{conv_block_forward.1} parent=0 // pred_check
    _
  $region83: #{conv_block_forward.1} parent=0 // pred_check_branch
    %68 = sbr.rel (0) target = $region85
  $region84: #{conv_block_forward.1} parent=0 // pred_region
    _
  $region85: #{conv_block_forward.1} parent=0 // pred_fallthru
    _
  // Predicated region
  $region86: #{conv_block_forward.1} parent=0 // pred_check
    _
  $region87: #{conv_block_forward.1} parent=0 // pred_check_branch
    %70 = sbr.rel (0) target = $region89
  $region88: #{conv_block_forward.1} parent=0 // pred_region
    _
  $region89: #{conv_block_forward.1} parent=0 // pred_fallthru
    _
  %v71 = vld [vmem:[%s0] sm:$0xff]
  %v72 = vld [vmem:[%s0 + $0x8] sm:$0xff]
  %v73 = vld [vmem:[%s0 + $0x10] sm:$0xff]
  %v74 = vld [vmem:[%s0 + $0x18] sm:$0xff]
  %v75 = vld [vmem:[%s1] sm:$0xff]
  %v76 = vld [vmem:[%s1 + $0x8] sm:$0xff]
  %v77 = vld [vmem:[%s1 + $0x10] sm:$0xff]
  %v78 = vld [vmem:[%s1 + $0x18] sm:$0xff]
  %vm79 = vcmask 261120
  %v81 = vsel %vm79, %v75, 0
  %v84 = vsel %vm79, %v76, 0
  %v87 = vsel %vm79, %v77, 0
  %v90 = vsel %vm79, %v78, 0
  %92 = vmatpush.msra.mxu0 0.0
  %93 = vmatpush.msra.mxu0 0.0
  %94 = vmatpush.msra.mxu0 0.0
  %95 = vmatpush.msra.mxu0 0.0
  %96 = vmatpush.msra.mxu0 0.0
  %97 = vmatpush.msra.mxu0 0.0
  %98 = vmatpush.msra.mxu0 0.0
  %99 = vmatpush.msra.mxu0 0.0
  %100 = vmatpush.msra.mxu0 0.0
  %101 = vmatpush.msra.mxu0 0.0
  %102 = vmatpush.msra.mxu0 0.0
  %103 = vmatpush.msra.mxu0 0.0
  %104 = vmatpush.msra.mxu0 %v74
  %105 = vmatpush.msra.mxu0 %v73
  %106 = vmatpush.msra.mxu0 %v72
  %107 = vmatpush.msra.mxu0 %v71
  %108 = vmatmul.f32.gmra.mxu0 %v81
  %v109 = vpop.f32.mrf.mxu0
  %v110 = vadd.f32 0.0, %v109
  %111 = vmatmul.f32.gmra.mxu0 %v84
  %v112 = vpop.f32.mrf.mxu0
  %v113 = vadd.f32 0.0, %v112
  %114 = vmatmul.f32.gmra.mxu0 %v87
  %v115 = vpop.f32.mrf.mxu0
  %v116 = vadd.f32 0.0, %v115
  %117 = vmatmul.f32.gmra.mxu0 %v90
  %v118 = vpop.f32.mrf.mxu0
  %v119 = vadd.f32 0.0, %v118
  %120 = vdwg.mxu0
  %v121 = vld [vmem:[%s2] sm:$0xff]
  %v122 = vld [vmem:[%s2 + $0x8] sm:$0xff]
  %v123 = vld [vmem:[%s2 + $0x10] sm:$0xff]
  %v124 = vld [vmem:[%s2 + $0x18] sm:$0xff]
  %v125 = vld [vmem:[%s2 + $0x20] sm:$0xff]
  %v126 = vld [vmem:[%s2 + $0x28] sm:$0xff]
  %v127 = vld [vmem:[%s2 + $0x30] sm:$0xff]
  %v128 = vld [vmem:[%s2 + $0x38] sm:$0xff]
  %s129 = scalar_lea.vmem %s1, 32
  %v130 = vld [vmem:[%s129] sm:$0xff]
  %v131 = vld [vmem:[%s129 + $0x8] sm:$0xff]
  %v132 = vld [vmem:[%s129 + $0x10] sm:$0xff]
  %v133 = vld [vmem:[%s129 + $0x18] sm:$0xff]
  %v135 = vsel %vm79, %v130, 0
  %v138 = vsel %vm79, %v131, 0
  %v141 = vsel %vm79, %v132, 0
  %v144 = vsel %vm79, %v133, 0
  %146 = vmatpush.msra.mxu0 0.0
  %147 = vmatpush.msra.mxu0 0.0
  %148 = vmatpush.msra.mxu0 0.0
  %149 = vmatpush.msra.mxu0 0.0
  %150 = vmatpush.msra.mxu0 0.0
  %151 = vmatpush.msra.mxu0 0.0
  %152 = vmatpush.msra.mxu0 0.0
  %153 = vmatpush.msra.mxu0 0.0
  %154 = vmatpush.msra.mxu0 0.0
  %155 = vmatpush.msra.mxu0 0.0
  %156 = vmatpush.msra.mxu0 0.0
  %157 = vmatpush.msra.mxu0 0.0
  %158 = vmatpush.msra.mxu0 %v74
  %159 = vmatpush.msra.mxu0 %v73
  %160 = vmatpush.msra.mxu0 %v72
  %161 = vmatpush.msra.mxu0 %v71
  %162 = vmatmul.f32.gmra.mxu0 %v135
  %v163 = vpop.f32.mrf.mxu0
  %v164 = vadd.f32 0.0, %v163
  %165 = vmatmul.f32.gmra.mxu0 %v138
  %v166 = vpop.f32.mrf.mxu0
  %v167 = vadd.f32 0.0, %v166
  %168 = vmatmul.f32.gmra.mxu0 %v141
  %v169 = vpop.f32.mrf.mxu0
  %v170 = vadd.f32 0.0, %v169
  %171 = vmatmul.f32.gmra.mxu0 %v144
  %v172 = vpop.f32.mrf.mxu0
  %v173 = vadd.f32 0.0, %v172
  %174 = vdwg.mxu0
  %s175 = scalar_lea.vmem %s2, 64
  %v176 = vld [vmem:[%s175] sm:$0xff]
  %v177 = vld [vmem:[%s175 + $0x8] sm:$0xff]
  %v178 = vld [vmem:[%s175 + $0x10] sm:$0xff]
  %v179 = vld [vmem:[%s175 + $0x18] sm:$0xff]
  %v180 = vld [vmem:[%s175 + $0x20] sm:$0xff]
  %v181 = vld [vmem:[%s175 + $0x28] sm:$0xff]
  %v182 = vld [vmem:[%s175 + $0x30] sm:$0xff]
  %v183 = vld [vmem:[%s175 + $0x38] sm:$0xff]
  %vm184 = vcmask 523264
  %v186 = vsel %vm184, %v164, 0
  %v189 = vsel %vm184, %v167, 0
  %v192 = vsel %vm184, %v170, 0
  %v195 = vsel %vm184, %v173, 0
  %197 = vmatpush.msra.mxu0 0.0
  %198 = vmatpush.msra.mxu0 0.0
  %199 = vmatpush.msra.mxu0 0.0
  %200 = vmatpush.msra.mxu0 0.0
  %201 = vmatpush.msra.mxu0 0.0
  %202 = vmatpush.msra.mxu0 0.0
  %203 = vmatpush.msra.mxu0 0.0
  %204 = vmatpush.msra.mxu0 0.0
  %205 = vmatpush.msra.mxu0 %v183
  %206 = vmatpush.msra.mxu0 %v182
  %207 = vmatpush.msra.mxu0 %v181
  %208 = vmatpush.msra.mxu0 %v180
  %209 = vmatpush.msra.mxu0 %v179
  %210 = vmatpush.msra.mxu0 %v178
  %211 = vmatpush.msra.mxu0 %v177
  %212 = vmatpush.msra.mxu0 %v176
  %213 = vmatmul.f32.gmra.mxu0 %v186
  %v214 = vpop.f32.mrf.mxu0
  %v215 = vadd.f32 0.0, %v214
  %216 = vmatmul.f32.gmra.mxu0 %v189
  %v217 = vpop.f32.mrf.mxu0
  %v218 = vadd.f32 0.0, %v217
  %219 = vmatmul.f32.gmra.mxu0 %v192
  %v220 = vpop.f32.mrf.mxu0
  %v221 = vadd.f32 0.0, %v220
  %222 = vmatmul.f32.gmra.mxu0 %v195
  %v223 = vpop.f32.mrf.mxu0
  %v224 = vadd.f32 0.0, %v223
  %225 = vdwg.mxu0
  %v227 = vsel %vm184, %v110, 0
  %v230 = vsel %vm184, %v113, 0
  %v233 = vsel %vm184, %v116, 0
  %v236 = vsel %vm184, %v119, 0
  %238 = vmatpush.msra.mxu0 0.0
  %239 = vmatpush.msra.mxu0 0.0
  %240 = vmatpush.msra.mxu0 0.0
  %241 = vmatpush.msra.mxu0 0.0
  %242 = vmatpush.msra.mxu0 0.0
  %243 = vmatpush.msra.mxu0 0.0
  %244 = vmatpush.msra.mxu0 0.0
  %245 = vmatpush.msra.mxu0 0.0
  %246 = vmatpush.msra.mxu0 %v128
  %247 = vmatpush.msra.mxu0 %v127
  %248 = vmatpush.msra.mxu0 %v126
  %249 = vmatpush.msra.mxu0 %v125
  %250 = vmatpush.msra.mxu0 %v124
  %251 = vmatpush.msra.mxu0 %v123
  %252 = vmatpush.msra.mxu0 %v122
  %253 = vmatpush.msra.mxu0 %v121
  %254 = vmatmul.f32.gmra.mxu0 %v227
  %v255 = vpop.f32.mrf.mxu0
  %v256 = vadd.f32 %v215, %v255
  %257 = vmatmul.f32.gmra.mxu0 %v230
  %v258 = vpop.f32.mrf.mxu0
  %v259 = vadd.f32 %v218, %v258
  %260 = vmatmul.f32.gmra.mxu0 %v233
  %v261 = vpop.f32.mrf.mxu0
  %v262 = vadd.f32 %v221, %v261
  %263 = vmatmul.f32.gmra.mxu0 %v236
  %v264 = vpop.f32.mrf.mxu0
  %v265 = vadd.f32 %v224, %v264
  %266 = vdwg.mxu0
  %s267 = scalar_lea.vmem %s1, 64
  %v268 = vld [vmem:[%s267] sm:$0xff]
  %v269 = vld [vmem:[%s267 + $0x8] sm:$0xff]
  %v270 = vld [vmem:[%s267 + $0x10] sm:$0xff]
  %v271 = vld [vmem:[%s267 + $0x18] sm:$0xff]
  %v273 = vsel %vm79, %v268, 0
  %v276 = vsel %vm79, %v269, 0
  %v279 = vsel %vm79, %v270, 0
  %v282 = vsel %vm79, %v271, 0
  %284 = vmatpush.msra.mxu0 0.0
  %285 = vmatpush.msra.mxu0 0.0
  %286 = vmatpush.msra.mxu0 0.0
  %287 = vmatpush.msra.mxu0 0.0
  %288 = vmatpush.msra.mxu0 0.0
  %289 = vmatpush.msra.mxu0 0.0
  %290 = vmatpush.msra.mxu0 0.0
  %291 = vmatpush.msra.mxu0 0.0
  %292 = vmatpush.msra.mxu0 0.0
  %293 = vmatpush.msra.mxu0 0.0
  %294 = vmatpush.msra.mxu0 0.0
  %295 = vmatpush.msra.mxu0 0.0
  %296 = vmatpush.msra.mxu0 %v74
  %297 = vmatpush.msra.mxu0 %v73
  %298 = vmatpush.msra.mxu0 %v72
  %299 = vmatpush.msra.mxu0 %v71
  %300 = vmatmul.f32.gmra.mxu0 %v273
  %v301 = vpop.f32.mrf.mxu0
  %v302 = vadd.f32 0.0, %v301
  %303 = vmatmul.f32.gmra.mxu0 %v276
  %v304 = vpop.f32.mrf.mxu0
  %v305 = vadd.f32 0.0, %v304
  %306 = vmatmul.f32.gmra.mxu0 %v279
  %v307 = vpop.f32.mrf.mxu0
  %v308 = vadd.f32 0.0, %v307
  %309 = vmatmul.f32.gmra.mxu0 %v282
  %v310 = vpop.f32.mrf.mxu0
  %v311 = vadd.f32 0.0, %v310
  %312 = vdwg.mxu0
  %s313 = scalar_lea.vmem %s2, 128
  %v314 = vld [vmem:[%s313] sm:$0xff]
  %v315 = vld [vmem:[%s313 + $0x8] sm:$0xff]
  %v316 = vld [vmem:[%s313 + $0x10] sm:$0xff]
  %v317 = vld [vmem:[%s313 + $0x18] sm:$0xff]
  %v318 = vld [vmem:[%s313 + $0x20] sm:$0xff]
  %v319 = vld [vmem:[%s313 + $0x28] sm:$0xff]
  %v320 = vld [vmem:[%s313 + $0x30] sm:$0xff]
  %v321 = vld [vmem:[%s313 + $0x38] sm:$0xff]
  %v323 = vsel %vm184, %v302, 0
  %v326 = vsel %vm184, %v305, 0
  %v329 = vsel %vm184, %v308, 0
  %v332 = vsel %vm184, %v311, 0
  %334 = vmatpush.msra.mxu0 0.0
  %335 = vmatpush.msra.mxu0 0.0
  %336 = vmatpush.msra.mxu0 0.0
  %337 = vmatpush.msra.mxu0 0.0
  %338 = vmatpush.msra.mxu0 0.0
  %339 = vmatpush.msra.mxu0 0.0
  %340 = vmatpush.msra.mxu0 0.0
  %341 = vmatpush.msra.mxu0 0.0
  %342 = vmatpush.msra.mxu0 %v321
  %343 = vmatpush.msra.mxu0 %v320
  %344 = vmatpush.msra.mxu0 %v319
  %345 = vmatpush.msra.mxu0 %v318
  %346 = vmatpush.msra.mxu0 %v317
  %347 = vmatpush.msra.mxu0 %v316
  %348 = vmatpush.msra.mxu0 %v315
  %349 = vmatpush.msra.mxu0 %v314
  %350 = vmatmul.f32.gmra.mxu0 %v323
  %v351 = vpop.f32.mrf.mxu0
  %v352 = vadd.f32 0.0, %v351
  %353 = vmatmul.f32.gmra.mxu0 %v326
  %v354 = vpop.f32.mrf.mxu0
  %v355 = vadd.f32 0.0, %v354
  %356 = vmatmul.f32.gmra.mxu0 %v329
  %v357 = vpop.f32.mrf.mxu0
  %v358 = vadd.f32 0.0, %v357
  %359 = vmatmul.f32.gmra.mxu0 %v332
  %v360 = vpop.f32.mrf.mxu0
  %v361 = vadd.f32 0.0, %v360
  %362 = vdwg.mxu0
  %v363 = vadd.f32 %v256, %v352
  %v364 = vadd.f32 %v259, %v355
  %v365 = vadd.f32 %v262, %v358
  %v366 = vadd.f32 %v265, %v361
  %v367 = vld [vmem:[%s5] sm:$0xff]
  %v368 = vld [vmem:[%s5 + $0x8] sm:$0xff]
  %v369 = vld [vmem:[%s5 + $0x10] sm:$0xff]
  %v370 = vld [vmem:[%s5 + $0x18] sm:$0xff]
  %v371 = vld [vmem:[%s5 + $0x20] sm:$0xff]
  %v372 = vld [vmem:[%s5 + $0x28] sm:$0xff]
  %v373 = vld [vmem:[%s5 + $0x30] sm:$0xff]
  %v374 = vld [vmem:[%s5 + $0x38] sm:$0xff]
  %v376 = vsel %vm184, %v363, 0
  %v379 = vsel %vm184, %v364, 0
  %v382 = vsel %vm184, %v365, 0
  %v385 = vsel %vm184, %v366, 0
  %387 = vmatpush.msra.mxu0 0.0
  %388 = vmatpush.msra.mxu0 0.0
  %389 = vmatpush.msra.mxu0 0.0
  %390 = vmatpush.msra.mxu0 0.0
  %391 = vmatpush.msra.mxu0 0.0
  %392 = vmatpush.msra.mxu0 0.0
  %393 = vmatpush.msra.mxu0 0.0
  %394 = vmatpush.msra.mxu0 0.0
  %395 = vmatpush.msra.mxu0 %v374
  %396 = vmatpush.msra.mxu0 %v373
  %397 = vmatpush.msra.mxu0 %v372
  %398 = vmatpush.msra.mxu0 %v371
  %399 = vmatpush.msra.mxu0 %v370
  %400 = vmatpush.msra.mxu0 %v369
  %401 = vmatpush.msra.mxu0 %v368
  %402 = vmatpush.msra.mxu0 %v367
  %403 = vmatmul.f32.gmra.mxu0 %v376
  %v404 = vpop.f32.mrf.mxu0
  %v405 = vadd.f32 0.0, %v404
  %406 = vmatmul.f32.gmra.mxu0 %v379
  %v407 = vpop.f32.mrf.mxu0
  %v408 = vadd.f32 0.0, %v407
  %409 = vmatmul.f32.gmra.mxu0 %v382
  %v410 = vpop.f32.mrf.mxu0
  %v411 = vadd.f32 0.0, %v410
  %412 = vmatmul.f32.gmra.mxu0 %v385
  %v413 = vpop.f32.mrf.mxu0
  %v414 = vadd.f32 0.0, %v413
  %415 = vdwg.mxu0
  %v416 = vmul.f32 %v363, %v363
  %v417 = vmul.f32 %v364, %v364
  %v418 = vmul.f32 %v365, %v365
  %v419 = vmul.f32 %v366, %v366
  %v421 = vsel %vm184, %v416, 0
  %v424 = vsel %vm184, %v417, 0
  %v427 = vsel %vm184, %v418, 0
  %v430 = vsel %vm184, %v419, 0
  %432 = vmatpush.msra.mxu0 0.0
  %433 = vmatpush.msra.mxu0 0.0
  %434 = vmatpush.msra.mxu0 0.0
  %435 = vmatpush.msra.mxu0 0.0
  %436 = vmatpush.msra.mxu0 0.0
  %437 = vmatpush.msra.mxu0 0.0
  %438 = vmatpush.msra.mxu0 0.0
  %439 = vmatpush.msra.mxu0 0.0
  %440 = vmatpush.msra.mxu0 %v374
  %441 = vmatpush.msra.mxu0 %v373
  %442 = vmatpush.msra.mxu0 %v372
  %443 = vmatpush.msra.mxu0 %v371
  %444 = vmatpush.msra.mxu0 %v370
  %445 = vmatpush.msra.mxu0 %v369
  %446 = vmatpush.msra.mxu0 %v368
  %447 = vmatpush.msra.mxu0 %v367
  %448 = vmatmul.f32.gmra.mxu0 %v421
  %v449 = vpop.f32.mrf.mxu0
  %v450 = vadd.f32 0.0, %v449
  %451 = vmatmul.f32.gmra.mxu0 %v424
  %v452 = vpop.f32.mrf.mxu0
  %v453 = vadd.f32 0.0, %v452
  %454 = vmatmul.f32.gmra.mxu0 %v427
  %v455 = vpop.f32.mrf.mxu0
  %v456 = vadd.f32 0.0, %v455
  %457 = vmatmul.f32.gmra.mxu0 %v430
  %v458 = vpop.f32.mrf.mxu0
  %v459 = vadd.f32 0.0, %v458
  %460 = vdwg.mxu0
  %v461 = vsel %vm184, %v405, 0.0
  %v462 = vsel %vm184, %v408, 0.0
  %v463 = vadd.f32 %v461, %v462
  %v464 = vsel %vm184, %v411, 0.0
  %v465 = vadd.f32 %v463, %v464
  %v466 = vsel %vm184, %v414, 0.0
  %v467 = vadd.f32 %v465, %v466
  %v468 = vrot.slane %v467, 4
  %v469 = vadd.f32 %v467, %v468
  %v470 = vrot.slane %v469, 2
  %v471 = vadd.f32 %v469, %v470
  %v472 = vrot.slane %v471, 1
  %v473 = vadd.f32 %v471, %v472
  %v474 = vrcp.pop 512.0
  %v475 = vmul.f32 512.0, %v474
  %v476 = vsub.f32 1.0, %v475
  %v477 = vmul.f32 %v474, %v476
  %v478 = vadd.f32 %v474, %v477
  %vm479 = vweird.f32 %v474
  %v480 = vsel %vm479, %v474, %v478
  %v481 = vmul.f32 %v473, %v480
  %v482 = vsel %vm184, %v450, 0.0
  %v483 = vsel %vm184, %v453, 0.0
  %v484 = vadd.f32 %v482, %v483
  %v485 = vsel %vm184, %v456, 0.0
  %v486 = vadd.f32 %v484, %v485
  %v487 = vsel %vm184, %v459, 0.0
  %v488 = vadd.f32 %v486, %v487
  %v489 = vrot.slane %v488, 4
  %v490 = vadd.f32 %v488, %v489
  %v491 = vrot.slane %v490, 2
  %v492 = vadd.f32 %v490, %v491
  %v493 = vrot.slane %v492, 1
  %v494 = vadd.f32 %v492, %v493
  %v495 = vmul.f32 %v494, %v480
  %v496 = vmul.f32 %v481, %v481
  %v497 = vsub.f32 %v495, %v496
  %v498 = vmax.f32 %v497, 0.0
  %v499 = vadd.f32 %v498, 1e-05
  %v500 = vrsqrt.pop %v499
  %v501 = vmul.f32 %v500, %v499
  %v502 = vmul.f32 %v501, %v500
  %v503 = vmul.f32 0.5, %v502
  %v504 = vsub.f32 1.5, %v503
  %v505 = vmul.f32 %v500, %v504
  %vm506 = vweird.f32 %v499
  %vm507 = vweird.f32 %v500
  %vm508 = vmor %vm506, %vm507
  %v509 = vsel %vm508, %v500, %v505
  %v510 = vld [vmem:[%s3] sm:$0x1]
  %v511 = vmul.f32 %v510, %v509
  %v512 = vld [vmem:[%s4] sm:$0x1]
  %v513 = vmul.f32 %v481, %v511
  %v514 = vsub.f32 %v512, %v513
  %v516 = vperm.slane %v511, 0
  %v518 = vmul.f32 %v363, %v516
  %v519 = vmul.f32 %v364, %v516
  %v520 = vmul.f32 %v365, %v516
  %v521 = vmul.f32 %v366, %v516
  %v523 = vperm.slane %v514, 0
  %v525 = vadd.f32 %v518, %v523
  %v526 = vadd.f32 %v519, %v523
  %v527 = vadd.f32 %v520, %v523
  %v528 = vadd.f32 %v521, %v523
  %vm529 = vcmp.gt.f32.partialorder %v525, 0.0
  %vm530 = vcmp.gt.f32.partialorder %v526, 0.0
  %vm531 = vcmp.gt.f32.partialorder %v527, 0.0
  %vm532 = vcmp.gt.f32.partialorder %v528, 0.0
  %v533 = vmin.f32 %v525, 0.0
  %v534 = vmin.f32 %v526, 0.0
  %v535 = vmin.f32 %v527, 0.0
  %v536 = vmin.f32 %v528, 0.0
  %v537 = vmul.f32 %v533, 1.442695
  %v538 = vpow.pop %v537
  %v539 = vmul.f32 %v534, 1.442695
  %v540 = vpow.pop %v539
  %v541 = vmul.f32 %v535, 1.442695
  %v542 = vpow.pop %v541
  %v543 = vmul.f32 %v536, 1.442695
  %v544 = vpow.pop %v543
  %v545 = vsub.f32 %v538, 1.0
  %v546 = vsub.f32 %v540, 1.0
  %v547 = vsub.f32 %v542, 1.0
  %v548 = vsub.f32 %v544, 1.0
  %v549 = vsel %vm529, %v525, %v545
  %v550 = vsel %vm530, %v526, %v546
  %v551 = vsel %vm531, %v527, %v547
  %v552 = vsel %vm532, %v528, %v548
  %553 = vmatpush.msra.mxu0 0.0
  %554 = vmatpush.msra.mxu0 0.0
  %555 = vmatpush.msra.mxu0 0.0
  %556 = vmatpush.msra.mxu0 0.0
  %557 = vmatpush.msra.mxu0 0.0
  %558 = vmatpush.msra.mxu0 0.0
  %559 = vmatpush.msra.mxu0 0.0
  %560 = vmatpush.msra.mxu0 0.0
  %561 = vmatpush.msra.mxu0 0.0
  %562 = vmatpush.msra.mxu0 0.0
  %563 = vmatpush.msra.mxu0 0.0
  %564 = vmatpush.msra.mxu0 0.0
  %565 = vmatpush.msra.mxu0 %v552
  %566 = vmatpush.msra.mxu0 %v551
  %567 = vmatpush.msra.mxu0 %v550
  %568 = vmatpush.msra.mxu0 %v549
  %569 = vmatmul.f32.gmra.mxu0 %v81
  %v570 = vpop.f32.mrf.mxu0
  %v571 = vadd.f32 0.0, %v570
  %572 = vmatmul.f32.gmra.mxu0 %v84
  %v573 = vpop.f32.mrf.mxu0
  %v574 = vadd.f32 0.0, %v573
  %575 = vmatmul.f32.gmra.mxu0 %v87
  %v576 = vpop.f32.mrf.mxu0
  %v577 = vadd.f32 0.0, %v576
  %578 = vmatmul.f32.gmra.mxu0 %v90
  %v579 = vpop.f32.mrf.mxu0
  %v580 = vadd.f32 0.0, %v579
  %581 = vdwg.mxu0
  %v582 = vld [vmem:[%s6] sm:$0xff]
  %v583 = vld [vmem:[%s6 + $0x8] sm:$0xff]
  %v584 = vld [vmem:[%s6 + $0x10] sm:$0xff]
  %v585 = vld [vmem:[%s6 + $0x18] sm:$0xff]
  %v586 = vld [vmem:[%s6 + $0x20] sm:$0xff]
  %v587 = vld [vmem:[%s6 + $0x28] sm:$0xff]
  %v588 = vld [vmem:[%s6 + $0x30] sm:$0xff]
  %v589 = vld [vmem:[%s6 + $0x38] sm:$0xff]
  %590 = vmatpush.msra.mxu0 0.0
  %591 = vmatpush.msra.mxu0 0.0
  %592 = vmatpush.msra.mxu0 0.0
  %593 = vmatpush.msra.mxu0 0.0
  %594 = vmatpush.msra.mxu0 0.0
  %595 = vmatpush.msra.mxu0 0.0
  %596 = vmatpush.msra.mxu0 0.0
  %597 = vmatpush.msra.mxu0 0.0
  %598 = vmatpush.msra.mxu0 0.0
  %599 = vmatpush.msra.mxu0 0.0
  %600 = vmatpush.msra.mxu0 0.0
  %601 = vmatpush.msra.mxu0 0.0
  %602 = vmatpush.msra.mxu0 %v552
  %603 = vmatpush.msra.mxu0 %v551
  %604 = vmatpush.msra.mxu0 %v550
  %605 = vmatpush.msra.mxu0 %v549
  %606 = vmatmul.f32.gmra.mxu0 %v135
  %v607 = vpop.f32.mrf.mxu0
  %v608 = vadd.f32 0.0, %v607
  %609 = vmatmul.f32.gmra.mxu0 %v138
  %v610 = vpop.f32.mrf.mxu0
  %v611 = vadd.f32 0.0, %v610
  %612 = vmatmul.f32.gmra.mxu0 %v141
  %v613 = vpop.f32.mrf.mxu0
  %v614 = vadd.f32 0.0, %v613
  %615 = vmatmul.f32.gmra.mxu0 %v144
  %v616 = vpop.f32.mrf.mxu0
  %v617 = vadd.f32 0.0, %v616
  %618 = vdwg.mxu0
  %s619 = scalar_lea.vmem %s6, 64
  %v620 = vld [vmem:[%s619] sm:$0xff]
  %v621 = vld [vmem:[%s619 + $0x8] sm:$0xff]
  %v622 = vld [vmem:[%s619 + $0x10] sm:$0xff]
  %v623 = vld [vmem:[%s619 + $0x18] sm:$0xff]
  %v624 = vld [vmem:[%s619 + $0x20] sm:$0xff]
  %v625 = vld [vmem:[%s619 + $0x28] sm:$0xff]
  %v626 = vld [vmem:[%s619 + $0x30] sm:$0xff]
  %v627 = vld [vmem:[%s619 + $0x38] sm:$0xff]
  %v629 = vsel %vm184, %v608, 0
  %v632 = vsel %vm184, %v611, 0
  %v635 = vsel %vm184, %v614, 0
  %v638 = vsel %vm184, %v617, 0
  %640 = vmatpush.msra.mxu0 0.0
  %641 = vmatpush.msra.mxu0 0.0
  %642 = vmatpush.msra.mxu0 0.0
  %643 = vmatpush.msra.mxu0 0.0
  %644 = vmatpush.msra.mxu0 0.0
  %645 = vmatpush.msra.mxu0 0.0
  %646 = vmatpush.msra.mxu0 0.0
  %647 = vmatpush.msra.mxu0 0.0
  %648 = vmatpush.msra.mxu0 %v627
  %649 = vmatpush.msra.mxu0 %v626
  %650 = vmatpush.msra.mxu0 %v625
  %651 = vmatpush.msra.mxu0 %v624
  %652 = vmatpush.msra.mxu0 %v623
  %653 = vmatpush.msra.mxu0 %v622
  %654 = vmatpush.msra.mxu0 %v621
  %655 = vmatpush.msra.mxu0 %v620
  %656 = vmatmul.f32.gmra.mxu0 %v629
  %v657 = vpop.f32.mrf.mxu0
  %v658 = vadd.f32 0.0, %v657
  %659 = vmatmul.f32.gmra.mxu0 %v632
  %v660 = vpop.f32.mrf.mxu0
  %v661 = vadd.f32 0.0, %v660
  %662 = vmatmul.f32.gmra.mxu0 %v635
  %v663 = vpop.f32.mrf.mxu0
  %v664 = vadd.f32 0.0, %v663
  %665 = vmatmul.f32.gmra.mxu0 %v638
  %v666 = vpop.f32.mrf.mxu0
  %v667 = vadd.f32 0.0, %v666
  %668 = vdwg.mxu0
  %v670 = vsel %vm184, %v571, 0
  %v673 = vsel %vm184, %v574, 0
  %v676 = vsel %vm184, %v577, 0
  %v679 = vsel %vm184, %v580, 0
  %681 = vmatpush.msra.mxu0 0.0
  %682 = vmatpush.msra.mxu0 0.0
  %683 = vmatpush.msra.mxu0 0.0
  %684 = vmatpush.msra.mxu0 0.0
  %685 = vmatpush.msra.mxu0 0.0
  %686 = vmatpush.msra.mxu0 0.0
  %687 = vmatpush.msra.mxu0 0.0
  %688 = vmatpush.msra.mxu0 0.0
  %689 = vmatpush.msra.mxu0 %v589
  %690 = vmatpush.msra.mxu0 %v588
  %691 = vmatpush.msra.mxu0 %v587
  %692 = vmatpush.msra.mxu0 %v586
  %693 = vmatpush.msra.mxu0 %v585
  %694 = vmatpush.msra.mxu0 %v584
  %695 = vmatpush.msra.mxu0 %v583
  %696 = vmatpush.msra.mxu0 %v582
  %697 = vmatmul.f32.gmra.mxu0 %v670
  %v698 = vpop.f32.mrf.mxu0
  %v699 = vadd.f32 %v658, %v698
  %700 = vmatmul.f32.gmra.mxu0 %v673
  %v701 = vpop.f32.mrf.mxu0
  %v702 = vadd.f32 %v661, %v701
  %703 = vmatmul.f32.gmra.mxu0 %v676
  %v704 = vpop.f32.mrf.mxu0
  %v705 = vadd.f32 %v664, %v704
  %706 = vmatmul.f32.gmra.mxu0 %v679
  %v707 = vpop.f32.mrf.mxu0
  %v708 = vadd.f32 %v667, %v707
  %709 = vdwg.mxu0
  %710 = vmatpush.msra.mxu0 0.0
  %711 = vmatpush.msra.mxu0 0.0
  %712 = vmatpush.msra.mxu0 0.0
  %713 = vmatpush.msra.mxu0 0.0
  %714 = vmatpush.msra.mxu0 0.0
  %715 = vmatpush.msra.mxu0 0.0
  %716 = vmatpush.msra.mxu0 0.0
  %717 = vmatpush.msra.mxu0 0.0
  %718 = vmatpush.msra.mxu0 0.0
  %719 = vmatpush.msra.mxu0 0.0
  %720 = vmatpush.msra.mxu0 0.0
  %721 = vmatpush.msra.mxu0 0.0
  %722 = vmatpush.msra.mxu0 %v552
  %723 = vmatpush.msra.mxu0 %v551
  %724 = vmatpush.msra.mxu0 %v550
  %725 = vmatpush.msra.mxu0 %v549
  %726 = vmatmul.f32.gmra.mxu0 %v273
  %v727 = vpop.f32.mrf.mxu0
  %v728 = vadd.f32 0.0, %v727
  %729 = vmatmul.f32.gmra.mxu0 %v276
  %v730 = vpop.f32.mrf.mxu0
  %v731 = vadd.f32 0.0, %v730
  %732 = vmatmul.f32.gmra.mxu0 %v279
  %v733 = vpop.f32.mrf.mxu0
  %v734 = vadd.f32 0.0, %v733
  %735 = vmatmul.f32.gmra.mxu0 %v282
  %v736 = vpop.f32.mrf.mxu0
  %v737 = vadd.f32 0.0, %v736
  %738 = vdwg.mxu0
  %s739 = scalar_lea.vmem %s6, 128
  %v740 = vld [vmem:[%s739] sm:$0xff]
  %v741 = vld [vmem:[%s739 + $0x8] sm:$0xff]
  %v742 = vld [vmem:[%s739 + $0x10] sm:$0xff]
  %v743 = vld [vmem:[%s739 + $0x18] sm:$0xff]
  %v744 = vld [vmem:[%s739 + $0x20] sm:$0xff]
  %v745 = vld [vmem:[%s739 + $0x28] sm:$0xff]
  %v746 = vld [vmem:[%s739 + $0x30] sm:$0xff]
  %v747 = vld [vmem:[%s739 + $0x38] sm:$0xff]
  %v749 = vsel %vm184, %v728, 0
  %v752 = vsel %vm184, %v731, 0
  %v755 = vsel %vm184, %v734, 0
  %v758 = vsel %vm184, %v737, 0
  %760 = vmatpush.msra.mxu0 0.0
  %761 = vmatpush.msra.mxu0 0.0
  %762 = vmatpush.msra.mxu0 0.0
  %763 = vmatpush.msra.mxu0 0.0
  %764 = vmatpush.msra.mxu0 0.0
  %765 = vmatpush.msra.mxu0 0.0
  %766 = vmatpush.msra.mxu0 0.0
  %767 = vmatpush.msra.mxu0 0.0
  %768 = vmatpush.msra.mxu0 %v747
  %769 = vmatpush.msra.mxu0 %v746
  %770 = vmatpush.msra.mxu0 %v745
  %771 = vmatpush.msra.mxu0 %v744
  %772 = vmatpush.msra.mxu0 %v743
  %773 = vmatpush.msra.mxu0 %v742
  %774 = vmatpush.msra.mxu0 %v741
  %775 = vmatpush.msra.mxu0 %v740
  %776 = vmatmul.f32.gmra.mxu0 %v749
  %v777 = vpop.f32.mrf.mxu0
  %v778 = vadd.f32 0.0, %v777
  %779 = vmatmul.f32.gmra.mxu0 %v752
  %v780 = vpop.f32.mrf.mxu0
  %v781 = vadd.f32 0.0, %v780
  %782 = vmatmul.f32.gmra.mxu0 %v755
  %v783 = vpop.f32.mrf.mxu0
  %v784 = vadd.f32 0.0, %v783
  %785 = vmatmul.f32.gmra.mxu0 %v758
  %v786 = vpop.f32.mrf.mxu0
  %v787 = vadd.f32 0.0, %v786
  %788 = vdwg.mxu0
  %v789 = vadd.f32 %v699, %v778
  %v790 = vadd.f32 %v702, %v781
  %v791 = vadd.f32 %v705, %v784
  %v792 = vadd.f32 %v708, %v787
  %v793 = vld [vmem:[%s9] sm:$0xff]
  %v794 = vld [vmem:[%s9 + $0x8] sm:$0xff]
  %v795 = vld [vmem:[%s9 + $0x10] sm:$0xff]
  %v796 = vld [vmem:[%s9 + $0x18] sm:$0xff]
  %v797 = vld [vmem:[%s9 + $0x20] sm:$0xff]
  %v798 = vld [vmem:[%s9 + $0x28] sm:$0xff]
  %v799 = vld [vmem:[%s9 + $0x30] sm:$0xff]
  %v800 = vld [vmem:[%s9 + $0x38] sm:$0xff]
  %v802 = vsel %vm184, %v789, 0
  %v805 = vsel %vm184, %v790, 0
  %v808 = vsel %vm184, %v791, 0
  %v811 = vsel %vm184, %v792, 0
  %813 = vmatpush.msra.mxu0 0.0
  %814 = vmatpush.msra.mxu0 0.0
  %815 = vmatpush.msra.mxu0 0.0
  %816 = vmatpush.msra.mxu0 0.0
  %817 = vmatpush.msra.mxu0 0.0
  %818 = vmatpush.msra.mxu0 0.0
  %819 = vmatpush.msra.mxu0 0.0
  %820 = vmatpush.msra.mxu0 0.0
  %821 = vmatpush.msra.mxu0 %v800
  %822 = vmatpush.msra.mxu0 %v799
  %823 = vmatpush.msra.mxu0 %v798
  %824 = vmatpush.msra.mxu0 %v797
  %825 = vmatpush.msra.mxu0 %v796
  %826 = vmatpush.msra.mxu0 %v795
  %827 = vmatpush.msra.mxu0 %v794
  %828 = vmatpush.msra.mxu0 %v793
  %829 = vmatmul.f32.gmra.mxu0 %v802
  %v830 = vpop.f32.mrf.mxu0
  %v831 = vadd.f32 0.0, %v830
  %832 = vmatmul.f32.gmra.mxu0 %v805
  %v833 = vpop.f32.mrf.mxu0
  %v834 = vadd.f32 0.0, %v833
  %835 = vmatmul.f32.gmra.mxu0 %v808
  %v836 = vpop.f32.mrf.mxu0
  %v837 = vadd.f32 0.0, %v836
  %838 = vmatmul.f32.gmra.mxu0 %v811
  %v839 = vpop.f32.mrf.mxu0
  %v840 = vadd.f32 0.0, %v839
  %841 = vdwg.mxu0
  %v842 = vmul.f32 %v789, %v789
  %v843 = vmul.f32 %v790, %v790
  %v844 = vmul.f32 %v791, %v791
  %v845 = vmul.f32 %v792, %v792
  %v847 = vsel %vm184, %v842, 0
  %v850 = vsel %vm184, %v843, 0
  %v853 = vsel %vm184, %v844, 0
  %v856 = vsel %vm184, %v845, 0
  %858 = vmatpush.msra.mxu0 0.0
  %859 = vmatpush.msra.mxu0 0.0
  %860 = vmatpush.msra.mxu0 0.0
  %861 = vmatpush.msra.mxu0 0.0
  %862 = vmatpush.msra.mxu0 0.0
  %863 = vmatpush.msra.mxu0 0.0
  %864 = vmatpush.msra.mxu0 0.0
  %865 = vmatpush.msra.mxu0 0.0
  %866 = vmatpush.msra.mxu0 %v800
  %867 = vmatpush.msra.mxu0 %v799
  %868 = vmatpush.msra.mxu0 %v798
  %869 = vmatpush.msra.mxu0 %v797
  %870 = vmatpush.msra.mxu0 %v796
  %871 = vmatpush.msra.mxu0 %v795
  %872 = vmatpush.msra.mxu0 %v794
  %873 = vmatpush.msra.mxu0 %v793
  %874 = vmatmul.f32.gmra.mxu0 %v847
  %v875 = vpop.f32.mrf.mxu0
  %v876 = vadd.f32 0.0, %v875
  %877 = vmatmul.f32.gmra.mxu0 %v850
  %v878 = vpop.f32.mrf.mxu0
  %v879 = vadd.f32 0.0, %v878
  %880 = vmatmul.f32.gmra.mxu0 %v853
  %v881 = vpop.f32.mrf.mxu0
  %v882 = vadd.f32 0.0, %v881
  %883 = vmatmul.f32.gmra.mxu0 %v856
  %v884 = vpop.f32.mrf.mxu0
  %v885 = vadd.f32 0.0, %v884
  %886 = vdwg.mxu0
  %v887 = vsel %vm184, %v831, 0.0
  %v888 = vsel %vm184, %v834, 0.0
  %v889 = vadd.f32 %v887, %v888
  %v890 = vsel %vm184, %v837, 0.0
  %v891 = vadd.f32 %v889, %v890
  %v892 = vsel %vm184, %v840, 0.0
  %v893 = vadd.f32 %v891, %v892
  %v894 = vrot.slane %v893, 4
  %v895 = vadd.f32 %v893, %v894
  %v896 = vrot.slane %v895, 2
  %v897 = vadd.f32 %v895, %v896
  %v898 = vrot.slane %v897, 1
  %v899 = vadd.f32 %v897, %v898
  %v900 = vmul.f32 %v899, %v480
  %v901 = vsel %vm184, %v876, 0.0
  %v902 = vsel %vm184, %v879, 0.0
  %v903 = vadd.f32 %v901, %v902
  %v904 = vsel %vm184, %v882, 0.0
  %v905 = vadd.f32 %v903, %v904
  %v906 = vsel %vm184, %v885, 0.0
  %v907 = vadd.f32 %v905, %v906
  %v908 = vrot.slane %v907, 4
  %v909 = vadd.f32 %v907, %v908
  %v910 = vrot.slane %v909, 2
  %v911 = vadd.f32 %v909, %v910
  %v912 = vrot.slane %v911, 1
  %v913 = vadd.f32 %v911, %v912
  %v914 = vmul.f32 %v913, %v480
  %v915 = vmul.f32 %v900, %v900
  %v916 = vsub.f32 %v914, %v915
  %v917 = vmax.f32 %v916, 0.0
  %v918 = vadd.f32 %v917, 1e-05
  %v919 = vrsqrt.pop %v918
  %v920 = vmul.f32 %v919, %v918
  %v921 = vmul.f32 %v920, %v919
  %v922 = vmul.f32 0.5, %v921
  %v923 = vsub.f32 1.5, %v922
  %v924 = vmul.f32 %v919, %v923
  %vm925 = vweird.f32 %v918
  %vm926 = vweird.f32 %v919
  %vm927 = vmor %vm925, %vm926
  %v928 = vsel %vm927, %v919, %v924
  %v929 = vld [vmem:[%s7] sm:$0x1]
  %v930 = vmul.f32 %v929, %v928
  %v931 = vld [vmem:[%s8] sm:$0x1]
  %v932 = vmul.f32 %v900, %v930
  %v933 = vsub.f32 %v931, %v932
  %v935 = vperm.slane %v930, 0
  %v937 = vmul.f32 %v789, %v935
  %v938 = vmul.f32 %v790, %v935
  %v939 = vmul.f32 %v791, %v935
  %v940 = vmul.f32 %v792, %v935
  %v942 = vperm.slane %v933, 0
  %v944 = vadd.f32 %v937, %v942
  %v945 = vadd.f32 %v938, %v942
  %v946 = vadd.f32 %v939, %v942
  %v947 = vadd.f32 %v940, %v942
  %vm948 = vcmp.gt.f32.partialorder %v944, 0.0
  %vm949 = vcmp.gt.f32.partialorder %v945, 0.0
  %vm950 = vcmp.gt.f32.partialorder %v946, 0.0
  %vm951 = vcmp.gt.f32.partialorder %v947, 0.0
  %v952 = vmin.f32 %v944, 0.0
  %v953 = vmin.f32 %v945, 0.0
  %v954 = vmin.f32 %v946, 0.0
  %v955 = vmin.f32 %v947, 0.0
  %v956 = vmul.f32 %v952, 1.442695
  %v957 = vpow.pop %v956
  %v958 = vmul.f32 %v953, 1.442695
  %v959 = vpow.pop %v958
  %v960 = vmul.f32 %v954, 1.442695
  %v961 = vpow.pop %v960
  %v962 = vmul.f32 %v955, 1.442695
  %v963 = vpow.pop %v962
  %v964 = vsub.f32 %v957, 1.0
  %v965 = vsub.f32 %v959, 1.0
  %v966 = vsub.f32 %v961, 1.0
  %v967 = vsub.f32 %v963, 1.0
  %v968 = vsel %vm948, %v944, %v964
  %v969 = vsel %vm949, %v945, %v965
  %v970 = vsel %vm950, %v946, %v966
  %v971 = vsel %vm951, %v947, %v967
  %972 = vmatpush.msra.mxu0 0.0
  %973 = vmatpush.msra.mxu0 0.0
  %974 = vmatpush.msra.mxu0 0.0
  %975 = vmatpush.msra.mxu0 0.0
  %976 = vmatpush.msra.mxu0 0.0
  %977 = vmatpush.msra.mxu0 0.0
  %978 = vmatpush.msra.mxu0 0.0
  %979 = vmatpush.msra.mxu0 0.0
  %980 = vmatpush.msra.mxu0 0.0
  %981 = vmatpush.msra.mxu0 0.0
  %982 = vmatpush.msra.mxu0 0.0
  %983 = vmatpush.msra.mxu0 0.0
  %984 = vmatpush.msra.mxu0 %v971
  %985 = vmatpush.msra.mxu0 %v970
  %986 = vmatpush.msra.mxu0 %v969
  %987 = vmatpush.msra.mxu0 %v968
  %988 = vmatmul.f32.gmra.mxu0 %v81
  %v989 = vpop.f32.mrf.mxu0
  %v990 = vadd.f32 0.0, %v989
  %991 = vmatmul.f32.gmra.mxu0 %v84
  %v992 = vpop.f32.mrf.mxu0
  %v993 = vadd.f32 0.0, %v992
  %994 = vmatmul.f32.gmra.mxu0 %v87
  %v995 = vpop.f32.mrf.mxu0
  %v996 = vadd.f32 0.0, %v995
  %997 = vmatmul.f32.gmra.mxu0 %v90
  %v998 = vpop.f32.mrf.mxu0
  %v999 = vadd.f32 0.0, %v998
  %1000 = vdwg.mxu0
  %v1001 = vld [vmem:[%s10] sm:$0xff]
  %v1002 = vld [vmem:[%s10 + $0x8] sm:$0xff]
  %v1003 = vld [vmem:[%s10 + $0x10] sm:$0xff]
  %v1004 = vld [vmem:[%s10 + $0x18] sm:$0xff]
  %v1005 = vld [vmem:[%s10 + $0x20] sm:$0xff]
  %v1006 = vld [vmem:[%s10 + $0x28] sm:$0xff]
  %v1007 = vld [vmem:[%s10 + $0x30] sm:$0xff]
  %v1008 = vld [vmem:[%s10 + $0x38] sm:$0xff]
  %1009 = vmatpush.msra.mxu0 0.0
  %1010 = vmatpush.msra.mxu0 0.0
  %1011 = vmatpush.msra.mxu0 0.0
  %1012 = vmatpush.msra.mxu0 0.0
  %1013 = vmatpush.msra.mxu0 0.0
  %1014 = vmatpush.msra.mxu0 0.0
  %1015 = vmatpush.msra.mxu0 0.0
  %1016 = vmatpush.msra.mxu0 0.0
  %1017 = vmatpush.msra.mxu0 0.0
  %1018 = vmatpush.msra.mxu0 0.0
  %1019 = vmatpush.msra.mxu0 0.0
  %1020 = vmatpush.msra.mxu0 0.0
  %1021 = vmatpush.msra.mxu0 %v971
  %1022 = vmatpush.msra.mxu0 %v970
  %1023 = vmatpush.msra.mxu0 %v969
  %1024 = vmatpush.msra.mxu0 %v968
  %1025 = vmatmul.f32.gmra.mxu0 %v135
  %v1026 = vpop.f32.mrf.mxu0
  %v1027 = vadd.f32 0.0, %v1026
  %1028 = vmatmul.f32.gmra.mxu0 %v138
  %v1029 = vpop.f32.mrf.mxu0
  %v1030 = vadd.f32 0.0, %v1029
  %1031 = vmatmul.f32.gmra.mxu0 %v141
  %v1032 = vpop.f32.mrf.mxu0
  %v1033 = vadd.f32 0.0, %v1032
  %1034 = vmatmul.f32.gmra.mxu0 %v144
  %v1035 = vpop.f32.mrf.mxu0
  %v1036 = vadd.f32 0.0, %v1035
  %1037 = vdwg.mxu0
  %s1038 = scalar_lea.vmem %s10, 64
  %v1039 = vld [vmem:[%s1038] sm:$0xff]
  %v1040 = vld [vmem:[%s1038 + $0x8] sm:$0xff]
  %v1041 = vld [vmem:[%s1038 + $0x10] sm:$0xff]
  %v1042 = vld [vmem:[%s1038 + $0x18] sm:$0xff]
  %v1043 = vld [vmem:[%s1038 + $0x20] sm:$0xff]
  %v1044 = vld [vmem:[%s1038 + $0x28] sm:$0xff]
  %v1045 = vld [vmem:[%s1038 + $0x30] sm:$0xff]
  %v1046 = vld [vmem:[%s1038 + $0x38] sm:$0xff]
  %v1048 = vsel %vm184, %v1027, 0
  %v1051 = vsel %vm184, %v1030, 0
  %v1054 = vsel %vm184, %v1033, 0
  %v1057 = vsel %vm184, %v1036, 0
  %1059 = vmatpush.msra.mxu0 0.0
  %1060 = vmatpush.msra.mxu0 0.0
  %1061 = vmatpush.msra.mxu0 0.0
  %1062 = vmatpush.msra.mxu0 0.0
  %1063 = vmatpush.msra.mxu0 0.0
  %1064 = vmatpush.msra.mxu0 0.0
  %1065 = vmatpush.msra.mxu0 0.0
  %1066 = vmatpush.msra.mxu0 0.0
  %1067 = vmatpush.msra.mxu0 %v1046
  %1068 = vmatpush.msra.mxu0 %v1045
  %1069 = vmatpush.msra.mxu0 %v1044
  %1070 = vmatpush.msra.mxu0 %v1043
  %1071 = vmatpush.msra.mxu0 %v1042
  %1072 = vmatpush.msra.mxu0 %v1041
  %1073 = vmatpush.msra.mxu0 %v1040
  %1074 = vmatpush.msra.mxu0 %v1039
  %1075 = vmatmul.f32.gmra.mxu0 %v1048
  %v1076 = vpop.f32.mrf.mxu0
  %v1077 = vadd.f32 0.0, %v1076
  %1078 = vmatmul.f32.gmra.mxu0 %v1051
  %v1079 = vpop.f32.mrf.mxu0
  %v1080 = vadd.f32 0.0, %v1079
  %1081 = vmatmul.f32.gmra.mxu0 %v1054
  %v1082 = vpop.f32.mrf.mxu0
  %v1083 = vadd.f32 0.0, %v1082
  %1084 = vmatmul.f32.gmra.mxu0 %v1057
  %v1085 = vpop.f32.mrf.mxu0
  %v1086 = vadd.f32 0.0, %v1085
  %1087 = vdwg.mxu0
  %v1089 = vsel %vm184, %v990, 0
  %v1092 = vsel %vm184, %v993, 0
  %v1095 = vsel %vm184, %v996, 0
  %v1098 = vsel %vm184, %v999, 0
  %1100 = vmatpush.msra.mxu0 0.0
  %1101 = vmatpush.msra.mxu0 0.0
  %1102 = vmatpush.msra.mxu0 0.0
  %1103 = vmatpush.msra.mxu0 0.0
  %1104 = vmatpush.msra.mxu0 0.0
  %1105 = vmatpush.msra.mxu0 0.0
  %1106 = vmatpush.msra.mxu0 0.0
  %1107 = vmatpush.msra.mxu0 0.0
  %1108 = vmatpush.msra.mxu0 %v1008
  %1109 = vmatpush.msra.mxu0 %v1007
  %1110 = vmatpush.msra.mxu0 %v1006
  %1111 = vmatpush.msra.mxu0 %v1005
  %1112 = vmatpush.msra.mxu0 %v1004
  %1113 = vmatpush.msra.mxu0 %v1003
  %1114 = vmatpush.msra.mxu0 %v1002
  %1115 = vmatpush.msra.mxu0 %v1001
  %1116 = vmatmul.f32.gmra.mxu0 %v1089
  %v1117 = vpop.f32.mrf.mxu0
  %v1118 = vadd.f32 %v1077, %v1117
  %1119 = vmatmul.f32.gmra.mxu0 %v1092
  %v1120 = vpop.f32.mrf.mxu0
  %v1121 = vadd.f32 %v1080, %v1120
  %1122 = vmatmul.f32.gmra.mxu0 %v1095
  %v1123 = vpop.f32.mrf.mxu0
  %v1124 = vadd.f32 %v1083, %v1123
  %1125 = vmatmul.f32.gmra.mxu0 %v1098
  %v1126 = vpop.f32.mrf.mxu0
  %v1127 = vadd.f32 %v1086, %v1126
  %1128 = vdwg.mxu0
  %1129 = vmatpush.msra.mxu0 0.0
  %1130 = vmatpush.msra.mxu0 0.0
  %1131 = vmatpush.msra.mxu0 0.0
  %1132 = vmatpush.msra.mxu0 0.0
  %1133 = vmatpush.msra.mxu0 0.0
  %1134 = vmatpush.msra.mxu0 0.0
  %1135 = vmatpush.msra.mxu0 0.0
  %1136 = vmatpush.msra.mxu0 0.0
  %1137 = vmatpush.msra.mxu0 0.0
  %1138 = vmatpush.msra.mxu0 0.0
  %1139 = vmatpush.msra.mxu0 0.0
  %1140 = vmatpush.msra.mxu0 0.0
  %1141 = vmatpush.msra.mxu0 %v971
  %1142 = vmatpush.msra.mxu0 %v970
  %1143 = vmatpush.msra.mxu0 %v969
  %1144 = vmatpush.msra.mxu0 %v968
  %1145 = vmatmul.f32.gmra.mxu0 %v273
  %v1146 = vpop.f32.mrf.mxu0
  %v1147 = vadd.f32 0.0, %v1146
  %1148 = vmatmul.f32.gmra.mxu0 %v276
  %v1149 = vpop.f32.mrf.mxu0
  %v1150 = vadd.f32 0.0, %v1149
  %1151 = vmatmul.f32.gmra.mxu0 %v279
  %v1152 = vpop.f32.mrf.mxu0
  %v1153 = vadd.f32 0.0, %v1152
  %1154 = vmatmul.f32.gmra.mxu0 %v282
  %v1155 = vpop.f32.mrf.mxu0
  %v1156 = vadd.f32 0.0, %v1155
  %1157 = vdwg.mxu0
  %s1158 = scalar_lea.vmem %s10, 128
  %v1159 = vld [vmem:[%s1158] sm:$0xff]
  %v1160 = vld [vmem:[%s1158 + $0x8] sm:$0xff]
  %v1161 = vld [vmem:[%s1158 + $0x10] sm:$0xff]
  %v1162 = vld [vmem:[%s1158 + $0x18] sm:$0xff]
  %v1163 = vld [vmem:[%s1158 + $0x20] sm:$0xff]
  %v1164 = vld [vmem:[%s1158 + $0x28] sm:$0xff]
  %v1165 = vld [vmem:[%s1158 + $0x30] sm:$0xff]
  %v1166 = vld [vmem:[%s1158 + $0x38] sm:$0xff]
  %v1168 = vsel %vm184, %v1147, 0
  %v1171 = vsel %vm184, %v1150, 0
  %v1174 = vsel %vm184, %v1153, 0
  %v1177 = vsel %vm184, %v1156, 0
  %1179 = vmatpush.msra.mxu0 0.0
  %1180 = vmatpush.msra.mxu0 0.0
  %1181 = vmatpush.msra.mxu0 0.0
  %1182 = vmatpush.msra.mxu0 0.0
  %1183 = vmatpush.msra.mxu0 0.0
  %1184 = vmatpush.msra.mxu0 0.0
  %1185 = vmatpush.msra.mxu0 0.0
  %1186 = vmatpush.msra.mxu0 0.0
  %1187 = vmatpush.msra.mxu0 %v1166
  %1188 = vmatpush.msra.mxu0 %v1165
  %1189 = vmatpush.msra.mxu0 %v1164
  %1190 = vmatpush.msra.mxu0 %v1163
  %1191 = vmatpush.msra.mxu0 %v1162
  %1192 = vmatpush.msra.mxu0 %v1161
  %1193 = vmatpush.msra.mxu0 %v1160
  %1194 = vmatpush.msra.mxu0 %v1159
  %1195 = vmatmul.f32.gmra.mxu0 %v1168
  %v1196 = vpop.f32.mrf.mxu0
  %v1197 = vadd.f32 0.0, %v1196
  %1198 = vmatmul.f32.gmra.mxu0 %v1171
  %v1199 = vpop.f32.mrf.mxu0
  %v1200 = vadd.f32 0.0, %v1199
  %1201 = vmatmul.f32.gmra.mxu0 %v1174
  %v1202 = vpop.f32.mrf.mxu0
  %v1203 = vadd.f32 0.0, %v1202
  %1204 = vmatmul.f32.gmra.mxu0 %v1177
  %v1205 = vpop.f32.mrf.mxu0
  %v1206 = vadd.f32 0.0, %v1205
  %1207 = vdwg.mxu0
  %v1208 = vadd.f32 %v1118, %v1197
  %v1209 = vadd.f32 %v1121, %v1200
  %v1210 = vadd.f32 %v1124, %v1203
  %v1211 = vadd.f32 %v1127, %v1206
  %v1212 = vld [vmem:[%s13] sm:$0xff]
  %v1213 = vld [vmem:[%s13 + $0x8] sm:$0xff]
  %v1214 = vld [vmem:[%s13 + $0x10] sm:$0xff]
  %v1215 = vld [vmem:[%s13 + $0x18] sm:$0xff]
  %v1216 = vld [vmem:[%s13 + $0x20] sm:$0xff]
  %v1217 = vld [vmem:[%s13 + $0x28] sm:$0xff]
  %v1218 = vld [vmem:[%s13 + $0x30] sm:$0xff]
  %v1219 = vld [vmem:[%s13 + $0x38] sm:$0xff]
  %v1220 = vld [vmem:[%s13 + $0x40] sm:$0xff]
  %v1221 = vld [vmem:[%s13 + $0x48] sm:$0xff]
  %v1222 = vld [vmem:[%s13 + $0x50] sm:$0xff]
  %v1223 = vld [vmem:[%s13 + $0x58] sm:$0xff]
  %v1224 = vld [vmem:[%s13 + $0x60] sm:$0xff]
  %v1225 = vld [vmem:[%s13 + $0x68] sm:$0xff]
  %v1226 = vld [vmem:[%s13 + $0x70] sm:$0xff]
  %v1227 = vld [vmem:[%s13 + $0x78] sm:$0xff]
  %1228 = vmatpush.msra.mxu0 %v1227
  %1229 = vmatpush.msra.mxu0 %v1226
  %1230 = vmatpush.msra.mxu0 %v1225
  %1231 = vmatpush.msra.mxu0 %v1224
  %1232 = vmatpush.msra.mxu0 %v1223
  %1233 = vmatpush.msra.mxu0 %v1222
  %1234 = vmatpush.msra.mxu0 %v1221
  %1235 = vmatpush.msra.mxu0 %v1220
  %1236 = vmatpush.msra.mxu0 %v1219
  %1237 = vmatpush.msra.mxu0 %v1218
  %1238 = vmatpush.msra.mxu0 %v1217
  %1239 = vmatpush.msra.mxu0 %v1216
  %1240 = vmatpush.msra.mxu0 %v1215
  %1241 = vmatpush.msra.mxu0 %v1214
  %1242 = vmatpush.msra.mxu0 %v1213
  %1243 = vmatpush.msra.mxu0 %v1212
  %1244 = vmatmul.f32.gmra.mxu0 %v1208
  %v1245 = vpop.f32.mrf.mxu0
  %v1246 = vadd.f32 0.0, %v1245
  %1247 = vmatmul.f32.gmra.mxu0 %v1209
  %v1248 = vpop.f32.mrf.mxu0
  %v1249 = vadd.f32 0.0, %v1248
  %1250 = vmatmul.f32.gmra.mxu0 %v1210
  %v1251 = vpop.f32.mrf.mxu0
  %v1252 = vadd.f32 0.0, %v1251
  %1253 = vmatmul.f32.gmra.mxu0 %v1211
  %v1254 = vpop.f32.mrf.mxu0
  %v1255 = vadd.f32 0.0, %v1254
  %1256 = vdwg.mxu0
  %v1257 = vmul.f32 %v1208, %v1208
  %v1258 = vmul.f32 %v1209, %v1209
  %v1259 = vmul.f32 %v1210, %v1210
  %v1260 = vmul.f32 %v1211, %v1211
  %1261 = vmatpush.msra.mxu0 %v1227
  %1262 = vmatpush.msra.mxu0 %v1226
  %1263 = vmatpush.msra.mxu0 %v1225
  %1264 = vmatpush.msra.mxu0 %v1224
  %1265 = vmatpush.msra.mxu0 %v1223
  %1266 = vmatpush.msra.mxu0 %v1222
  %1267 = vmatpush.msra.mxu0 %v1221
  %1268 = vmatpush.msra.mxu0 %v1220
  %1269 = vmatpush.msra.mxu0 %v1219
  %1270 = vmatpush.msra.mxu0 %v1218
  %1271 = vmatpush.msra.mxu0 %v1217
  %1272 = vmatpush.msra.mxu0 %v1216
  %1273 = vmatpush.msra.mxu0 %v1215
  %1274 = vmatpush.msra.mxu0 %v1214
  %1275 = vmatpush.msra.mxu0 %v1213
  %1276 = vmatpush.msra.mxu0 %v1212
  %1277 = vmatmul.f32.gmra.mxu0 %v1257
  %v1278 = vpop.f32.mrf.mxu0
  %v1279 = vadd.f32 0.0, %v1278
  %1280 = vmatmul.f32.gmra.mxu0 %v1258
  %v1281 = vpop.f32.mrf.mxu0
  %v1282 = vadd.f32 0.0, %v1281
  %1283 = vmatmul.f32.gmra.mxu0 %v1259
  %v1284 = vpop.f32.mrf.mxu0
  %v1285 = vadd.f32 0.0, %v1284
  %1286 = vmatmul.f32.gmra.mxu0 %v1260
  %v1287 = vpop.f32.mrf.mxu0
  %v1288 = vadd.f32 0.0, %v1287
  %1289 = vdwg.mxu0
  %v1290 = vadd.f32 %v1246, %v1249
  %v1291 = vadd.f32 %v1290, %v1252
  %v1292 = vadd.f32 %v1291, %v1255
  %v1293 = vrot.slane %v1292, 4
  %v1294 = vadd.f32 %v1292, %v1293
  %v1295 = vrot.slane %v1294, 2
  %v1296 = vadd.f32 %v1294, %v1295
  %v1297 = vrot.slane %v1296, 1
  %v1298 = vadd.f32 %v1296, %v1297
  %v1299 = vmul.f32 %v1298, %v480
  %v1300 = vadd.f32 %v1279, %v1282
  %v1301 = vadd.f32 %v1300, %v1285
  %v1302 = vadd.f32 %v1301, %v1288
  %v1303 = vrot.slane %v1302, 4
  %v1304 = vadd.f32 %v1302, %v1303
  %v1305 = vrot.slane %v1304, 2
  %v1306 = vadd.f32 %v1304, %v1305
  %v1307 = vrot.slane %v1306, 1
  %v1308 = vadd.f32 %v1306, %v1307
  %v1309 = vmul.f32 %v1308, %v480
  %v1310 = vmul.f32 %v1299, %v1299
  %v1311 = vsub.f32 %v1309, %v1310
  %v1312 = vmax.f32 %v1311, 0.0
  %v1313 = vadd.f32 %v1312, 1e-05
  %v1314 = vrsqrt.pop %v1313
  %v1315 = vmul.f32 %v1314, %v1313
  %v1316 = vmul.f32 %v1315, %v1314
  %v1317 = vmul.f32 0.5, %v1316
  %v1318 = vsub.f32 1.5, %v1317
  %v1319 = vmul.f32 %v1314, %v1318
  %vm1320 = vweird.f32 %v1313
  %vm1321 = vweird.f32 %v1314
  %vm1322 = vmor %vm1320, %vm1321
  %v1323 = vsel %vm1322, %v1314, %v1319
  %v1324 = vld [vmem:[%s11] sm:$0x1]
  %v1325 = vmul.f32 %v1324, %v1323
  %v1326 = vld [vmem:[%s12] sm:$0x1]
  %v1327 = vmul.f32 %v1299, %v1325
  %v1328 = vsub.f32 %v1326, %v1327
  %v1330 = vperm.slane %v1325, 0
  %v1332 = vmul.f32 %v1208, %v1330
  %v1333 = vmul.f32 %v1209, %v1330
  %v1334 = vmul.f32 %v1210, %v1330
  %v1335 = vmul.f32 %v1211, %v1330
  %v1337 = vperm.slane %v1328, 0
  %v1339 = vadd.f32 %v1332, %v1337
  %v1340 = vadd.f32 %v1333, %v1337
  %v1341 = vadd.f32 %v1334, %v1337
  %v1342 = vadd.f32 %v1335, %v1337
  %vm1343 = vcmp.gt.f32.partialorder %v1339, 0.0
  %vm1344 = vcmp.gt.f32.partialorder %v1340, 0.0
  %vm1345 = vcmp.gt.f32.partialorder %v1341, 0.0
  %vm1346 = vcmp.gt.f32.partialorder %v1342, 0.0
  %v1347 = vmin.f32 %v1339, 0.0
  %v1348 = vmin.f32 %v1340, 0.0
  %v1349 = vmin.f32 %v1341, 0.0
  %v1350 = vmin.f32 %v1342, 0.0
  %v1351 = vmul.f32 %v1347, 1.442695
  %v1352 = vpow.pop %v1351
  %v1353 = vmul.f32 %v1348, 1.442695
  %v1354 = vpow.pop %v1353
  %v1355 = vmul.f32 %v1349, 1.442695
  %v1356 = vpow.pop %v1355
  %v1357 = vmul.f32 %v1350, 1.442695
  %v1358 = vpow.pop %v1357
  %v1359 = vsub.f32 %v1352, 1.0
  %v1360 = vsub.f32 %v1354, 1.0
  %v1361 = vsub.f32 %v1356, 1.0
  %v1362 = vsub.f32 %v1358, 1.0
  %v1363 = vsel %vm1343, %v1339, %v1359
  %v1364 = vsel %vm1344, %v1340, %v1360
  %v1365 = vsel %vm1345, %v1341, %v1361
  %v1366 = vsel %vm1346, %v1342, %v1362
  %1367 = vmatpush.msra.mxu0 0.0
  %1368 = vmatpush.msra.mxu0 0.0
  %1369 = vmatpush.msra.mxu0 0.0
  %1370 = vmatpush.msra.mxu0 0.0
  %1371 = vmatpush.msra.mxu0 0.0
  %1372 = vmatpush.msra.mxu0 0.0
  %1373 = vmatpush.msra.mxu0 0.0
  %1374 = vmatpush.msra.mxu0 0.0
  %1375 = vmatpush.msra.mxu0 0.0
  %1376 = vmatpush.msra.mxu0 0.0
  %1377 = vmatpush.msra.mxu0 0.0
  %1378 = vmatpush.msra.mxu0 0.0
  %1379 = vmatpush.msra.mxu0 %v1366
  %1380 = vmatpush.msra.mxu0 %v1365
  %1381 = vmatpush.msra.mxu0 %v1364
  %1382 = vmatpush.msra.mxu0 %v1363
  %1383 = vmatmul.f32.gmra.mxu0 %v81
  %v1384 = vpop.f32.mrf.mxu0
  %v1385 = vadd.f32 0.0, %v1384
  %1386 = vmatmul.f32.gmra.mxu0 %v84
  %v1387 = vpop.f32.mrf.mxu0
  %v1388 = vadd.f32 0.0, %v1387
  %1389 = vmatmul.f32.gmra.mxu0 %v87
  %v1390 = vpop.f32.mrf.mxu0
  %v1391 = vadd.f32 0.0, %v1390
  %1392 = vmatmul.f32.gmra.mxu0 %v90
  %v1393 = vpop.f32.mrf.mxu0
  %v1394 = vadd.f32 0.0, %v1393
  %1395 = vdwg.mxu0
  %v1396 = vld [vmem:[%s14] sm:$0xff]
  %v1397 = vld [vmem:[%s14 + $0x8] sm:$0xff]
  %v1398 = vld [vmem:[%s14 + $0x10] sm:$0xff]
  %v1399 = vld [vmem:[%s14 + $0x18] sm:$0xff]
  %v1400 = vld [vmem:[%s14 + $0x20] sm:$0xff]
  %v1401 = vld [vmem:[%s14 + $0x28] sm:$0xff]
  %v1402 = vld [vmem:[%s14 + $0x30] sm:$0xff]
  %v1403 = vld [vmem:[%s14 + $0x38] sm:$0xff]
  %v1404 = vld [vmem:[%s14 + $0x40] sm:$0xff]
  %v1405 = vld [vmem:[%s14 + $0x48] sm:$0xff]
  %v1406 = vld [vmem:[%s14 + $0x50] sm:$0xff]
  %v1407 = vld [vmem:[%s14 + $0x58] sm:$0xff]
  %v1408 = vld [vmem:[%s14 + $0x60] sm:$0xff]
  %v1409 = vld [vmem:[%s14 + $0x68] sm:$0xff]
  %v1410 = vld [vmem:[%s14 + $0x70] sm:$0xff]
  %v1411 = vld [vmem:[%s14 + $0x78] sm:$0xff]
  %1412 = vmatpush.msra.mxu0 0.0
  %1413 = vmatpush.msra.mxu0 0.0
  %1414 = vmatpush.msra.mxu0 0.0
  %1415 = vmatpush.msra.mxu0 0.0
  %1416 = vmatpush.msra.mxu0 0.0
  %1417 = vmatpush.msra.mxu0 0.0
  %1418 = vmatpush.msra.mxu0 0.0
  %1419 = vmatpush.msra.mxu0 0.0
  %1420 = vmatpush.msra.mxu0 0.0
  %1421 = vmatpush.msra.mxu0 0.0
  %1422 = vmatpush.msra.mxu0 0.0
  %1423 = vmatpush.msra.mxu0 0.0
  %1424 = vmatpush.msra.mxu0 %v1366
  %1425 = vmatpush.msra.mxu0 %v1365
  %1426 = vmatpush.msra.mxu0 %v1364
  %1427 = vmatpush.msra.mxu0 %v1363
  %1428 = vmatmul.f32.gmra.mxu0 %v135
  %v1429 = vpop.f32.mrf.mxu0
  %v1430 = vadd.f32 0.0, %v1429
  %1431 = vmatmul.f32.gmra.mxu0 %v138
  %v1432 = vpop.f32.mrf.mxu0
  %v1433 = vadd.f32 0.0, %v1432
  %1434 = vmatmul.f32.gmra.mxu0 %v141
  %v1435 = vpop.f32.mrf.mxu0
  %v1436 = vadd.f32 0.0, %v1435
  %1437 = vmatmul.f32.gmra.mxu0 %v144
  %v1438 = vpop.f32.mrf.mxu0
  %v1439 = vadd.f32 0.0, %v1438
  %1440 = vdwg.mxu0
  %s1441 = scalar_lea.vmem %s14, 128
  %v1442 = vld [vmem:[%s1441] sm:$0xff]
  %v1443 = vld [vmem:[%s1441 + $0x8] sm:$0xff]
  %v1444 = vld [vmem:[%s1441 + $0x10] sm:$0xff]
  %v1445 = vld [vmem:[%s1441 + $0x18] sm:$0xff]
  %v1446 = vld [vmem:[%s1441 + $0x20] sm:$0xff]
  %v1447 = vld [vmem:[%s1441 + $0x28] sm:$0xff]
  %v1448 = vld [vmem:[%s1441 + $0x30] sm:$0xff]
  %v1449 = vld [vmem:[%s1441 + $0x38] sm:$0xff]
  %v1450 = vld [vmem:[%s1441 + $0x40] sm:$0xff]
  %v1451 = vld [vmem:[%s1441 + $0x48] sm:$0xff]
  %v1452 = vld [vmem:[%s1441 + $0x50] sm:$0xff]
  %v1453 = vld [vmem:[%s1441 + $0x58] sm:$0xff]
  %v1454 = vld [vmem:[%s1441 + $0x60] sm:$0xff]
  %v1455 = vld [vmem:[%s1441 + $0x68] sm:$0xff]
  %v1456 = vld [vmem:[%s1441 + $0x70] sm:$0xff]
  %v1457 = vld [vmem:[%s1441 + $0x78] sm:$0xff]
  %1458 = vmatpush.msra.mxu0 %v1457
  %1459 = vmatpush.msra.mxu0 %v1456
  %1460 = vmatpush.msra.mxu0 %v1455
  %1461 = vmatpush.msra.mxu0 %v1454
  %1462 = vmatpush.msra.mxu0 %v1453
  %1463 = vmatpush.msra.mxu0 %v1452
  %1464 = vmatpush.msra.mxu0 %v1451
  %1465 = vmatpush.msra.mxu0 %v1450
  %1466 = vmatpush.msra.mxu0 %v1449
  %1467 = vmatpush.msra.mxu0 %v1448
  %1468 = vmatpush.msra.mxu0 %v1447
  %1469 = vmatpush.msra.mxu0 %v1446
  %1470 = vmatpush.msra.mxu0 %v1445
  %1471 = vmatpush.msra.mxu0 %v1444
  %1472 = vmatpush.msra.mxu0 %v1443
  %1473 = vmatpush.msra.mxu0 %v1442
  %1474 = vmatmul.f32.gmra.mxu0 %v1430
  %v1475 = vpop.f32.mrf.mxu0
  %v1476 = vadd.f32 0.0, %v1475
  %1477 = vmatmul.f32.gmra.mxu0 %v1433
  %v1478 = vpop.f32.mrf.mxu0
  %v1479 = vadd.f32 0.0, %v1478
  %1480 = vmatmul.f32.gmra.mxu0 %v1436
  %v1481 = vpop.f32.mrf.mxu0
  %v1482 = vadd.f32 0.0, %v1481
  %1483 = vmatmul.f32.gmra.mxu0 %v1439
  %v1484 = vpop.f32.mrf.mxu0
  %v1485 = vadd.f32 0.0, %v1484
  %1486 = vdwg.mxu0
  %1487 = vmatpush.msra.mxu0 %v1411
  %1488 = vmatpush.msra.mxu0 %v1410
  %1489 = vmatpush.msra.mxu0 %v1409
  %1490 = vmatpush.msra.mxu0 %v1408
  %1491 = vmatpush.msra.mxu0 %v1407
  %1492 = vmatpush.msra.mxu0 %v1406
  %1493 = vmatpush.msra.mxu0 %v1405
  %1494 = vmatpush.msra.mxu0 %v1404
  %1495 = vmatpush.msra.mxu0 %v1403
  %1496 = vmatpush.msra.mxu0 %v1402
  %1497 = vmatpush.msra.mxu0 %v1401
  %1498 = vmatpush.msra.mxu0 %v1400
  %1499 = vmatpush.msra.mxu0 %v1399
  %1500 = vmatpush.msra.mxu0 %v1398
  %1501 = vmatpush.msra.mxu0 %v1397
  %1502 = vmatpush.msra.mxu0 %v1396
  %1503 = vmatmul.f32.gmra.mxu0 %v1385
  %v1504 = vpop.f32.mrf.mxu0
  %v1505 = vadd.f32 %v1476, %v1504
  %1506 = vmatmul.f32.gmra.mxu0 %v1388
  %v1507 = vpop.f32.mrf.mxu0
  %v1508 = vadd.f32 %v1479, %v1507
  %1509 = vmatmul.f32.gmra.mxu0 %v1391
  %v1510 = vpop.f32.mrf.mxu0
  %v1511 = vadd.f32 %v1482, %v1510
  %1512 = vmatmul.f32.gmra.mxu0 %v1394
  %v1513 = vpop.f32.mrf.mxu0
  %v1514 = vadd.f32 %v1485, %v1513
  %1515 = vdwg.mxu0
  %1516 = vmatpush.msra.mxu0 0.0
  %1517 = vmatpush.msra.mxu0 0.0
  %1518 = vmatpush.msra.mxu0 0.0
  %1519 = vmatpush.msra.mxu0 0.0
  %1520 = vmatpush.msra.mxu0 0.0
  %1521 = vmatpush.msra.mxu0 0.0
  %1522 = vmatpush.msra.mxu0 0.0
  %1523 = vmatpush.msra.mxu0 0.0
  %1524 = vmatpush.msra.mxu0 0.0
  %1525 = vmatpush.msra.mxu0 0.0
  %1526 = vmatpush.msra.mxu0 0.0
  %1527 = vmatpush.msra.mxu0 0.0
  %1528 = vmatpush.msra.mxu0 %v1366
  %1529 = vmatpush.msra.mxu0 %v1365
  %1530 = vmatpush.msra.mxu0 %v1364
  %1531 = vmatpush.msra.mxu0 %v1363
  %1532 = vmatmul.f32.gmra.mxu0 %v273
  %v1533 = vpop.f32.mrf.mxu0
  %v1534 = vadd.f32 0.0, %v1533
  %1535 = vmatmul.f32.gmra.mxu0 %v276
  %v1536 = vpop.f32.mrf.mxu0
  %v1537 = vadd.f32 0.0, %v1536
  %1538 = vmatmul.f32.gmra.mxu0 %v279
  %v1539 = vpop.f32.mrf.mxu0
  %v1540 = vadd.f32 0.0, %v1539
  %1541 = vmatmul.f32.gmra.mxu0 %v282
  %v1542 = vpop.f32.mrf.mxu0
  %v1543 = vadd.f32 0.0, %v1542
  %1544 = vdwg.mxu0
  %s1545 = scalar_lea.vmem %s14, 256
  %v1546 = vld [vmem:[%s1545] sm:$0xff]
  %v1547 = vld [vmem:[%s1545 + $0x8] sm:$0xff]
  %v1548 = vld [vmem:[%s1545 + $0x10] sm:$0xff]
  %v1549 = vld [vmem:[%s1545 + $0x18] sm:$0xff]
  %v1550 = vld [vmem:[%s1545 + $0x20] sm:$0xff]
  %v1551 = vld [vmem:[%s1545 + $0x28] sm:$0xff]
  %v1552 = vld [vmem:[%s1545 + $0x30] sm:$0xff]
  %v1553 = vld [vmem:[%s1545 + $0x38] sm:$0xff]
  %v1554 = vld [vmem:[%s1545 + $0x40] sm:$0xff]
  %v1555 = vld [vmem:[%s1545 + $0x48] sm:$0xff]
  %v1556 = vld [vmem:[%s1545 + $0x50] sm:$0xff]
  %v1557 = vld [vmem:[%s1545 + $0x58] sm:$0xff]
  %v1558 = vld [vmem:[%s1545 + $0x60] sm:$0xff]
  %v1559 = vld [vmem:[%s1545 + $0x68] sm:$0xff]
  %v1560 = vld [vmem:[%s1545 + $0x70] sm:$0xff]
  %v1561 = vld [vmem:[%s1545 + $0x78] sm:$0xff]
  %1562 = vmatpush.msra.mxu0 %v1561
  %1563 = vmatpush.msra.mxu0 %v1560
  %1564 = vmatpush.msra.mxu0 %v1559
  %1565 = vmatpush.msra.mxu0 %v1558
  %1566 = vmatpush.msra.mxu0 %v1557
  %1567 = vmatpush.msra.mxu0 %v1556
  %1568 = vmatpush.msra.mxu0 %v1555
  %1569 = vmatpush.msra.mxu0 %v1554
  %1570 = vmatpush.msra.mxu0 %v1553
  %1571 = vmatpush.msra.mxu0 %v1552
  %1572 = vmatpush.msra.mxu0 %v1551
  %1573 = vmatpush.msra.mxu0 %v1550
  %1574 = vmatpush.msra.mxu0 %v1549
  %1575 = vmatpush.msra.mxu0 %v1548
  %1576 = vmatpush.msra.mxu0 %v1547
  %1577 = vmatpush.msra.mxu0 %v1546
  %1578 = vmatmul.f32.gmra.mxu0 %v1534
  %v1579 = vpop.f32.mrf.mxu0
  %v1580 = vadd.f32 0.0, %v1579
  %1581 = vmatmul.f32.gmra.mxu0 %v1537
  %v1582 = vpop.f32.mrf.mxu0
  %v1583 = vadd.f32 0.0, %v1582
  %1584 = vmatmul.f32.gmra.mxu0 %v1540
  %v1585 = vpop.f32.mrf.mxu0
  %v1586 = vadd.f32 0.0, %v1585
  %1587 = vmatmul.f32.gmra.mxu0 %v1543
  %v1588 = vpop.f32.mrf.mxu0
  %v1589 = vadd.f32 0.0, %v1588
  %1590 = vdwg.mxu0
  %v1591 = vadd.f32 %v1505, %v1580
  %v1592 = vadd.f32 %v1508, %v1583
  %v1593 = vadd.f32 %v1511, %v1586
  %v1594 = vadd.f32 %v1514, %v1589
  %v1595 = vld [vmem:[%s17] sm:$0xff]
  %v1596 = vld [vmem:[%s17 + $0x8] sm:$0xff]
  %v1597 = vld [vmem:[%s17 + $0x10] sm:$0xff]
  %v1598 = vld [vmem:[%s17 + $0x18] sm:$0xff]
  %v1599 = vld [vmem:[%s17 + $0x20] sm:$0xff]
  %v1600 = vld [vmem:[%s17 + $0x28] sm:$0xff]
  %v1601 = vld [vmem:[%s17 + $0x30] sm:$0xff]
  %v1602 = vld [vmem:[%s17 + $0x38] sm:$0xff]
  %v1603 = vld [vmem:[%s17 + $0x40] sm:$0xff]
  %v1604 = vld [vmem:[%s17 + $0x48] sm:$0xff]
  %v1605 = vld [vmem:[%s17 + $0x50] sm:$0xff]
  %v1606 = vld [vmem:[%s17 + $0x58] sm:$0xff]
  %v1607 = vld [vmem:[%s17 + $0x60] sm:$0xff]
  %v1608 = vld [vmem:[%s17 + $0x68] sm:$0xff]
  %v1609 = vld [vmem:[%s17 + $0x70] sm:$0xff]
  %v1610 = vld [vmem:[%s17 + $0x78] sm:$0xff]
  %1611 = vmatpush.msra.mxu0 %v1610
  %1612 = vmatpush.msra.mxu0 %v1609
  %1613 = vmatpush.msra.mxu0 %v1608
  %1614 = vmatpush.msra.mxu0 %v1607
  %1615 = vmatpush.msra.mxu0 %v1606
  %1616 = vmatpush.msra.mxu0 %v1605
  %1617 = vmatpush.msra.mxu0 %v1604
  %1618 = vmatpush.msra.mxu0 %v1603
  %1619 = vmatpush.msra.mxu0 %v1602
  %1620 = vmatpush.msra.mxu0 %v1601
  %1621 = vmatpush.msra.mxu0 %v1600
  %1622 = vmatpush.msra.mxu0 %v1599
  %1623 = vmatpush.msra.mxu0 %v1598
  %1624 = vmatpush.msra.mxu0 %v1597
  %1625 = vmatpush.msra.mxu0 %v1596
  %1626 = vmatpush.msra.mxu0 %v1595
  %1627 = vmatmul.f32.gmra.mxu0 %v1591
  %v1628 = vpop.f32.mrf.mxu0
  %v1629 = vadd.f32 0.0, %v1628
  %1630 = vmatmul.f32.gmra.mxu0 %v1592
  %v1631 = vpop.f32.mrf.mxu0
  %v1632 = vadd.f32 0.0, %v1631
  %1633 = vmatmul.f32.gmra.mxu0 %v1593
  %v1634 = vpop.f32.mrf.mxu0
  %v1635 = vadd.f32 0.0, %v1634
  %1636 = vmatmul.f32.gmra.mxu0 %v1594
  %v1637 = vpop.f32.mrf.mxu0
  %v1638 = vadd.f32 0.0, %v1637
  %1639 = vdwg.mxu0
  %v1640 = vmul.f32 %v1591, %v1591
  %v1641 = vmul.f32 %v1592, %v1592
  %v1642 = vmul.f32 %v1593, %v1593
  %v1643 = vmul.f32 %v1594, %v1594
  %1644 = vmatpush.msra.mxu0 %v1610
  %1645 = vmatpush.msra.mxu0 %v1609
  %1646 = vmatpush.msra.mxu0 %v1608
  %1647 = vmatpush.msra.mxu0 %v1607
  %1648 = vmatpush.msra.mxu0 %v1606
  %1649 = vmatpush.msra.mxu0 %v1605
  %1650 = vmatpush.msra.mxu0 %v1604
  %1651 = vmatpush.msra.mxu0 %v1603
  %1652 = vmatpush.msra.mxu0 %v1602
  %1653 = vmatpush.msra.mxu0 %v1601
  %1654 = vmatpush.msra.mxu0 %v1600
  %1655 = vmatpush.msra.mxu0 %v1599
  %1656 = vmatpush.msra.mxu0 %v1598
  %1657 = vmatpush.msra.mxu0 %v1597
  %1658 = vmatpush.msra.mxu0 %v1596
  %1659 = vmatpush.msra.mxu0 %v1595
  %1660 = vmatmul.f32.gmra.mxu0 %v1640
  %v1661 = vpop.f32.mrf.mxu0
  %v1662 = vadd.f32 0.0, %v1661
  %1663 = vmatmul.f32.gmra.mxu0 %v1641
  %v1664 = vpop.f32.mrf.mxu0
  %v1665 = vadd.f32 0.0, %v1664
  %1666 = vmatmul.f32.gmra.mxu0 %v1642
  %v1667 = vpop.f32.mrf.mxu0
  %v1668 = vadd.f32 0.0, %v1667
  %1669 = vmatmul.f32.gmra.mxu0 %v1643
  %v1670 = vpop.f32.mrf.mxu0
  %v1671 = vadd.f32 0.0, %v1670
  %1672 = vdwg.mxu0
  %v1673 = vadd.f32 %v1629, %v1632
  %v1674 = vadd.f32 %v1673, %v1635
  %v1675 = vadd.f32 %v1674, %v1638
  %v1676 = vrot.slane %v1675, 4
  %v1677 = vadd.f32 %v1675, %v1676
  %v1678 = vrot.slane %v1677, 2
  %v1679 = vadd.f32 %v1677, %v1678
  %v1680 = vrot.slane %v1679, 1
  %v1681 = vadd.f32 %v1679, %v1680
  %v1682 = vmul.f32 %v1681, %v480
  %v1683 = vadd.f32 %v1662, %v1665
  %v1684 = vadd.f32 %v1683, %v1668
  %v1685 = vadd.f32 %v1684, %v1671
  %v1686 = vrot.slane %v1685, 4
  %v1687 = vadd.f32 %v1685, %v1686
  %v1688 = vrot.slane %v1687, 2
  %v1689 = vadd.f32 %v1687, %v1688
  %v1690 = vrot.slane %v1689, 1
  %v1691 = vadd.f32 %v1689, %v1690
  %v1692 = vmul.f32 %v1691, %v480
  %v1693 = vmul.f32 %v1682, %v1682
  %v1694 = vsub.f32 %v1692, %v1693
  %v1695 = vmax.f32 %v1694, 0.0
  %v1696 = vadd.f32 %v1695, 1e-05
  %v1697 = vrsqrt.pop %v1696
  %v1698 = vmul.f32 %v1697, %v1696
  %v1699 = vmul.f32 %v1698, %v1697
  %v1700 = vmul.f32 0.5, %v1699
  %v1701 = vsub.f32 1.5, %v1700
  %v1702 = vmul.f32 %v1697, %v1701
  %vm1703 = vweird.f32 %v1696
  %vm1704 = vweird.f32 %v1697
  %vm1705 = vmor %vm1703, %vm1704
  %v1706 = vsel %vm1705, %v1697, %v1702
  %v1707 = vld [vmem:[%s15] sm:$0x1]
  %v1708 = vmul.f32 %v1707, %v1706
  %v1709 = vld [vmem:[%s16] sm:$0x1]
  %v1710 = vmul.f32 %v1682, %v1708
  %v1711 = vsub.f32 %v1709, %v1710
  %v1713 = vperm.slane %v1708, 0
  %v1715 = vmul.f32 %v1591, %v1713
  %v1716 = vmul.f32 %v1592, %v1713
  %v1717 = vmul.f32 %v1593, %v1713
  %v1718 = vmul.f32 %v1594, %v1713
  %v1720 = vperm.slane %v1711, 0
  %v1722 = vadd.f32 %v1715, %v1720
  %v1723 = vadd.f32 %v1716, %v1720
  %v1724 = vadd.f32 %v1717, %v1720
  %v1725 = vadd.f32 %v1718, %v1720
  %vm1726 = vcmp.gt.f32.partialorder %v1722, 0.0
  %vm1727 = vcmp.gt.f32.partialorder %v1723, 0.0
  %vm1728 = vcmp.gt.f32.partialorder %v1724, 0.0
  %vm1729 = vcmp.gt.f32.partialorder %v1725, 0.0
  %v1730 = vmin.f32 %v1722, 0.0
  %v1731 = vmin.f32 %v1723, 0.0
  %v1732 = vmin.f32 %v1724, 0.0
  %v1733 = vmin.f32 %v1725, 0.0
  %v1734 = vmul.f32 %v1730, 1.442695
  %v1735 = vpow.pop %v1734
  %v1736 = vmul.f32 %v1731, 1.442695
  %v1737 = vpow.pop %v1736
  %v1738 = vmul.f32 %v1732, 1.442695
  %v1739 = vpow.pop %v1738
  %v1740 = vmul.f32 %v1733, 1.442695
  %v1741 = vpow.pop %v1740
  %v1742 = vsub.f32 %v1735, 1.0
  %v1743 = vsub.f32 %v1737, 1.0
  %v1744 = vsub.f32 %v1739, 1.0
  %v1745 = vsub.f32 %v1741, 1.0
  %v1746 = vsel %vm1726, %v1722, %v1742
  %v1747 = vsel %vm1727, %v1723, %v1743
  %v1748 = vsel %vm1728, %v1724, %v1744
  %v1749 = vsel %vm1729, %v1725, %v1745
  %1750 = vmatpush.msra.mxu0 0.0
  %1751 = vmatpush.msra.mxu0 0.0
  %1752 = vmatpush.msra.mxu0 0.0
  %1753 = vmatpush.msra.mxu0 0.0
  %1754 = vmatpush.msra.mxu0 0.0
  %1755 = vmatpush.msra.mxu0 0.0
  %1756 = vmatpush.msra.mxu0 0.0
  %1757 = vmatpush.msra.mxu0 0.0
  %1758 = vmatpush.msra.mxu0 0.0
  %1759 = vmatpush.msra.mxu0 0.0
  %1760 = vmatpush.msra.mxu0 0.0
  %1761 = vmatpush.msra.mxu0 0.0
  %1762 = vmatpush.msra.mxu0 %v1749
  %1763 = vmatpush.msra.mxu0 %v1748
  %1764 = vmatpush.msra.mxu0 %v1747
  %1765 = vmatpush.msra.mxu0 %v1746
  %1766 = vmatmul.f32.gmra.mxu0 %v81
  %v1767 = vpop.f32.mrf.mxu0
  %v1768 = vadd.f32 0.0, %v1767
  %1769 = vmatmul.f32.gmra.mxu0 %v84
  %v1770 = vpop.f32.mrf.mxu0
  %v1771 = vadd.f32 0.0, %v1770
  %1772 = vmatmul.f32.gmra.mxu0 %v87
  %v1773 = vpop.f32.mrf.mxu0
  %v1774 = vadd.f32 0.0, %v1773
  %1775 = vmatmul.f32.gmra.mxu0 %v90
  %v1776 = vpop.f32.mrf.mxu0
  %v1777 = vadd.f32 0.0, %v1776
  %1778 = vdwg.mxu0
  %v1779 = vld [vmem:[%s18] sm:$0xff]
  %v1780 = vld [vmem:[%s18 + $0x8] sm:$0xff]
  %v1781 = vld [vmem:[%s18 + $0x10] sm:$0xff]
  %v1782 = vld [vmem:[%s18 + $0x18] sm:$0xff]
  %v1783 = vld [vmem:[%s18 + $0x20] sm:$0xff]
  %v1784 = vld [vmem:[%s18 + $0x28] sm:$0xff]
  %v1785 = vld [vmem:[%s18 + $0x30] sm:$0xff]
  %v1786 = vld [vmem:[%s18 + $0x38] sm:$0xff]
  %v1787 = vld [vmem:[%s18 + $0x40] sm:$0xff]
  %v1788 = vld [vmem:[%s18 + $0x48] sm:$0xff]
  %v1789 = vld [vmem:[%s18 + $0x50] sm:$0xff]
  %v1790 = vld [vmem:[%s18 + $0x58] sm:$0xff]
  %v1791 = vld [vmem:[%s18 + $0x60] sm:$0xff]
  %v1792 = vld [vmem:[%s18 + $0x68] sm:$0xff]
  %v1793 = vld [vmem:[%s18 + $0x70] sm:$0xff]
  %v1794 = vld [vmem:[%s18 + $0x78] sm:$0xff]
  %1795 = vmatpush.msra.mxu0 0.0
  %1796 = vmatpush.msra.mxu0 0.0
  %1797 = vmatpush.msra.mxu0 0.0
  %1798 = vmatpush.msra.mxu0 0.0
  %1799 = vmatpush.msra.mxu0 0.0
  %1800 = vmatpush.msra.mxu0 0.0
  %1801 = vmatpush.msra.mxu0 0.0
  %1802 = vmatpush.msra.mxu0 0.0
  %1803 = vmatpush.msra.mxu0 0.0
  %1804 = vmatpush.msra.mxu0 0.0
  %1805 = vmatpush.msra.mxu0 0.0
  %1806 = vmatpush.msra.mxu0 0.0
  %1807 = vmatpush.msra.mxu0 %v1749
  %1808 = vmatpush.msra.mxu0 %v1748
  %1809 = vmatpush.msra.mxu0 %v1747
  %1810 = vmatpush.msra.mxu0 %v1746
  %1811 = vmatmul.f32.gmra.mxu0 %v135
  %v1812 = vpop.f32.mrf.mxu0
  %v1813 = vadd.f32 0.0, %v1812
  %1814 = vmatmul.f32.gmra.mxu0 %v138
  %v1815 = vpop.f32.mrf.mxu0
  %v1816 = vadd.f32 0.0, %v1815
  %1817 = vmatmul.f32.gmra.mxu0 %v141
  %v1818 = vpop.f32.mrf.mxu0
  %v1819 = vadd.f32 0.0, %v1818
  %1820 = vmatmul.f32.gmra.mxu0 %v144
  %v1821 = vpop.f32.mrf.mxu0
  %v1822 = vadd.f32 0.0, %v1821
  %1823 = vdwg.mxu0
  %s1824 = scalar_lea.vmem %s18, 128
  %v1825 = vld [vmem:[%s1824] sm:$0xff]
  %v1826 = vld [vmem:[%s1824 + $0x8] sm:$0xff]
  %v1827 = vld [vmem:[%s1824 + $0x10] sm:$0xff]
  %v1828 = vld [vmem:[%s1824 + $0x18] sm:$0xff]
  %v1829 = vld [vmem:[%s1824 + $0x20] sm:$0xff]
  %v1830 = vld [vmem:[%s1824 + $0x28] sm:$0xff]
  %v1831 = vld [vmem:[%s1824 + $0x30] sm:$0xff]
  %v1832 = vld [vmem:[%s1824 + $0x38] sm:$0xff]
  %v1833 = vld [vmem:[%s1824 + $0x40] sm:$0xff]
  %v1834 = vld [vmem:[%s1824 + $0x48] sm:$0xff]
  %v1835 = vld [vmem:[%s1824 + $0x50] sm:$0xff]
  %v1836 = vld [vmem:[%s1824 + $0x58] sm:$0xff]
  %v1837 = vld [vmem:[%s1824 + $0x60] sm:$0xff]
  %v1838 = vld [vmem:[%s1824 + $0x68] sm:$0xff]
  %v1839 = vld [vmem:[%s1824 + $0x70] sm:$0xff]
  %v1840 = vld [vmem:[%s1824 + $0x78] sm:$0xff]
  %1841 = vmatpush.msra.mxu0 %v1840
  %1842 = vmatpush.msra.mxu0 %v1839
  %1843 = vmatpush.msra.mxu0 %v1838
  %1844 = vmatpush.msra.mxu0 %v1837
  %1845 = vmatpush.msra.mxu0 %v1836
  %1846 = vmatpush.msra.mxu0 %v1835
  %1847 = vmatpush.msra.mxu0 %v1834
  %1848 = vmatpush.msra.mxu0 %v1833
  %1849 = vmatpush.msra.mxu0 %v1832
  %1850 = vmatpush.msra.mxu0 %v1831
  %1851 = vmatpush.msra.mxu0 %v1830
  %1852 = vmatpush.msra.mxu0 %v1829
  %1853 = vmatpush.msra.mxu0 %v1828
  %1854 = vmatpush.msra.mxu0 %v1827
  %1855 = vmatpush.msra.mxu0 %v1826
  %1856 = vmatpush.msra.mxu0 %v1825
  %1857 = vmatmul.f32.gmra.mxu0 %v1813
  %v1858 = vpop.f32.mrf.mxu0
  %v1859 = vadd.f32 0.0, %v1858
  %1860 = vmatmul.f32.gmra.mxu0 %v1816
  %v1861 = vpop.f32.mrf.mxu0
  %v1862 = vadd.f32 0.0, %v1861
  %1863 = vmatmul.f32.gmra.mxu0 %v1819
  %v1864 = vpop.f32.mrf.mxu0
  %v1865 = vadd.f32 0.0, %v1864
  %1866 = vmatmul.f32.gmra.mxu0 %v1822
  %v1867 = vpop.f32.mrf.mxu0
  %v1868 = vadd.f32 0.0, %v1867
  %1869 = vdwg.mxu0
  %1870 = vmatpush.msra.mxu0 %v1794
  %1871 = vmatpush.msra.mxu0 %v1793
  %1872 = vmatpush.msra.mxu0 %v1792
  %1873 = vmatpush.msra.mxu0 %v1791
  %1874 = vmatpush.msra.mxu0 %v1790
  %1875 = vmatpush.msra.mxu0 %v1789
  %1876 = vmatpush.msra.mxu0 %v1788
  %1877 = vmatpush.msra.mxu0 %v1787
  %1878 = vmatpush.msra.mxu0 %v1786
  %1879 = vmatpush.msra.mxu0 %v1785
  %1880 = vmatpush.msra.mxu0 %v1784
  %1881 = vmatpush.msra.mxu0 %v1783
  %1882 = vmatpush.msra.mxu0 %v1782
  %1883 = vmatpush.msra.mxu0 %v1781
  %1884 = vmatpush.msra.mxu0 %v1780
  %1885 = vmatpush.msra.mxu0 %v1779
  %1886 = vmatmul.f32.gmra.mxu0 %v1768
  %v1887 = vpop.f32.mrf.mxu0
  %v1888 = vadd.f32 %v1859, %v1887
  %1889 = vmatmul.f32.gmra.mxu0 %v1771
  %v1890 = vpop.f32.mrf.mxu0
  %v1891 = vadd.f32 %v1862, %v1890
  %1892 = vmatmul.f32.gmra.mxu0 %v1774
  %v1893 = vpop.f32.mrf.mxu0
  %v1894 = vadd.f32 %v1865, %v1893
  %1895 = vmatmul.f32.gmra.mxu0 %v1777
  %v1896 = vpop.f32.mrf.mxu0
  %v1897 = vadd.f32 %v1868, %v1896
  %1898 = vdwg.mxu0
  %1899 = vmatpush.msra.mxu0 0.0
  %1900 = vmatpush.msra.mxu0 0.0
  %1901 = vmatpush.msra.mxu0 0.0
  %1902 = vmatpush.msra.mxu0 0.0
  %1903 = vmatpush.msra.mxu0 0.0
  %1904 = vmatpush.msra.mxu0 0.0
  %1905 = vmatpush.msra.mxu0 0.0
  %1906 = vmatpush.msra.mxu0 0.0
  %1907 = vmatpush.msra.mxu0 0.0
  %1908 = vmatpush.msra.mxu0 0.0
  %1909 = vmatpush.msra.mxu0 0.0
  %1910 = vmatpush.msra.mxu0 0.0
  %1911 = vmatpush.msra.mxu0 %v1749
  %1912 = vmatpush.msra.mxu0 %v1748
  %1913 = vmatpush.msra.mxu0 %v1747
  %1914 = vmatpush.msra.mxu0 %v1746
  %1915 = vmatmul.f32.gmra.mxu0 %v273
  %v1916 = vpop.f32.mrf.mxu0
  %v1917 = vadd.f32 0.0, %v1916
  %1918 = vmatmul.f32.gmra.mxu0 %v276
  %v1919 = vpop.f32.mrf.mxu0
  %v1920 = vadd.f32 0.0, %v1919
  %1921 = vmatmul.f32.gmra.mxu0 %v279
  %v1922 = vpop.f32.mrf.mxu0
  %v1923 = vadd.f32 0.0, %v1922
  %1924 = vmatmul.f32.gmra.mxu0 %v282
  %v1925 = vpop.f32.mrf.mxu0
  %v1926 = vadd.f32 0.0, %v1925
  %1927 = vdwg.mxu0
  %s1928 = scalar_lea.vmem %s18, 256
  %v1929 = vld [vmem:[%s1928] sm:$0xff]
  %v1930 = vld [vmem:[%s1928 + $0x8] sm:$0xff]
  %v1931 = vld [vmem:[%s1928 + $0x10] sm:$0xff]
  %v1932 = vld [vmem:[%s1928 + $0x18] sm:$0xff]
  %v1933 = vld [vmem:[%s1928 + $0x20] sm:$0xff]
  %v1934 = vld [vmem:[%s1928 + $0x28] sm:$0xff]
  %v1935 = vld [vmem:[%s1928 + $0x30] sm:$0xff]
  %v1936 = vld [vmem:[%s1928 + $0x38] sm:$0xff]
  %v1937 = vld [vmem:[%s1928 + $0x40] sm:$0xff]
  %v1938 = vld [vmem:[%s1928 + $0x48] sm:$0xff]
  %v1939 = vld [vmem:[%s1928 + $0x50] sm:$0xff]
  %v1940 = vld [vmem:[%s1928 + $0x58] sm:$0xff]
  %v1941 = vld [vmem:[%s1928 + $0x60] sm:$0xff]
  %v1942 = vld [vmem:[%s1928 + $0x68] sm:$0xff]
  %v1943 = vld [vmem:[%s1928 + $0x70] sm:$0xff]
  %v1944 = vld [vmem:[%s1928 + $0x78] sm:$0xff]
  %1945 = vmatpush.msra.mxu0 %v1944
  %1946 = vmatpush.msra.mxu0 %v1943
  %1947 = vmatpush.msra.mxu0 %v1942
  %1948 = vmatpush.msra.mxu0 %v1941
  %1949 = vmatpush.msra.mxu0 %v1940
  %1950 = vmatpush.msra.mxu0 %v1939
  %1951 = vmatpush.msra.mxu0 %v1938
  %1952 = vmatpush.msra.mxu0 %v1937
  %1953 = vmatpush.msra.mxu0 %v1936
  %1954 = vmatpush.msra.mxu0 %v1935
  %1955 = vmatpush.msra.mxu0 %v1934
  %1956 = vmatpush.msra.mxu0 %v1933
  %1957 = vmatpush.msra.mxu0 %v1932
  %1958 = vmatpush.msra.mxu0 %v1931
  %1959 = vmatpush.msra.mxu0 %v1930
  %1960 = vmatpush.msra.mxu0 %v1929
  %1961 = vmatmul.f32.gmra.mxu0 %v1917
  %v1962 = vpop.f32.mrf.mxu0
  %v1963 = vadd.f32 0.0, %v1962
  %1964 = vmatmul.f32.gmra.mxu0 %v1920
  %v1965 = vpop.f32.mrf.mxu0
  %v1966 = vadd.f32 0.0, %v1965
  %1967 = vmatmul.f32.gmra.mxu0 %v1923
  %v1968 = vpop.f32.mrf.mxu0
  %v1969 = vadd.f32 0.0, %v1968
  %1970 = vmatmul.f32.gmra.mxu0 %v1926
  %v1971 = vpop.f32.mrf.mxu0
  %v1972 = vadd.f32 0.0, %v1971
  %1973 = vdwg.mxu0
  %v1974 = vadd.f32 %v1888, %v1963
  %v1975 = vadd.f32 %v1891, %v1966
  %v1976 = vadd.f32 %v1894, %v1969
  %v1977 = vadd.f32 %v1897, %v1972
  %v1978 = vld [vmem:[%s21] sm:$0xff]
  %v1979 = vld [vmem:[%s21 + $0x8] sm:$0xff]
  %v1980 = vld [vmem:[%s21 + $0x10] sm:$0xff]
  %v1981 = vld [vmem:[%s21 + $0x18] sm:$0xff]
  %v1982 = vld [vmem:[%s21 + $0x20] sm:$0xff]
  %v1983 = vld [vmem:[%s21 + $0x28] sm:$0xff]
  %v1984 = vld [vmem:[%s21 + $0x30] sm:$0xff]
  %v1985 = vld [vmem:[%s21 + $0x38] sm:$0xff]
  %v1986 = vld [vmem:[%s21 + $0x40] sm:$0xff]
  %v1987 = vld [vmem:[%s21 + $0x48] sm:$0xff]
  %v1988 = vld [vmem:[%s21 + $0x50] sm:$0xff]
  %v1989 = vld [vmem:[%s21 + $0x58] sm:$0xff]
  %v1990 = vld [vmem:[%s21 + $0x60] sm:$0xff]
  %v1991 = vld [vmem:[%s21 + $0x68] sm:$0xff]
  %v1992 = vld [vmem:[%s21 + $0x70] sm:$0xff]
  %v1993 = vld [vmem:[%s21 + $0x78] sm:$0xff]
  %1994 = vmatpush.msra.mxu0 %v1993
  %1995 = vmatpush.msra.mxu0 %v1992
  %1996 = vmatpush.msra.mxu0 %v1991
  %1997 = vmatpush.msra.mxu0 %v1990
  %1998 = vmatpush.msra.mxu0 %v1989
  %1999 = vmatpush.msra.mxu0 %v1988
  %2000 = vmatpush.msra.mxu0 %v1987
  %2001 = vmatpush.msra.mxu0 %v1986
  %2002 = vmatpush.msra.mxu0 %v1985
  %2003 = vmatpush.msra.mxu0 %v1984
  %2004 = vmatpush.msra.mxu0 %v1983
  %2005 = vmatpush.msra.mxu0 %v1982
  %2006 = vmatpush.msra.mxu0 %v1981
  %2007 = vmatpush.msra.mxu0 %v1980
  %2008 = vmatpush.msra.mxu0 %v1979
  %2009 = vmatpush.msra.mxu0 %v1978
  %2010 = vmatmul.f32.gmra.mxu0 %v1974
  %v2011 = vpop.f32.mrf.mxu0
  %v2012 = vadd.f32 0.0, %v2011
  %2013 = vmatmul.f32.gmra.mxu0 %v1975
  %v2014 = vpop.f32.mrf.mxu0
  %v2015 = vadd.f32 0.0, %v2014
  %2016 = vmatmul.f32.gmra.mxu0 %v1976
  %v2017 = vpop.f32.mrf.mxu0
  %v2018 = vadd.f32 0.0, %v2017
  %2019 = vmatmul.f32.gmra.mxu0 %v1977
  %v2020 = vpop.f32.mrf.mxu0
  %v2021 = vadd.f32 0.0, %v2020
  %2022 = vdwg.mxu0
  %v2023 = vmul.f32 %v1974, %v1974
  %v2024 = vmul.f32 %v1975, %v1975
  %v2025 = vmul.f32 %v1976, %v1976
  %v2026 = vmul.f32 %v1977, %v1977
  %2027 = vmatpush.msra.mxu0 %v1993
  %2028 = vmatpush.msra.mxu0 %v1992
  %2029 = vmatpush.msra.mxu0 %v1991
  %2030 = vmatpush.msra.mxu0 %v1990
  %2031 = vmatpush.msra.mxu0 %v1989
  %2032 = vmatpush.msra.mxu0 %v1988
  %2033 = vmatpush.msra.mxu0 %v1987
  %2034 = vmatpush.msra.mxu0 %v1986
  %2035 = vmatpush.msra.mxu0 %v1985
  %2036 = vmatpush.msra.mxu0 %v1984
  %2037 = vmatpush.msra.mxu0 %v1983
  %2038 = vmatpush.msra.mxu0 %v1982
  %2039 = vmatpush.msra.mxu0 %v1981
  %2040 = vmatpush.msra.mxu0 %v1980
  %2041 = vmatpush.msra.mxu0 %v1979
  %2042 = vmatpush.msra.mxu0 %v1978
  %2043 = vmatmul.f32.gmra.mxu0 %v2023
  %v2044 = vpop.f32.mrf.mxu0
  %v2045 = vadd.f32 0.0, %v2044
  %2046 = vmatmul.f32.gmra.mxu0 %v2024
  %v2047 = vpop.f32.mrf.mxu0
  %v2048 = vadd.f32 0.0, %v2047
  %2049 = vmatmul.f32.gmra.mxu0 %v2025
  %v2050 = vpop.f32.mrf.mxu0
  %v2051 = vadd.f32 0.0, %v2050
  %2052 = vmatmul.f32.gmra.mxu0 %v2026
  %v2053 = vpop.f32.mrf.mxu0
  %v2054 = vadd.f32 0.0, %v2053
  %2055 = vdwg.mxu0
  %v2056 = vadd.f32 %v2012, %v2015
  %v2057 = vadd.f32 %v2056, %v2018
  %v2058 = vadd.f32 %v2057, %v2021
  %v2059 = vrot.slane %v2058, 4
  %v2060 = vadd.f32 %v2058, %v2059
  %v2061 = vrot.slane %v2060, 2
  %v2062 = vadd.f32 %v2060, %v2061
  %v2063 = vrot.slane %v2062, 1
  %v2064 = vadd.f32 %v2062, %v2063
  %v2065 = vmul.f32 %v2064, %v480
  %v2066 = vadd.f32 %v2045, %v2048
  %v2067 = vadd.f32 %v2066, %v2051
  %v2068 = vadd.f32 %v2067, %v2054
  %v2069 = vrot.slane %v2068, 4
  %v2070 = vadd.f32 %v2068, %v2069
  %v2071 = vrot.slane %v2070, 2
  %v2072 = vadd.f32 %v2070, %v2071
  %v2073 = vrot.slane %v2072, 1
  %v2074 = vadd.f32 %v2072, %v2073
  %v2075 = vmul.f32 %v2074, %v480
  %v2076 = vmul.f32 %v2065, %v2065
  %v2077 = vsub.f32 %v2075, %v2076
  %v2078 = vmax.f32 %v2077, 0.0
  %v2079 = vadd.f32 %v2078, 1e-05
  %v2080 = vrsqrt.pop %v2079
  %v2081 = vmul.f32 %v2080, %v2079
  %v2082 = vmul.f32 %v2081, %v2080
  %v2083 = vmul.f32 0.5, %v2082
  %v2084 = vsub.f32 1.5, %v2083
  %v2085 = vmul.f32 %v2080, %v2084
  %vm2086 = vweird.f32 %v2079
  %vm2087 = vweird.f32 %v2080
  %vm2088 = vmor %vm2086, %vm2087
  %v2089 = vsel %vm2088, %v2080, %v2085
  %v2090 = vld [vmem:[%s19] sm:$0x1]
  %v2091 = vmul.f32 %v2090, %v2089
  %v2092 = vld [vmem:[%s20] sm:$0x1]
  %v2093 = vmul.f32 %v2065, %v2091
  %v2094 = vsub.f32 %v2092, %v2093
  %v2096 = vperm.slane %v2091, 0
  %v2098 = vmul.f32 %v1974, %v2096
  %v2099 = vmul.f32 %v1975, %v2096
  %v2100 = vmul.f32 %v1976, %v2096
  %v2101 = vmul.f32 %v1977, %v2096
  %v2103 = vperm.slane %v2094, 0
  %v2105 = vadd.f32 %v2098, %v2103
  %v2106 = vadd.f32 %v2099, %v2103
  %v2107 = vadd.f32 %v2100, %v2103
  %v2108 = vadd.f32 %v2101, %v2103
  %vm2109 = vcmp.gt.f32.partialorder %v2105, 0.0
  %vm2110 = vcmp.gt.f32.partialorder %v2106, 0.0
  %vm2111 = vcmp.gt.f32.partialorder %v2107, 0.0
  %vm2112 = vcmp.gt.f32.partialorder %v2108, 0.0
  %v2113 = vmin.f32 %v2105, 0.0
  %v2114 = vmin.f32 %v2106, 0.0
  %v2115 = vmin.f32 %v2107, 0.0
  %v2116 = vmin.f32 %v2108, 0.0
  %v2117 = vmul.f32 %v2113, 1.442695
  %v2118 = vpow.pop %v2117
  %v2119 = vmul.f32 %v2114, 1.442695
  %v2120 = vpow.pop %v2119
  %v2121 = vmul.f32 %v2115, 1.442695
  %v2122 = vpow.pop %v2121
  %v2123 = vmul.f32 %v2116, 1.442695
  %v2124 = vpow.pop %v2123
  %v2125 = vsub.f32 %v2118, 1.0
  %v2126 = vsub.f32 %v2120, 1.0
  %v2127 = vsub.f32 %v2122, 1.0
  %v2128 = vsub.f32 %v2124, 1.0
  %v2129 = vsel %vm2109, %v2105, %v2125
  %v2130 = vsel %vm2110, %v2106, %v2126
  %v2131 = vsel %vm2111, %v2107, %v2127
  %v2132 = vsel %vm2112, %v2108, %v2128
  %2133 = vst [vmem:[%s22] sm:$0xff] %v2129
  %2134 = vst [vmem:[%s22 + $0x8] sm:$0xff] %v2130
  %2135 = vst [vmem:[%s22 + $0x10] sm:$0xff] %v2131
  %2136 = vst [vmem:[%s22 + $0x18] sm:$0xff] %v2132
  // Predicated region
  $region90: #{conv_block_forward.1} parent=0 // pred_check
    _
  $region91: #{conv_block_forward.1} parent=0 // pred_check_branch
    %2138 = sbr.rel (0) target = $region93
  $region92: #{conv_block_forward.1} parent=0 // pred_region
    _
  $region93: #{conv_block_forward.1} parent=0 // pred_fallthru
    _
  // Predicated region
  $region94: #{conv_block_forward.1} parent=0 // pred_check
    _
  $region95: #{conv_block_forward.1} parent=0 // pred_check_branch
    %2140 = sbr.rel (0) target = $region97
  $region96: #{conv_block_forward.1} parent=0 // pred_region
    _
  $region97: #{conv_block_forward.1} parent=0 // pred_fallthru
    _

</llo_original>
